<compile_context>
chip_gen: v7x
topology: tpu7x:2x2x1
jax: 0.10.0
libtpu: 0.0.40
codegen_flags: <defaults>
</compile_context>

<pallas_src>
import functools

import jax
import jax.numpy as jnp
import numpy as np
from jax.experimental import pallas as pl
from jax.experimental.pallas import tpu as pltpu


# ---------------------------------------------------------------------------
# Fused forward kernel
# ---------------------------------------------------------------------------

def tbnet_kernel(a_ref, x_ref, emb_ref, src_ref, dst_ref,
                 wg1_ref, bg1_ref, wg2_ref, bg2_ref,
                 wir_ref, wiz_ref, win_ref,
                 whr_ref, whz_ref, whn_ref,
                 bir_ref, biz_ref, bin_ref,
                 bhr_ref, bhz_ref, bhn_ref,
                 w1a_ref, w1b_ref, b1_ref,
                 wta_ref, wtb_ref, bt_ref,
                 wfa_ref, wfb_ref, bf_ref,
                 o_ref, *, num_classes):
    f32 = jnp.float32
    N = a_ref.shape[0]
    H = whr_ref.shape[0]
    E = src_ref.shape[0]
    T = emb_ref.shape[0] // N

    a = a_ref[...]

    # ---- GCN layer 1: relu(A @ (X @ Wg1) + bg1) --------------------------------
    h = jnp.dot(x_ref[...], wg1_ref[...], preferred_element_type=f32)
    h = jnp.maximum(jnp.dot(a, h, preferred_element_type=f32) + bg1_ref[...], 0.0)
    # ---- GCN layer 2 ------------------------------------------------------------
    h = jnp.dot(h, wg2_ref[...], preferred_element_type=f32)
    h = jnp.maximum(jnp.dot(a, h, preferred_element_type=f32) + bg2_ref[...], 0.0)

    # ---- GRU: hoisted input-to-hidden projections for ALL timesteps at once ----
    emb = emb_ref[...]                                            # (T*N, Ft)
    gx_r = jnp.dot(emb, wir_ref[...], preferred_element_type=f32) + bir_ref[...]
    gx_z = jnp.dot(emb, wiz_ref[...], preferred_element_type=f32) + biz_ref[...]
    gx_n = jnp.dot(emb, win_ref[...], preferred_element_type=f32) + bin_ref[...]

    whr = whr_ref[...]
    whz = whz_ref[...]
    whn = whn_ref[...]
    bhr = bhr_ref[...]
    bhz = bhz_ref[...]
    bhn = bhn_ref[...]

    hid = jnp.zeros((N, H), f32)
    # T is small & static -> unrolled loop; only the recurrent matmuls remain
    # on the serial critical path.  Gate math stays in f32 (EUP/VPU friendly).
    for t in range(T):
        lo = t * N
        gh_r = jnp.dot(hid, whr, preferred_element_type=f32) + bhr
        gh_z = jnp.dot(hid, whz, preferred_element_type=f32) + bhz
        gh_n = jnp.dot(hid, whn, preferred_element_type=f32) + bhn
        r = jax.nn.sigmoid(gx_r[lo:lo + N, :] + gh_r)
        z = jax.nn.sigmoid(gx_z[lo:lo + N, :] + gh_z)
        n = jnp.tanh(gx_n[lo:lo + N, :] + r * gh_n)
        hid = (1.0 - z) * n + z * hid
    textout = hid                                                  # (N, H)

    # ---- Edge head: project in NODE space, gather per edge, add ---------------
    # xpair     = relu(h[src] @ W1[:H] + h[dst] @ W1[H:] + b1)
    # xpairtext = relu(t[src] @ Wt[:H] + t[dst] @ Wt[H:] + bt)
    p1a = jnp.dot(h, w1a_ref[...], preferred_element_type=f32)     # (N, H)
    p1b = jnp.dot(h, w1b_ref[...], preferred_element_type=f32)
    pta = jnp.dot(textout, wta_ref[...], preferred_element_type=f32)
    ptb = jnp.dot(textout, wtb_ref[...], preferred_element_type=f32)

    # exact one-hot gather (one 1.0 per row) done on the MXU
    iota_n = jax.lax.broadcasted_iota(jnp.int32, (E, N), 1)
    src_oh = (iota_n == src_ref[...]).astype(f32)                  # (E, N)
    dst_oh = (iota_n == dst_ref[...]).astype(f32)

    xpair = jnp.maximum(
        jnp.dot(src_oh, p1a, preferred_element_type=f32)
        + jnp.dot(dst_oh, p1b, preferred_element_type=f32)
        + b1_ref[...], 0.0)                                        # (E, H)
    xpairtext = jnp.maximum(
        jnp.dot(src_oh, pta, preferred_element_type=f32)
        + jnp.dot(dst_oh, ptb, preferred_element_type=f32)
        + bt_ref[...], 0.0)                                        # (E, H)

    # logits in a lane-dense (E, 128) buffer; padded class columns are masked
    logits = (jnp.dot(xpair, wfa_ref[...], preferred_element_type=f32)
              + jnp.dot(xpairtext, wfb_ref[...], preferred_element_type=f32)
              + bf_ref[...])                                       # (E, CP)

    class_mask = jax.lax.broadcasted_iota(jnp.int32, logits.shape, 1) < num_classes
    logits = jnp.where(class_mask, logits, -1e30)
    m = jnp.max(logits, axis=1, keepdims=True)
    s = logits - m
    lse = jnp.log(jnp.sum(jnp.exp(s), axis=1, keepdims=True))
    o_ref[...] = s - lse


# ---------------------------------------------------------------------------
# Wrapper: glue (adjacency build, embedding lookup, weight split/pad) + kernel
# ---------------------------------------------------------------------------

_CP = 128  # lane-dense padded class dimension for the output


def _full_spec(shape):
    nd = len(shape)
    return pl.BlockSpec(shape, lambda i, _nd=nd: (0,) * _nd)


def dense_gcn_adj(edge_index, num_nodes):
    # PyG gcn_norm semantics (dense, with self-loops); scatter-add stays in JAX.
    src, dst = edge_index[0], edge_index[1]
    loops = jnp.arange(num_nodes, dtype=src.dtype)
    src = jnp.concatenate([src, loops])
    dst = jnp.concatenate([dst, loops])
    deg = jnp.zeros((num_nodes,), jnp.float32).at[dst].add(1.0)
    dinv = jnp.where(deg > 0, jax.lax.rsqrt(deg), 0.0)
    norm = dinv[src] * dinv[dst]
    a = jnp.zeros((num_nodes, num_nodes), jnp.float32).at[dst, src].add(norm)
    return a


def tbnet_forward(params, x, edge_index, xtext, num_classes):
    N = x.shape[0]
    H = params["whh"].shape[0]

    a = dense_gcn_adj(edge_index, N)

    # Embedding lookup (gather) + time-major flatten: row t*N + i = node i, step t
    emb = jnp.take(params["embed"], xtext, axis=0)                 # (N, T, Ft)
    T, Ft = emb.shape[1], emb.shape[2]
    emb_flat = jnp.transpose(emb, (1, 0, 2)).reshape(T * N, Ft)    # (T*N, Ft)

    src = edge_index[0].astype(jnp.int32).reshape(-1, 1)           # (E, 1)
    dst = edge_index[1].astype(jnp.int32).reshape(-1, 1)
    E = src.shape[0]

    # Gate-separated GRU weights (r, z, n) — trace-time slicing only.
    wih, whh, bih, bhh = params["wih"], params["whh"], params["bih"], params["bhh"]
    wir, wiz, win = wih[:, :H], wih[:, H:2 * H], wih[:, 2 * H:]
    whr, whz, whn = whh[:, :H], whh[:, H:2 * H], whh[:, 2 * H:]
    bir, biz, bin_ = bih[:, :H], bih[:, H:2 * H], bih[:, 2 * H:]
    bhr, bhz, bhn = bhh[:, :H], bhh[:, H:2 * H], bhh[:, 2 * H:]

    # Split pair weights (replaces in-kernel lane-axis concatenation).
    w1a, w1b = params["w1"][:H], params["w1"][H:]
    wta, wtb = params["wt"][:H], params["wt"][H:]

    # Lane-dense padded final projection (extra columns are zero; masked in kernel).
    C = num_classes
    wfa = jnp.zeros((H, _CP), jnp.float32).at[:, :C].set(params["wf"][:H])
    wfb = jnp.zeros((H, _CP), jnp.float32).at[:, :C].set(params["wf"][H:])
    bf = jnp.zeros((1, _CP), jnp.float32).at[:, :C].set(params["bf"])

    args = (a, x, emb_flat, src, dst,
            params["wg1"], params["bg1"], params["wg2"], params["bg2"],
            wir, wiz, win, whr, whz, whn,
            bir, biz, bin_, bhr, bhz, bhn,
            w1a, w1b, params["b1"],
            wta, wtb, params["bt"],
            wfa, wfb, bf)

    out_padded = pl.pallas_call(
        functools.partial(tbnet_kernel, num_classes=C),
        out_shape=jax.ShapeDtypeStruct((E, _CP), jnp.float32),
        grid=(1,),
        in_specs=[_full_spec(v.shape) for v in args],
        out_specs=_full_spec((E, _CP)),
        compiler_params=pltpu.CompilerParams(dimension_semantics=("arbitrary",)),
    )(*args)

    return out_padded[:, :C]


# ---------------------------------------------------------------------------
# Pure-JAX reference (same weight layout) for verification
# ---------------------------------------------------------------------------

def reference_forward(params, x, edge_index, xtext):
    N = x.shape[0]
    H = params["whh"].shape[0]
    a = dense_gcn_adj(edge_index, N)
    h = jax.nn.relu(a @ (x @ params["wg1"]) + params["bg1"])
    h = jax.nn.relu(a @ (h @ params["wg2"]) + params["bg2"])

    emb = jnp.take(params["embed"], xtext, axis=0)                 # (N, T, F)
    hid = jnp.zeros((N, H), jnp.float32)
    T = emb.shape[1]
    for t in range(T):
        xt = emb[:, t, :]
        gx = xt @ params["wih"] + params["bih"]
        gh = hid @ params["whh"] + params["bhh"]
        r = jax.nn.sigmoid(gx[:, :H] + gh[:, :H])
        z = jax.nn.sigmoid(gx[:, H:2 * H] + gh[:, H:2 * H])
        n = jnp.tanh(gx[:, 2 * H:] + r * gh[:, 2 * H:])
        hid = (1.0 - z) * n + z * hid
    textout = hid

    src, dst = edge_index[0], edge_index[1]
    xp = jnp.concatenate([h[src], h[dst]], axis=1)
    xp = jax.nn.relu(xp @ params["w1"] + params["b1"])
    tp = jnp.concatenate([textout[src], textout[dst]], axis=1)
    tp = jax.nn.relu(tp @ params["wt"] + params["bt"])
    xf = jnp.concatenate([xp, tp], axis=1)
    logits = xf @ params["wf"] + params["bf"]
    return jax.nn.log_softmax(logits, axis=1)


# ---------------------------------------------------------------------------
# Main
# ---------------------------------------------------------------------------

if __name__ == "__main__":
    # Model hyper-parameters (consistent with the module)
    num_node_features = 8
    vocab_size = 20
    num_text_features = 16
    num_classes = 4
    H = 64                       # GCN / GRU hidden size fixed by the module

    # Problem sizes
    N = 16                       # number of graph nodes
    E = 24                       # number of edges (multiple of 8: sublane-friendly)
    T = 6                        # text sequence length per node

    key = jax.random.PRNGKey(0)
    keys = jax.random.split(key, 20)

    def w(k, shape, scale=0.1):
        return scale * jax.random.normal(k, shape, dtype=jnp.float32)

    params = {
        # GCNConv 1 / 2  (weights as (in, out))
        "wg1": w(keys[0], (num_node_features, H)),
        "bg1": w(keys[1], (1, H)),
        "wg2": w(keys[2], (H, H)),
        "bg2": w(keys[3], (1, H)),
        # Embedding
        "embed": w(keys[4], (vocab_size, num_text_features), scale=1.0),
        # GRU (weights transposed to (in, 3H); gate order r, z, n as in PyTorch)
        "wih": w(keys[5], (num_text_features, 3 * H)),
        "whh": w(keys[6], (H, 3 * H)),
        "bih": w(keys[7], (1, 3 * H)),
        "bhh": w(keys[8], (1, 3 * H)),
        # lin1, lin_text, lin_final
        "w1": w(keys[9], (2 * H, H)),
        "b1": w(keys[10], (1, H)),
        "wt": w(keys[11], (2 * H, H)),
        "bt": w(keys[12], (1, H)),
        "wf": w(keys[13], (2 * H, num_classes)),
        "bf": w(keys[14], (1, num_classes)),
    }

    # Inputs (data.x, data.edge_index, data.xtext)
    x = jax.random.normal(keys[15], (N, num_node_features), dtype=jnp.float32)
    edge_index = jax.random.randint(keys[16], (2, E), 0, N, dtype=jnp.int32)
    xtext = jax.random.randint(keys[17], (N, T), 0, vocab_size, dtype=jnp.int32)

    out = tbnet_forward(params, x, edge_index, xtext, num_classes)
    out = jax.block_until_ready(out)

    ref = reference_forward(params, x, edge_index, xtext)
    ref = jax.block_until_ready(ref)

    np.testing.assert_allclose(np.asarray(out), np.asarray(ref), rtol=1e-4, atol=1e-4)
    assert out.shape == (E, num_classes)

    print("KERNEL_OK")
</pallas_src>

<mosaic_0001>
module attributes {stable_mosaic.version = 11 : i64} {
  func.func @tbnet_kernel(%arg0: i32, %arg1: memref<16x16xf32, #tpu.memory_space<vmem>>, %arg2: memref<16x8xf32, #tpu.memory_space<vmem>>, %arg3: memref<96x16xf32, #tpu.memory_space<vmem>>, %arg4: memref<24x1xi32, #tpu.memory_space<vmem>>, %arg5: memref<24x1xi32, #tpu.memory_space<vmem>>, %arg6: memref<8x64xf32, #tpu.memory_space<vmem>>, %arg7: memref<1x64xf32, #tpu.memory_space<vmem>>, %arg8: memref<64x64xf32, #tpu.memory_space<vmem>>, %arg9: memref<1x64xf32, #tpu.memory_space<vmem>>, %arg10: memref<16x64xf32, #tpu.memory_space<vmem>>, %arg11: memref<16x64xf32, #tpu.memory_space<vmem>>, %arg12: memref<16x64xf32, #tpu.memory_space<vmem>>, %arg13: memref<64x64xf32, #tpu.memory_space<vmem>>, %arg14: memref<64x64xf32, #tpu.memory_space<vmem>>, %arg15: memref<64x64xf32, #tpu.memory_space<vmem>>, %arg16: memref<1x64xf32, #tpu.memory_space<vmem>>, %arg17: memref<1x64xf32, #tpu.memory_space<vmem>>, %arg18: memref<1x64xf32, #tpu.memory_space<vmem>>, %arg19: memref<1x64xf32, #tpu.memory_space<vmem>>, %arg20: memref<1x64xf32, #tpu.memory_space<vmem>>, %arg21: memref<1x64xf32, #tpu.memory_space<vmem>>, %arg22: memref<64x64xf32, #tpu.memory_space<vmem>>, %arg23: memref<64x64xf32, #tpu.memory_space<vmem>>, %arg24: memref<1x64xf32, #tpu.memory_space<vmem>>, %arg25: memref<64x64xf32, #tpu.memory_space<vmem>>, %arg26: memref<64x64xf32, #tpu.memory_space<vmem>>, %arg27: memref<1x64xf32, #tpu.memory_space<vmem>>, %arg28: memref<64x128xf32, #tpu.memory_space<vmem>>, %arg29: memref<64x128xf32, #tpu.memory_space<vmem>>, %arg30: memref<1x128xf32, #tpu.memory_space<vmem>>, %arg31: memref<24x128xf32, #tpu.memory_space<vmem>>) attributes {dimension_semantics = [#tpu.dimension_semantics<arbitrary>], iteration_bounds = array<i64: 1>, scalar_prefetch = 0 : i64, scratch_operands = 0 : i64, tpu.core_type = #tpu.core_type<tc>, window_params = [{pipeline_mode = #tpu.pipeline_mode<synchronous>, transform_indices = @transform_0, window_bounds = array<i64: 16, 16>}, {pipeline_mode = #tpu.pipeline_mode<synchronous>, transform_indices = @transform_1, window_bounds = array<i64: 16, 8>}, {pipeline_mode = #tpu.pipeline_mode<synchronous>, transform_indices = @transform_2, window_bounds = array<i64: 96, 16>}, {pipeline_mode = #tpu.pipeline_mode<synchronous>, transform_indices = @transform_3, window_bounds = array<i64: 24, 1>}, {pipeline_mode = #tpu.pipeline_mode<synchronous>, transform_indices = @transform_4, window_bounds = array<i64: 24, 1>}, {pipeline_mode = #tpu.pipeline_mode<synchronous>, transform_indices = @transform_5, window_bounds = array<i64: 8, 64>}, {pipeline_mode = #tpu.pipeline_mode<synchronous>, transform_indices = @transform_6, window_bounds = array<i64: 1, 64>}, {pipeline_mode = #tpu.pipeline_mode<synchronous>, transform_indices = @transform_7, window_bounds = array<i64: 64, 64>}, {pipeline_mode = #tpu.pipeline_mode<synchronous>, transform_indices = @transform_8, window_bounds = array<i64: 1, 64>}, {pipeline_mode = #tpu.pipeline_mode<synchronous>, transform_indices = @transform_9, window_bounds = array<i64: 16, 64>}, {pipeline_mode = #tpu.pipeline_mode<synchronous>, transform_indices = @transform_10, window_bounds = array<i64: 16, 64>}, {pipeline_mode = #tpu.pipeline_mode<synchronous>, transform_indices = @transform_11, window_bounds = array<i64: 16, 64>}, {pipeline_mode = #tpu.pipeline_mode<synchronous>, transform_indices = @transform_12, window_bounds = array<i64: 64, 64>}, {pipeline_mode = #tpu.pipeline_mode<synchronous>, transform_indices = @transform_13, window_bounds = array<i64: 64, 64>}, {pipeline_mode = #tpu.pipeline_mode<synchronous>, transform_indices = @transform_14, window_bounds = array<i64: 64, 64>}, {pipeline_mode = #tpu.pipeline_mode<synchronous>, transform_indices = @transform_15, window_bounds = array<i64: 1, 64>}, {pipeline_mode = #tpu.pipeline_mode<synchronous>, transform_indices = @transform_16, window_bounds = array<i64: 1, 64>}, {pipeline_mode = #tpu.pipeline_mode<synchronous>, transform_indices = @transform_17, window_bounds = array<i64: 1, 64>}, {pipeline_mode = #tpu.pipeline_mode<synchronous>, transform_indices = @transform_18, window_bounds = array<i64: 1, 64>}, {pipeline_mode = #tpu.pipeline_mode<synchronous>, transform_indices = @transform_19, window_bounds = array<i64: 1, 64>}, {pipeline_mode = #tpu.pipeline_mode<synchronous>, transform_indices = @transform_20, window_bounds = array<i64: 1, 64>}, {pipeline_mode = #tpu.pipeline_mode<synchronous>, transform_indices = @transform_21, window_bounds = array<i64: 64, 64>}, {pipeline_mode = #tpu.pipeline_mode<synchronous>, transform_indices = @transform_22, window_bounds = array<i64: 64, 64>}, {pipeline_mode = #tpu.pipeline_mode<synchronous>, transform_indices = @transform_23, window_bounds = array<i64: 1, 64>}, {pipeline_mode = #tpu.pipeline_mode<synchronous>, transform_indices = @transform_24, window_bounds = array<i64: 64, 64>}, {pipeline_mode = #tpu.pipeline_mode<synchronous>, transform_indices = @transform_25, window_bounds = array<i64: 64, 64>}, {pipeline_mode = #tpu.pipeline_mode<synchronous>, transform_indices = @transform_26, window_bounds = array<i64: 1, 64>}, {pipeline_mode = #tpu.pipeline_mode<synchronous>, transform_indices = @transform_27, window_bounds = array<i64: 64, 128>}, {pipeline_mode = #tpu.pipeline_mode<synchronous>, transform_indices = @transform_28, window_bounds = array<i64: 64, 128>}, {pipeline_mode = #tpu.pipeline_mode<synchronous>, transform_indices = @transform_29, window_bounds = array<i64: 1, 128>}, {pipeline_mode = #tpu.pipeline_mode<synchronous>, transform_indices = @transform_30, window_bounds = array<i64: 24, 128>}]} {
    %c0 = arith.constant 0 : index
    %c0_0 = arith.constant 0 : index
    %0 = vector.load %arg1[%c0, %c0_0] : memref<16x16xf32, #tpu.memory_space<vmem>>, vector<16x16xf32>
    %c0_1 = arith.constant 0 : index
    %c0_2 = arith.constant 0 : index
    %1 = vector.load %arg2[%c0_1, %c0_2] : memref<16x8xf32, #tpu.memory_space<vmem>>, vector<16x8xf32>
    %c0_3 = arith.constant 0 : index
    %c0_4 = arith.constant 0 : index
    %2 = vector.load %arg6[%c0_3, %c0_4] : memref<8x64xf32, #tpu.memory_space<vmem>>, vector<8x64xf32>
    %cst = arith.constant dense<0.000000e+00> : vector<16x64xf32>
    %3 = tpu.matmul %1, %2, %cst {dimension_numbers = #tpu.dot_dimension_numbers<[1], [0], [0], [1], [0, 0, 1, 1], [], []>} : vector<16x8xf32>, vector<8x64xf32>, vector<16x64xf32> -> vector<16x64xf32>
    %cst_5 = arith.constant dense<0.000000e+00> : vector<16x64xf32>
    %4 = tpu.matmul %0, %3, %cst_5 {dimension_numbers = #tpu.dot_dimension_numbers<[1], [0], [0], [1], [0, 0, 1, 1], [], []>} : vector<16x16xf32>, vector<16x64xf32>, vector<16x64xf32> -> vector<16x64xf32>
    %c0_6 = arith.constant 0 : index
    %c0_7 = arith.constant 0 : index
    %5 = vector.load %arg7[%c0_6, %c0_7] : memref<1x64xf32, #tpu.memory_space<vmem>>, vector<1x64xf32>
    %6 = vector.broadcast %5 : vector<1x64xf32> to vector<16x64xf32>
    %7 = arith.addf %4, %6 : vector<16x64xf32>
    %cst_8 = arith.constant 0.000000e+00 : f32
    %8 = vector.broadcast %cst_8 : f32 to vector<16x64xf32>
    %9 = arith.maximumf %7, %8 : vector<16x64xf32>
    %c0_9 = arith.constant 0 : index
    %c0_10 = arith.constant 0 : index
    %10 = vector.load %arg8[%c0_9, %c0_10] : memref<64x64xf32, #tpu.memory_space<vmem>>, vector<64x64xf32>
    %cst_11 = arith.constant dense<0.000000e+00> : vector<16x64xf32>
    %11 = tpu.matmul %9, %10, %cst_11 {dimension_numbers = #tpu.dot_dimension_numbers<[1], [0], [0], [1], [0, 0, 1, 1], [], []>} : vector<16x64xf32>, vector<64x64xf32>, vector<16x64xf32> -> vector<16x64xf32>
    %cst_12 = arith.constant dense<0.000000e+00> : vector<16x64xf32>
    %12 = tpu.matmul %0, %11, %cst_12 {dimension_numbers = #tpu.dot_dimension_numbers<[1], [0], [0], [1], [0, 0, 1, 1], [], []>} : vector<16x16xf32>, vector<16x64xf32>, vector<16x64xf32> -> vector<16x64xf32>
    %c0_13 = arith.constant 0 : index
    %c0_14 = arith.constant 0 : index
    %13 = vector.load %arg9[%c0_13, %c0_14] : memref<1x64xf32, #tpu.memory_space<vmem>>, vector<1x64xf32>
    %14 = vector.broadcast %13 : vector<1x64xf32> to vector<16x64xf32>
    %15 = arith.addf %12, %14 : vector<16x64xf32>
    %cst_15 = arith.constant 0.000000e+00 : f32
    %16 = vector.broadcast %cst_15 : f32 to vector<16x64xf32>
    %17 = arith.maximumf %15, %16 : vector<16x64xf32>
    %c0_16 = arith.constant 0 : index
    %c0_17 = arith.constant 0 : index
    %18 = vector.load %arg3[%c0_16, %c0_17] : memref<96x16xf32, #tpu.memory_space<vmem>>, vector<96x16xf32>
    %c0_18 = arith.constant 0 : index
    %c0_19 = arith.constant 0 : index
    %19 = vector.load %arg10[%c0_18, %c0_19] : memref<16x64xf32, #tpu.memory_space<vmem>>, vector<16x64xf32>
    %cst_20 = arith.constant dense<0.000000e+00> : vector<96x64xf32>
    %20 = tpu.matmul %18, %19, %cst_20 {dimension_numbers = #tpu.dot_dimension_numbers<[1], [0], [0], [1], [0, 0, 1, 1], [], []>} : vector<96x16xf32>, vector<16x64xf32>, vector<96x64xf32> -> vector<96x64xf32>
    %c0_21 = arith.constant 0 : index
    %c0_22 = arith.constant 0 : index
    %21 = vector.load %arg16[%c0_21, %c0_22] : memref<1x64xf32, #tpu.memory_space<vmem>>, vector<1x64xf32>
    %22 = vector.broadcast %21 : vector<1x64xf32> to vector<96x64xf32>
    %23 = arith.addf %20, %22 : vector<96x64xf32>
    %c0_23 = arith.constant 0 : index
    %c0_24 = arith.constant 0 : index
    %24 = vector.load %arg11[%c0_23, %c0_24] : memref<16x64xf32, #tpu.memory_space<vmem>>, vector<16x64xf32>
    %cst_25 = arith.constant dense<0.000000e+00> : vector<96x64xf32>
    %25 = tpu.matmul %18, %24, %cst_25 {dimension_numbers = #tpu.dot_dimension_numbers<[1], [0], [0], [1], [0, 0, 1, 1], [], []>} : vector<96x16xf32>, vector<16x64xf32>, vector<96x64xf32> -> vector<96x64xf32>
    %c0_26 = arith.constant 0 : index
    %c0_27 = arith.constant 0 : index
    %26 = vector.load %arg17[%c0_26, %c0_27] : memref<1x64xf32, #tpu.memory_space<vmem>>, vector<1x64xf32>
    %27 = vector.broadcast %26 : vector<1x64xf32> to vector<96x64xf32>
    %28 = arith.addf %25, %27 : vector<96x64xf32>
    %c0_28 = arith.constant 0 : index
    %c0_29 = arith.constant 0 : index
    %29 = vector.load %arg12[%c0_28, %c0_29] : memref<16x64xf32, #tpu.memory_space<vmem>>, vector<16x64xf32>
    %cst_30 = arith.constant dense<0.000000e+00> : vector<96x64xf32>
    %30 = tpu.matmul %18, %29, %cst_30 {dimension_numbers = #tpu.dot_dimension_numbers<[1], [0], [0], [1], [0, 0, 1, 1], [], []>} : vector<96x16xf32>, vector<16x64xf32>, vector<96x64xf32> -> vector<96x64xf32>
    %c0_31 = arith.constant 0 : index
    %c0_32 = arith.constant 0 : index
    %31 = vector.load %arg18[%c0_31, %c0_32] : memref<1x64xf32, #tpu.memory_space<vmem>>, vector<1x64xf32>
    %32 = vector.broadcast %31 : vector<1x64xf32> to vector<96x64xf32>
    %33 = arith.addf %30, %32 : vector<96x64xf32>
    %c0_33 = arith.constant 0 : index
    %c0_34 = arith.constant 0 : index
    %34 = vector.load %arg13[%c0_33, %c0_34] : memref<64x64xf32, #tpu.memory_space<vmem>>, vector<64x64xf32>
    %c0_35 = arith.constant 0 : index
    %c0_36 = arith.constant 0 : index
    %35 = vector.load %arg14[%c0_35, %c0_36] : memref<64x64xf32, #tpu.memory_space<vmem>>, vector<64x64xf32>
    %c0_37 = arith.constant 0 : index
    %c0_38 = arith.constant 0 : index
    %36 = vector.load %arg15[%c0_37, %c0_38] : memref<64x64xf32, #tpu.memory_space<vmem>>, vector<64x64xf32>
    %c0_39 = arith.constant 0 : index
    %c0_40 = arith.constant 0 : index
    %37 = vector.load %arg19[%c0_39, %c0_40] : memref<1x64xf32, #tpu.memory_space<vmem>>, vector<1x64xf32>
    %c0_41 = arith.constant 0 : index
    %c0_42 = arith.constant 0 : index
    %38 = vector.load %arg20[%c0_41, %c0_42] : memref<1x64xf32, #tpu.memory_space<vmem>>, vector<1x64xf32>
    %c0_43 = arith.constant 0 : index
    %c0_44 = arith.constant 0 : index
    %39 = vector.load %arg21[%c0_43, %c0_44] : memref<1x64xf32, #tpu.memory_space<vmem>>, vector<1x64xf32>
    %cst_45 = arith.constant 0.000000e+00 : f32
    %40 = vector.broadcast %cst_45 : f32 to vector<16x64xf32>
    %cst_46 = arith.constant dense<0.000000e+00> : vector<16x64xf32>
    %41 = tpu.matmul %40, %34, %cst_46 {dimension_numbers = #tpu.dot_dimension_numbers<[1], [0], [0], [1], [0, 0, 1, 1], [], []>} : vector<16x64xf32>, vector<64x64xf32>, vector<16x64xf32> -> vector<16x64xf32>
    %42 = vector.broadcast %37 : vector<1x64xf32> to vector<16x64xf32>
    %43 = arith.addf %41, %42 : vector<16x64xf32>
    %cst_47 = arith.constant dense<0.000000e+00> : vector<16x64xf32>
    %44 = tpu.matmul %40, %35, %cst_47 {dimension_numbers = #tpu.dot_dimension_numbers<[1], [0], [0], [1], [0, 0, 1, 1], [], []>} : vector<16x64xf32>, vector<64x64xf32>, vector<16x64xf32> -> vector<16x64xf32>
    %45 = vector.broadcast %38 : vector<1x64xf32> to vector<16x64xf32>
    %46 = arith.addf %44, %45 : vector<16x64xf32>
    %cst_48 = arith.constant dense<0.000000e+00> : vector<16x64xf32>
    %47 = tpu.matmul %40, %36, %cst_48 {dimension_numbers = #tpu.dot_dimension_numbers<[1], [0], [0], [1], [0, 0, 1, 1], [], []>} : vector<16x64xf32>, vector<64x64xf32>, vector<16x64xf32> -> vector<16x64xf32>
    %48 = vector.broadcast %39 : vector<1x64xf32> to vector<16x64xf32>
    %49 = arith.addf %47, %48 : vector<16x64xf32>
    %50 = vector.extract_strided_slice %23 {offsets = [0, 0], sizes = [16, 64], strides = [1, 1]} : vector<96x64xf32> to vector<16x64xf32>
    %51 = arith.addf %50, %43 : vector<16x64xf32>
    %52 = arith.negf %51 : vector<16x64xf32>
    %53 = math.exp %52 : vector<16x64xf32>
    %cst_49 = arith.constant 1.000000e+00 : f32
    %54 = vector.broadcast %cst_49 : f32 to vector<16x64xf32>
    %55 = arith.addf %54, %53 : vector<16x64xf32>
    %56 = arith.divf %54, %55 : vector<16x64xf32>
    %57 = vector.extract_strided_slice %28 {offsets = [0, 0], sizes = [16, 64], strides = [1, 1]} : vector<96x64xf32> to vector<16x64xf32>
    %58 = arith.addf %57, %46 : vector<16x64xf32>
    %59 = arith.negf %58 : vector<16x64xf32>
    %60 = math.exp %59 : vector<16x64xf32>
    %cst_50 = arith.constant 1.000000e+00 : f32
    %61 = vector.broadcast %cst_50 : f32 to vector<16x64xf32>
    %62 = arith.addf %61, %60 : vector<16x64xf32>
    %63 = arith.divf %61, %62 : vector<16x64xf32>
    %64 = vector.extract_strided_slice %33 {offsets = [0, 0], sizes = [16, 64], strides = [1, 1]} : vector<96x64xf32> to vector<16x64xf32>
    %65 = arith.mulf %56, %49 : vector<16x64xf32>
    %66 = arith.addf %64, %65 : vector<16x64xf32>
    %67 = math.tanh %66 : vector<16x64xf32>
    %cst_51 = arith.constant 1.000000e+00 : f32
    %68 = vector.broadcast %cst_51 : f32 to vector<16x64xf32>
    %69 = arith.subf %68, %63 : vector<16x64xf32>
    %70 = arith.mulf %69, %67 : vector<16x64xf32>
    %71 = arith.mulf %63, %40 : vector<16x64xf32>
    %72 = arith.addf %70, %71 : vector<16x64xf32>
    %cst_52 = arith.constant dense<0.000000e+00> : vector<16x64xf32>
    %73 = tpu.matmul %72, %34, %cst_52 {dimension_numbers = #tpu.dot_dimension_numbers<[1], [0], [0], [1], [0, 0, 1, 1], [], []>} : vector<16x64xf32>, vector<64x64xf32>, vector<16x64xf32> -> vector<16x64xf32>
    %74 = vector.broadcast %37 : vector<1x64xf32> to vector<16x64xf32>
    %75 = arith.addf %73, %74 : vector<16x64xf32>
    %cst_53 = arith.constant dense<0.000000e+00> : vector<16x64xf32>
    %76 = tpu.matmul %72, %35, %cst_53 {dimension_numbers = #tpu.dot_dimension_numbers<[1], [0], [0], [1], [0, 0, 1, 1], [], []>} : vector<16x64xf32>, vector<64x64xf32>, vector<16x64xf32> -> vector<16x64xf32>
    %77 = vector.broadcast %38 : vector<1x64xf32> to vector<16x64xf32>
    %78 = arith.addf %76, %77 : vector<16x64xf32>
    %cst_54 = arith.constant dense<0.000000e+00> : vector<16x64xf32>
    %79 = tpu.matmul %72, %36, %cst_54 {dimension_numbers = #tpu.dot_dimension_numbers<[1], [0], [0], [1], [0, 0, 1, 1], [], []>} : vector<16x64xf32>, vector<64x64xf32>, vector<16x64xf32> -> vector<16x64xf32>
    %80 = vector.broadcast %39 : vector<1x64xf32> to vector<16x64xf32>
    %81 = arith.addf %79, %80 : vector<16x64xf32>
    %82 = vector.extract_strided_slice %23 {offsets = [16, 0], sizes = [16, 64], strides = [1, 1]} : vector<96x64xf32> to vector<16x64xf32>
    %83 = arith.addf %82, %75 : vector<16x64xf32>
    %84 = arith.negf %83 : vector<16x64xf32>
    %85 = math.exp %84 : vector<16x64xf32>
    %cst_55 = arith.constant 1.000000e+00 : f32
    %86 = vector.broadcast %cst_55 : f32 to vector<16x64xf32>
    %87 = arith.addf %86, %85 : vector<16x64xf32>
    %88 = arith.divf %86, %87 : vector<16x64xf32>
    %89 = vector.extract_strided_slice %28 {offsets = [16, 0], sizes = [16, 64], strides = [1, 1]} : vector<96x64xf32> to vector<16x64xf32>
    %90 = arith.addf %89, %78 : vector<16x64xf32>
    %91 = arith.negf %90 : vector<16x64xf32>
    %92 = math.exp %91 : vector<16x64xf32>
    %cst_56 = arith.constant 1.000000e+00 : f32
    %93 = vector.broadcast %cst_56 : f32 to vector<16x64xf32>
    %94 = arith.addf %93, %92 : vector<16x64xf32>
    %95 = arith.divf %93, %94 : vector<16x64xf32>
    %96 = vector.extract_strided_slice %33 {offsets = [16, 0], sizes = [16, 64], strides = [1, 1]} : vector<96x64xf32> to vector<16x64xf32>
    %97 = arith.mulf %88, %81 : vector<16x64xf32>
    %98 = arith.addf %96, %97 : vector<16x64xf32>
    %99 = math.tanh %98 : vector<16x64xf32>
    %cst_57 = arith.constant 1.000000e+00 : f32
    %100 = vector.broadcast %cst_57 : f32 to vector<16x64xf32>
    %101 = arith.subf %100, %95 : vector<16x64xf32>
    %102 = arith.mulf %101, %99 : vector<16x64xf32>
    %103 = arith.mulf %95, %72 : vector<16x64xf32>
    %104 = arith.addf %102, %103 : vector<16x64xf32>
    %cst_58 = arith.constant dense<0.000000e+00> : vector<16x64xf32>
    %105 = tpu.matmul %104, %34, %cst_58 {dimension_numbers = #tpu.dot_dimension_numbers<[1], [0], [0], [1], [0, 0, 1, 1], [], []>} : vector<16x64xf32>, vector<64x64xf32>, vector<16x64xf32> -> vector<16x64xf32>
    %106 = vector.broadcast %37 : vector<1x64xf32> to vector<16x64xf32>
    %107 = arith.addf %105, %106 : vector<16x64xf32>
    %cst_59 = arith.constant dense<0.000000e+00> : vector<16x64xf32>
    %108 = tpu.matmul %104, %35, %cst_59 {dimension_numbers = #tpu.dot_dimension_numbers<[1], [0], [0], [1], [0, 0, 1, 1], [], []>} : vector<16x64xf32>, vector<64x64xf32>, vector<16x64xf32> -> vector<16x64xf32>
    %109 = vector.broadcast %38 : vector<1x64xf32> to vector<16x64xf32>
    %110 = arith.addf %108, %109 : vector<16x64xf32>
    %cst_60 = arith.constant dense<0.000000e+00> : vector<16x64xf32>
    %111 = tpu.matmul %104, %36, %cst_60 {dimension_numbers = #tpu.dot_dimension_numbers<[1], [0], [0], [1], [0, 0, 1, 1], [], []>} : vector<16x64xf32>, vector<64x64xf32>, vector<16x64xf32> -> vector<16x64xf32>
    %112 = vector.broadcast %39 : vector<1x64xf32> to vector<16x64xf32>
    %113 = arith.addf %111, %112 : vector<16x64xf32>
    %114 = vector.extract_strided_slice %23 {offsets = [32, 0], sizes = [16, 64], strides = [1, 1]} : vector<96x64xf32> to vector<16x64xf32>
    %115 = arith.addf %114, %107 : vector<16x64xf32>
    %116 = arith.negf %115 : vector<16x64xf32>
    %117 = math.exp %116 : vector<16x64xf32>
    %cst_61 = arith.constant 1.000000e+00 : f32
    %118 = vector.broadcast %cst_61 : f32 to vector<16x64xf32>
    %119 = arith.addf %118, %117 : vector<16x64xf32>
    %120 = arith.divf %118, %119 : vector<16x64xf32>
    %121 = vector.extract_strided_slice %28 {offsets = [32, 0], sizes = [16, 64], strides = [1, 1]} : vector<96x64xf32> to vector<16x64xf32>
    %122 = arith.addf %121, %110 : vector<16x64xf32>
    %123 = arith.negf %122 : vector<16x64xf32>
    %124 = math.exp %123 : vector<16x64xf32>
    %cst_62 = arith.constant 1.000000e+00 : f32
    %125 = vector.broadcast %cst_62 : f32 to vector<16x64xf32>
    %126 = arith.addf %125, %124 : vector<16x64xf32>
    %127 = arith.divf %125, %126 : vector<16x64xf32>
    %128 = vector.extract_strided_slice %33 {offsets = [32, 0], sizes = [16, 64], strides = [1, 1]} : vector<96x64xf32> to vector<16x64xf32>
    %129 = arith.mulf %120, %113 : vector<16x64xf32>
    %130 = arith.addf %128, %129 : vector<16x64xf32>
    %131 = math.tanh %130 : vector<16x64xf32>
    %cst_63 = arith.constant 1.000000e+00 : f32
    %132 = vector.broadcast %cst_63 : f32 to vector<16x64xf32>
    %133 = arith.subf %132, %127 : vector<16x64xf32>
    %134 = arith.mulf %133, %131 : vector<16x64xf32>
    %135 = arith.mulf %127, %104 : vector<16x64xf32>
    %136 = arith.addf %134, %135 : vector<16x64xf32>
    %cst_64 = arith.constant dense<0.000000e+00> : vector<16x64xf32>
    %137 = tpu.matmul %136, %34, %cst_64 {dimension_numbers = #tpu.dot_dimension_numbers<[1], [0], [0], [1], [0, 0, 1, 1], [], []>} : vector<16x64xf32>, vector<64x64xf32>, vector<16x64xf32> -> vector<16x64xf32>
    %138 = vector.broadcast %37 : vector<1x64xf32> to vector<16x64xf32>
    %139 = arith.addf %137, %138 : vector<16x64xf32>
    %cst_65 = arith.constant dense<0.000000e+00> : vector<16x64xf32>
    %140 = tpu.matmul %136, %35, %cst_65 {dimension_numbers = #tpu.dot_dimension_numbers<[1], [0], [0], [1], [0, 0, 1, 1], [], []>} : vector<16x64xf32>, vector<64x64xf32>, vector<16x64xf32> -> vector<16x64xf32>
    %141 = vector.broadcast %38 : vector<1x64xf32> to vector<16x64xf32>
    %142 = arith.addf %140, %141 : vector<16x64xf32>
    %cst_66 = arith.constant dense<0.000000e+00> : vector<16x64xf32>
    %143 = tpu.matmul %136, %36, %cst_66 {dimension_numbers = #tpu.dot_dimension_numbers<[1], [0], [0], [1], [0, 0, 1, 1], [], []>} : vector<16x64xf32>, vector<64x64xf32>, vector<16x64xf32> -> vector<16x64xf32>
    %144 = vector.broadcast %39 : vector<1x64xf32> to vector<16x64xf32>
    %145 = arith.addf %143, %144 : vector<16x64xf32>
    %146 = vector.extract_strided_slice %23 {offsets = [48, 0], sizes = [16, 64], strides = [1, 1]} : vector<96x64xf32> to vector<16x64xf32>
    %147 = arith.addf %146, %139 : vector<16x64xf32>
    %148 = arith.negf %147 : vector<16x64xf32>
    %149 = math.exp %148 : vector<16x64xf32>
    %cst_67 = arith.constant 1.000000e+00 : f32
    %150 = vector.broadcast %cst_67 : f32 to vector<16x64xf32>
    %151 = arith.addf %150, %149 : vector<16x64xf32>
    %152 = arith.divf %150, %151 : vector<16x64xf32>
    %153 = vector.extract_strided_slice %28 {offsets = [48, 0], sizes = [16, 64], strides = [1, 1]} : vector<96x64xf32> to vector<16x64xf32>
    %154 = arith.addf %153, %142 : vector<16x64xf32>
    %155 = arith.negf %154 : vector<16x64xf32>
    %156 = math.exp %155 : vector<16x64xf32>
    %cst_68 = arith.constant 1.000000e+00 : f32
    %157 = vector.broadcast %cst_68 : f32 to vector<16x64xf32>
    %158 = arith.addf %157, %156 : vector<16x64xf32>
    %159 = arith.divf %157, %158 : vector<16x64xf32>
    %160 = vector.extract_strided_slice %33 {offsets = [48, 0], sizes = [16, 64], strides = [1, 1]} : vector<96x64xf32> to vector<16x64xf32>
    %161 = arith.mulf %152, %145 : vector<16x64xf32>
    %162 = arith.addf %160, %161 : vector<16x64xf32>
    %163 = math.tanh %162 : vector<16x64xf32>
    %cst_69 = arith.constant 1.000000e+00 : f32
    %164 = vector.broadcast %cst_69 : f32 to vector<16x64xf32>
    %165 = arith.subf %164, %159 : vector<16x64xf32>
    %166 = arith.mulf %165, %163 : vector<16x64xf32>
    %167 = arith.mulf %159, %136 : vector<16x64xf32>
    %168 = arith.addf %166, %167 : vector<16x64xf32>
    %cst_70 = arith.constant dense<0.000000e+00> : vector<16x64xf32>
    %169 = tpu.matmul %168, %34, %cst_70 {dimension_numbers = #tpu.dot_dimension_numbers<[1], [0], [0], [1], [0, 0, 1, 1], [], []>} : vector<16x64xf32>, vector<64x64xf32>, vector<16x64xf32> -> vector<16x64xf32>
    %170 = vector.broadcast %37 : vector<1x64xf32> to vector<16x64xf32>
    %171 = arith.addf %169, %170 : vector<16x64xf32>
    %cst_71 = arith.constant dense<0.000000e+00> : vector<16x64xf32>
    %172 = tpu.matmul %168, %35, %cst_71 {dimension_numbers = #tpu.dot_dimension_numbers<[1], [0], [0], [1], [0, 0, 1, 1], [], []>} : vector<16x64xf32>, vector<64x64xf32>, vector<16x64xf32> -> vector<16x64xf32>
    %173 = vector.broadcast %38 : vector<1x64xf32> to vector<16x64xf32>
    %174 = arith.addf %172, %173 : vector<16x64xf32>
    %cst_72 = arith.constant dense<0.000000e+00> : vector<16x64xf32>
    %175 = tpu.matmul %168, %36, %cst_72 {dimension_numbers = #tpu.dot_dimension_numbers<[1], [0], [0], [1], [0, 0, 1, 1], [], []>} : vector<16x64xf32>, vector<64x64xf32>, vector<16x64xf32> -> vector<16x64xf32>
    %176 = vector.broadcast %39 : vector<1x64xf32> to vector<16x64xf32>
    %177 = arith.addf %175, %176 : vector<16x64xf32>
    %178 = vector.extract_strided_slice %23 {offsets = [64, 0], sizes = [16, 64], strides = [1, 1]} : vector<96x64xf32> to vector<16x64xf32>
    %179 = arith.addf %178, %171 : vector<16x64xf32>
    %180 = arith.negf %179 : vector<16x64xf32>
    %181 = math.exp %180 : vector<16x64xf32>
    %cst_73 = arith.constant 1.000000e+00 : f32
    %182 = vector.broadcast %cst_73 : f32 to vector<16x64xf32>
    %183 = arith.addf %182, %181 : vector<16x64xf32>
    %184 = arith.divf %182, %183 : vector<16x64xf32>
    %185 = vector.extract_strided_slice %28 {offsets = [64, 0], sizes = [16, 64], strides = [1, 1]} : vector<96x64xf32> to vector<16x64xf32>
    %186 = arith.addf %185, %174 : vector<16x64xf32>
    %187 = arith.negf %186 : vector<16x64xf32>
    %188 = math.exp %187 : vector<16x64xf32>
    %cst_74 = arith.constant 1.000000e+00 : f32
    %189 = vector.broadcast %cst_74 : f32 to vector<16x64xf32>
    %190 = arith.addf %189, %188 : vector<16x64xf32>
    %191 = arith.divf %189, %190 : vector<16x64xf32>
    %192 = vector.extract_strided_slice %33 {offsets = [64, 0], sizes = [16, 64], strides = [1, 1]} : vector<96x64xf32> to vector<16x64xf32>
    %193 = arith.mulf %184, %177 : vector<16x64xf32>
    %194 = arith.addf %192, %193 : vector<16x64xf32>
    %195 = math.tanh %194 : vector<16x64xf32>
    %cst_75 = arith.constant 1.000000e+00 : f32
    %196 = vector.broadcast %cst_75 : f32 to vector<16x64xf32>
    %197 = arith.subf %196, %191 : vector<16x64xf32>
    %198 = arith.mulf %197, %195 : vector<16x64xf32>
    %199 = arith.mulf %191, %168 : vector<16x64xf32>
    %200 = arith.addf %198, %199 : vector<16x64xf32>
    %cst_76 = arith.constant dense<0.000000e+00> : vector<16x64xf32>
    %201 = tpu.matmul %200, %34, %cst_76 {dimension_numbers = #tpu.dot_dimension_numbers<[1], [0], [0], [1], [0, 0, 1, 1], [], []>} : vector<16x64xf32>, vector<64x64xf32>, vector<16x64xf32> -> vector<16x64xf32>
    %202 = vector.broadcast %37 : vector<1x64xf32> to vector<16x64xf32>
    %203 = arith.addf %201, %202 : vector<16x64xf32>
    %cst_77 = arith.constant dense<0.000000e+00> : vector<16x64xf32>
    %204 = tpu.matmul %200, %35, %cst_77 {dimension_numbers = #tpu.dot_dimension_numbers<[1], [0], [0], [1], [0, 0, 1, 1], [], []>} : vector<16x64xf32>, vector<64x64xf32>, vector<16x64xf32> -> vector<16x64xf32>
    %205 = vector.broadcast %38 : vector<1x64xf32> to vector<16x64xf32>
    %206 = arith.addf %204, %205 : vector<16x64xf32>
    %cst_78 = arith.constant dense<0.000000e+00> : vector<16x64xf32>
    %207 = tpu.matmul %200, %36, %cst_78 {dimension_numbers = #tpu.dot_dimension_numbers<[1], [0], [0], [1], [0, 0, 1, 1], [], []>} : vector<16x64xf32>, vector<64x64xf32>, vector<16x64xf32> -> vector<16x64xf32>
    %208 = vector.broadcast %39 : vector<1x64xf32> to vector<16x64xf32>
    %209 = arith.addf %207, %208 : vector<16x64xf32>
    %210 = vector.extract_strided_slice %23 {offsets = [80, 0], sizes = [16, 64], strides = [1, 1]} : vector<96x64xf32> to vector<16x64xf32>
    %211 = arith.addf %210, %203 : vector<16x64xf32>
    %212 = arith.negf %211 : vector<16x64xf32>
    %213 = math.exp %212 : vector<16x64xf32>
    %cst_79 = arith.constant 1.000000e+00 : f32
    %214 = vector.broadcast %cst_79 : f32 to vector<16x64xf32>
    %215 = arith.addf %214, %213 : vector<16x64xf32>
    %216 = arith.divf %214, %215 : vector<16x64xf32>
    %217 = vector.extract_strided_slice %28 {offsets = [80, 0], sizes = [16, 64], strides = [1, 1]} : vector<96x64xf32> to vector<16x64xf32>
    %218 = arith.addf %217, %206 : vector<16x64xf32>
    %219 = arith.negf %218 : vector<16x64xf32>
    %220 = math.exp %219 : vector<16x64xf32>
    %cst_80 = arith.constant 1.000000e+00 : f32
    %221 = vector.broadcast %cst_80 : f32 to vector<16x64xf32>
    %222 = arith.addf %221, %220 : vector<16x64xf32>
    %223 = arith.divf %221, %222 : vector<16x64xf32>
    %224 = vector.extract_strided_slice %33 {offsets = [80, 0], sizes = [16, 64], strides = [1, 1]} : vector<96x64xf32> to vector<16x64xf32>
    %225 = arith.mulf %216, %209 : vector<16x64xf32>
    %226 = arith.addf %224, %225 : vector<16x64xf32>
    %227 = math.tanh %226 : vector<16x64xf32>
    %cst_81 = arith.constant 1.000000e+00 : f32
    %228 = vector.broadcast %cst_81 : f32 to vector<16x64xf32>
    %229 = arith.subf %228, %223 : vector<16x64xf32>
    %230 = arith.mulf %229, %227 : vector<16x64xf32>
    %231 = arith.mulf %223, %200 : vector<16x64xf32>
    %232 = arith.addf %230, %231 : vector<16x64xf32>
    %c0_82 = arith.constant 0 : index
    %c0_83 = arith.constant 0 : index
    %233 = vector.load %arg22[%c0_82, %c0_83] : memref<64x64xf32, #tpu.memory_space<vmem>>, vector<64x64xf32>
    %cst_84 = arith.constant dense<0.000000e+00> : vector<16x64xf32>
    %234 = tpu.matmul %17, %233, %cst_84 {dimension_numbers = #tpu.dot_dimension_numbers<[1], [0], [0], [1], [0, 0, 1, 1], [], []>} : vector<16x64xf32>, vector<64x64xf32>, vector<16x64xf32> -> vector<16x64xf32>
    %c0_85 = arith.constant 0 : index
    %c0_86 = arith.constant 0 : index
    %235 = vector.load %arg23[%c0_85, %c0_86] : memref<64x64xf32, #tpu.memory_space<vmem>>, vector<64x64xf32>
    %cst_87 = arith.constant dense<0.000000e+00> : vector<16x64xf32>
    %236 = tpu.matmul %17, %235, %cst_87 {dimension_numbers = #tpu.dot_dimension_numbers<[1], [0], [0], [1], [0, 0, 1, 1], [], []>} : vector<16x64xf32>, vector<64x64xf32>, vector<16x64xf32> -> vector<16x64xf32>
    %c0_88 = arith.constant 0 : index
    %c0_89 = arith.constant 0 : index
    %237 = vector.load %arg25[%c0_88, %c0_89] : memref<64x64xf32, #tpu.memory_space<vmem>>, vector<64x64xf32>
    %cst_90 = arith.constant dense<0.000000e+00> : vector<16x64xf32>
    %238 = tpu.matmul %232, %237, %cst_90 {dimension_numbers = #tpu.dot_dimension_numbers<[1], [0], [0], [1], [0, 0, 1, 1], [], []>} : vector<16x64xf32>, vector<64x64xf32>, vector<16x64xf32> -> vector<16x64xf32>
    %c0_91 = arith.constant 0 : index
    %c0_92 = arith.constant 0 : index
    %239 = vector.load %arg26[%c0_91, %c0_92] : memref<64x64xf32, #tpu.memory_space<vmem>>, vector<64x64xf32>
    %cst_93 = arith.constant dense<0.000000e+00> : vector<16x64xf32>
    %240 = tpu.matmul %232, %239, %cst_93 {dimension_numbers = #tpu.dot_dimension_numbers<[1], [0], [0], [1], [0, 0, 1, 1], [], []>} : vector<16x64xf32>, vector<64x64xf32>, vector<16x64xf32> -> vector<16x64xf32>
    %241 = tpu.iota {dimensions = array<i32: 1>} : vector<24x16xi32>
    %c0_94 = arith.constant 0 : index
    %c0_95 = arith.constant 0 : index
    %242 = vector.load %arg4[%c0_94, %c0_95] : memref<24x1xi32, #tpu.memory_space<vmem>>, vector<24x1xi32>
    %243 = vector.broadcast %242 : vector<24x1xi32> to vector<24x16xi32>
    %244 = arith.cmpi eq, %241, %243 : vector<24x16xi32>
    %245 = arith.extui %244 : vector<24x16xi1> to vector<24x16xi32>
    %246 = arith.sitofp %245 : vector<24x16xi32> to vector<24x16xf32>
    %c0_96 = arith.constant 0 : index
    %c0_97 = arith.constant 0 : index
    %247 = vector.load %arg5[%c0_96, %c0_97] : memref<24x1xi32, #tpu.memory_space<vmem>>, vector<24x1xi32>
    %248 = vector.broadcast %247 : vector<24x1xi32> to vector<24x16xi32>
    %249 = arith.cmpi eq, %241, %248 : vector<24x16xi32>
    %250 = arith.extui %249 : vector<24x16xi1> to vector<24x16xi32>
    %251 = arith.sitofp %250 : vector<24x16xi32> to vector<24x16xf32>
    %cst_98 = arith.constant dense<0.000000e+00> : vector<24x64xf32>
    %252 = tpu.matmul %246, %234, %cst_98 {dimension_numbers = #tpu.dot_dimension_numbers<[1], [0], [0], [1], [0, 0, 1, 1], [], []>} : vector<24x16xf32>, vector<16x64xf32>, vector<24x64xf32> -> vector<24x64xf32>
    %cst_99 = arith.constant dense<0.000000e+00> : vector<24x64xf32>
    %253 = tpu.matmul %251, %236, %cst_99 {dimension_numbers = #tpu.dot_dimension_numbers<[1], [0], [0], [1], [0, 0, 1, 1], [], []>} : vector<24x16xf32>, vector<16x64xf32>, vector<24x64xf32> -> vector<24x64xf32>
    %254 = arith.addf %252, %253 : vector<24x64xf32>
    %c0_100 = arith.constant 0 : index
    %c0_101 = arith.constant 0 : index
    %255 = vector.load %arg24[%c0_100, %c0_101] : memref<1x64xf32, #tpu.memory_space<vmem>>, vector<1x64xf32>
    %256 = vector.broadcast %255 : vector<1x64xf32> to vector<24x64xf32>
    %257 = arith.addf %254, %256 : vector<24x64xf32>
    %cst_102 = arith.constant 0.000000e+00 : f32
    %258 = vector.broadcast %cst_102 : f32 to vector<24x64xf32>
    %259 = arith.maximumf %257, %258 : vector<24x64xf32>
    %cst_103 = arith.constant dense<0.000000e+00> : vector<24x64xf32>
    %260 = tpu.matmul %246, %238, %cst_103 {dimension_numbers = #tpu.dot_dimension_numbers<[1], [0], [0], [1], [0, 0, 1, 1], [], []>} : vector<24x16xf32>, vector<16x64xf32>, vector<24x64xf32> -> vector<24x64xf32>
    %cst_104 = arith.constant dense<0.000000e+00> : vector<24x64xf32>
    %261 = tpu.matmul %251, %240, %cst_104 {dimension_numbers = #tpu.dot_dimension_numbers<[1], [0], [0], [1], [0, 0, 1, 1], [], []>} : vector<24x16xf32>, vector<16x64xf32>, vector<24x64xf32> -> vector<24x64xf32>
    %262 = arith.addf %260, %261 : vector<24x64xf32>
    %c0_105 = arith.constant 0 : index
    %c0_106 = arith.constant 0 : index
    %263 = vector.load %arg27[%c0_105, %c0_106] : memref<1x64xf32, #tpu.memory_space<vmem>>, vector<1x64xf32>
    %264 = vector.broadcast %263 : vector<1x64xf32> to vector<24x64xf32>
    %265 = arith.addf %262, %264 : vector<24x64xf32>
    %cst_107 = arith.constant 0.000000e+00 : f32
    %266 = vector.broadcast %cst_107 : f32 to vector<24x64xf32>
    %267 = arith.maximumf %265, %266 : vector<24x64xf32>
    %c0_108 = arith.constant 0 : index
    %c0_109 = arith.constant 0 : index
    %268 = vector.load %arg28[%c0_108, %c0_109] : memref<64x128xf32, #tpu.memory_space<vmem>>, vector<64x128xf32>
    %cst_110 = arith.constant dense<0.000000e+00> : vector<24x128xf32>
    %269 = tpu.matmul %259, %268, %cst_110 {dimension_numbers = #tpu.dot_dimension_numbers<[1], [0], [0], [1], [0, 0, 1, 1], [], []>} : vector<24x64xf32>, vector<64x128xf32>, vector<24x128xf32> -> vector<24x128xf32>
    %c0_111 = arith.constant 0 : index
    %c0_112 = arith.constant 0 : index
    %270 = vector.load %arg29[%c0_111, %c0_112] : memref<64x128xf32, #tpu.memory_space<vmem>>, vector<64x128xf32>
    %cst_113 = arith.constant dense<0.000000e+00> : vector<24x128xf32>
    %271 = tpu.matmul %267, %270, %cst_113 {dimension_numbers = #tpu.dot_dimension_numbers<[1], [0], [0], [1], [0, 0, 1, 1], [], []>} : vector<24x64xf32>, vector<64x128xf32>, vector<24x128xf32> -> vector<24x128xf32>
    %272 = arith.addf %269, %271 : vector<24x128xf32>
    %c0_114 = arith.constant 0 : index
    %c0_115 = arith.constant 0 : index
    %273 = vector.load %arg30[%c0_114, %c0_115] : memref<1x128xf32, #tpu.memory_space<vmem>>, vector<1x128xf32>
    %274 = vector.broadcast %273 : vector<1x128xf32> to vector<24x128xf32>
    %275 = arith.addf %272, %274 : vector<24x128xf32>
    %276 = tpu.iota {dimensions = array<i32: 1>} : vector<24x128xi32>
    %c4_i32 = arith.constant 4 : i32
    %277 = vector.broadcast %c4_i32 : i32 to vector<24x128xi32>
    %278 = arith.cmpi slt, %276, %277 : vector<24x128xi32>
    %cst_116 = arith.constant -1.000000e+30 : f32
    %279 = vector.broadcast %cst_116 : f32 to vector<24x128xf32>
    %280 = arith.select %278, %275, %279 : vector<24x128xi1>, vector<24x128xf32>
    %cst_117 = arith.constant dense<0xFF800000> : vector<24xf32>
    %281 = vector.multi_reduction <maximumf>, %280, %cst_117 [1] : vector<24x128xf32> to vector<24xf32>
    %282 = vector.shape_cast %281 : vector<24xf32> to vector<24x1xf32>
    %283 = vector.broadcast %282 : vector<24x1xf32> to vector<24x128xf32>
    %284 = arith.subf %280, %283 : vector<24x128xf32>
    %285 = math.exp %284 : vector<24x128xf32>
    %cst_118 = arith.constant dense<0.000000e+00> : vector<24xf32>
    %286 = vector.multi_reduction <add>, %285, %cst_118 [1] : vector<24x128xf32> to vector<24xf32>
    %287 = vector.shape_cast %286 : vector<24xf32> to vector<24x1xf32>
    %288 = math.log %287 : vector<24x1xf32>
    %289 = vector.broadcast %288 : vector<24x1xf32> to vector<24x128xf32>
    %290 = arith.subf %284, %289 : vector<24x128xf32>
    %c0_119 = arith.constant 0 : index
    %c0_120 = arith.constant 0 : index
    %291 = vector.load %arg31[%c0_119, %c0_120] : memref<24x128xf32, #tpu.memory_space<vmem>>, vector<24x128xf32>
    tpu.vector_store %arg31[%c0_119, %c0_120], %290 {strides = array<i32>} : memref<24x128xf32, #tpu.memory_space<vmem>>, vector<24x128xf32>,
    return
  }
  func.func @transform_0(%arg0: i32) -> (i32, i32) {
    %c0_i32 = arith.constant 0 : i32
    %c0_i32_0 = arith.constant 0 : i32
    %c0_i32_1 = arith.constant 0 : i32
    return %c0_i32, %c0_i32_0 : i32, i32
  }
  func.func @transform_1(%arg0: i32) -> (i32, i32) {
    %c0_i32 = arith.constant 0 : i32
    %c0_i32_0 = arith.constant 0 : i32
    %c0_i32_1 = arith.constant 0 : i32
    return %c0_i32, %c0_i32_0 : i32, i32
  }
  func.func @transform_2(%arg0: i32) -> (i32, i32) {
    %c0_i32 = arith.constant 0 : i32
    %c0_i32_0 = arith.constant 0 : i32
    %c0_i32_1 = arith.constant 0 : i32
    return %c0_i32, %c0_i32_0 : i32, i32
  }
  func.func @transform_3(%arg0: i32) -> (i32, i32) {
    %c0_i32 = arith.constant 0 : i32
    %c0_i32_0 = arith.constant 0 : i32
    %c0_i32_1 = arith.constant 0 : i32
    return %c0_i32, %c0_i32_0 : i32, i32
  }
  func.func @transform_4(%arg0: i32) -> (i32, i32) {
    %c0_i32 = arith.constant 0 : i32
    %c0_i32_0 = arith.constant 0 : i32
    %c0_i32_1 = arith.constant 0 : i32
    return %c0_i32, %c0_i32_0 : i32, i32
  }
  func.func @transform_5(%arg0: i32) -> (i32, i32) {
    %c0_i32 = arith.constant 0 : i32
    %c0_i32_0 = arith.constant 0 : i32
    %c0_i32_1 = arith.constant 0 : i32
    return %c0_i32, %c0_i32_0 : i32, i32
  }
  func.func @transform_6(%arg0: i32) -> (i32, i32) {
    %c0_i32 = arith.constant 0 : i32
    %c0_i32_0 = arith.constant 0 : i32
    %c0_i32_1 = arith.constant 0 : i32
    return %c0_i32, %c0_i32_0 : i32, i32
  }
  func.func @transform_7(%arg0: i32) -> (i32, i32) {
    %c0_i32 = arith.constant 0 : i32
    %c0_i32_0 = arith.constant 0 : i32
    %c0_i32_1 = arith.constant 0 : i32
    return %c0_i32, %c0_i32_0 : i32, i32
  }
  func.func @transform_8(%arg0: i32) -> (i32, i32) {
    %c0_i32 = arith.constant 0 : i32
    %c0_i32_0 = arith.constant 0 : i32
    %c0_i32_1 = arith.constant 0 : i32
    return %c0_i32, %c0_i32_0 : i32, i32
  }
  func.func @transform_9(%arg0: i32) -> (i32, i32) {
    %c0_i32 = arith.constant 0 : i32
    %c0_i32_0 = arith.constant 0 : i32
    %c0_i32_1 = arith.constant 0 : i32
    return %c0_i32, %c0_i32_0 : i32, i32
  }
  func.func @transform_10(%arg0: i32) -> (i32, i32) {
    %c0_i32 = arith.constant 0 : i32
    %c0_i32_0 = arith.constant 0 : i32
    %c0_i32_1 = arith.constant 0 : i32
    return %c0_i32, %c0_i32_0 : i32, i32
  }
  func.func @transform_11(%arg0: i32) -> (i32, i32) {
    %c0_i32 = arith.constant 0 : i32
    %c0_i32_0 = arith.constant 0 : i32
    %c0_i32_1 = arith.constant 0 : i32
    return %c0_i32, %c0_i32_0 : i32, i32
  }
  func.func @transform_12(%arg0: i32) -> (i32, i32) {
    %c0_i32 = arith.constant 0 : i32
    %c0_i32_0 = arith.constant 0 : i32
    %c0_i32_1 = arith.constant 0 : i32
    return %c0_i32, %c0_i32_0 : i32, i32
  }
  func.func @transform_13(%arg0: i32) -> (i32, i32) {
    %c0_i32 = arith.constant 0 : i32
    %c0_i32_0 = arith.constant 0 : i32
    %c0_i32_1 = arith.constant 0 : i32
    return %c0_i32, %c0_i32_0 : i32, i32
  }
  func.func @transform_14(%arg0: i32) -> (i32, i32) {
    %c0_i32 = arith.constant 0 : i32
    %c0_i32_0 = arith.constant 0 : i32
    %c0_i32_1 = arith.constant 0 : i32
    return %c0_i32, %c0_i32_0 : i32, i32
  }
  func.func @transform_15(%arg0: i32) -> (i32, i32) {
    %c0_i32 = arith.constant 0 : i32
    %c0_i32_0 = arith.constant 0 : i32
    %c0_i32_1 = arith.constant 0 : i32
    return %c0_i32, %c0_i32_0 : i32, i32
  }
  func.func @transform_16(%arg0: i32) -> (i32, i32) {
    %c0_i32 = arith.constant 0 : i32
    %c0_i32_0 = arith.constant 0 : i32
    %c0_i32_1 = arith.constant 0 : i32
    return %c0_i32, %c0_i32_0 : i32, i32
  }
  func.func @transform_17(%arg0: i32) -> (i32, i32) {
    %c0_i32 = arith.constant 0 : i32
    %c0_i32_0 = arith.constant 0 : i32
    %c0_i32_1 = arith.constant 0 : i32
    return %c0_i32, %c0_i32_0 : i32, i32
  }
  func.func @transform_18(%arg0: i32) -> (i32, i32) {
    %c0_i32 = arith.constant 0 : i32
    %c0_i32_0 = arith.constant 0 : i32
    %c0_i32_1 = arith.constant 0 : i32
    return %c0_i32, %c0_i32_0 : i32, i32
  }
  func.func @transform_19(%arg0: i32) -> (i32, i32) {
    %c0_i32 = arith.constant 0 : i32
    %c0_i32_0 = arith.constant 0 : i32
    %c0_i32_1 = arith.constant 0 : i32
    return %c0_i32, %c0_i32_0 : i32, i32
  }
  func.func @transform_20(%arg0: i32) -> (i32, i32) {
    %c0_i32 = arith.constant 0 : i32
    %c0_i32_0 = arith.constant 0 : i32
    %c0_i32_1 = arith.constant 0 : i32
    return %c0_i32, %c0_i32_0 : i32, i32
  }
  func.func @transform_21(%arg0: i32) -> (i32, i32) {
    %c0_i32 = arith.constant 0 : i32
    %c0_i32_0 = arith.constant 0 : i32
    %c0_i32_1 = arith.constant 0 : i32
    return %c0_i32, %c0_i32_0 : i32, i32
  }
  func.func @transform_22(%arg0: i32) -> (i32, i32) {
    %c0_i32 = arith.constant 0 : i32
    %c0_i32_0 = arith.constant 0 : i32
    %c0_i32_1 = arith.constant 0 : i32
    return %c0_i32, %c0_i32_0 : i32, i32
  }
  func.func @transform_23(%arg0: i32) -> (i32, i32) {
    %c0_i32 = arith.constant 0 : i32
    %c0_i32_0 = arith.constant 0 : i32
    %c0_i32_1 = arith.constant 0 : i32
    return %c0_i32, %c0_i32_0 : i32, i32
  }
  func.func @transform_24(%arg0: i32) -> (i32, i32) {
    %c0_i32 = arith.constant 0 : i32
    %c0_i32_0 = arith.constant 0 : i32
    %c0_i32_1 = arith.constant 0 : i32
    return %c0_i32, %c0_i32_0 : i32, i32
  }
  func.func @transform_25(%arg0: i32) -> (i32, i32) {
    %c0_i32 = arith.constant 0 : i32
    %c0_i32_0 = arith.constant 0 : i32
    %c0_i32_1 = arith.constant 0 : i32
    return %c0_i32, %c0_i32_0 : i32, i32
  }
  func.func @transform_26(%arg0: i32) -> (i32, i32) {
    %c0_i32 = arith.constant 0 : i32
    %c0_i32_0 = arith.constant 0 : i32
    %c0_i32_1 = arith.constant 0 : i32
    return %c0_i32, %c0_i32_0 : i32, i32
  }
  func.func @transform_27(%arg0: i32) -> (i32, i32) {
    %c0_i32 = arith.constant 0 : i32
    %c0_i32_0 = arith.constant 0 : i32
    %c0_i32_1 = arith.constant 0 : i32
    return %c0_i32, %c0_i32_0 : i32, i32
  }
  func.func @transform_28(%arg0: i32) -> (i32, i32) {
    %c0_i32 = arith.constant 0 : i32
    %c0_i32_0 = arith.constant 0 : i32
    %c0_i32_1 = arith.constant 0 : i32
    return %c0_i32, %c0_i32_0 : i32, i32
  }
  func.func @transform_29(%arg0: i32) -> (i32, i32) {
    %c0_i32 = arith.constant 0 : i32
    %c0_i32_0 = arith.constant 0 : i32
    %c0_i32_1 = arith.constant 0 : i32
    return %c0_i32, %c0_i32_0 : i32, i32
  }
  func.func @transform_30(%arg0: i32) -> (i32, i32) {
    %c0_i32 = arith.constant 0 : i32
    %c0_i32_0 = arith.constant 0 : i32
    %c0_i32_1 = arith.constant 0 : i32
    return %c0_i32, %c0_i32_0 : i32, i32
  }
}

</mosaic_0001>

<llo_original>
// kernel: tpu_custom_call.1
$region0: #{tpu_custom_call.1}
  #allocation0 [shape = 'u32[]', space=smem, size = 0x4, offset = 0x4, fixed_abs, tag = 'smem constant byte address 0x4 - core index']
  #allocation1 [shape = 'u32[144,128]{1,0:T(1,128)}', space=vmem, size = 0x12000, scoped, tag = 'internal scratch']
  %s0 = inlined_call_operand.smem [shape: u32[31], index: -1, kind: input, shape index: {}]
  %s1 = sld [smem:[%s0]]
  %s2 = scalar_lea.smem %s0, 1
  %s3 = sld [smem:[%s2]]
  %s4 = scalar_lea.smem %s0, 2
  %s5 = sld [smem:[%s4]]
  %s6 = scalar_lea.smem %s0, 3
  %s7 = sld [smem:[%s6]]
  %s8 = scalar_lea.smem %s0, 4
  %s9 = sld [smem:[%s8]]
  %s10 = scalar_lea.smem %s0, 5
  %s11 = sld [smem:[%s10]]
  %s12 = scalar_lea.smem %s0, 6
  %s13 = sld [smem:[%s12]]
  %s14 = scalar_lea.smem %s0, 7
  %s15 = sld [smem:[%s14]]
  %s16 = scalar_lea.smem %s0, 8
  %s17 = sld [smem:[%s16]]
  %s18 = scalar_lea.smem %s0, 9
  %s19 = sld [smem:[%s18]]
  %s20 = scalar_lea.smem %s0, 10
  %s21 = sld [smem:[%s20]]
  %s22 = scalar_lea.smem %s0, 11
  %s23 = sld [smem:[%s22]]
  %s24 = scalar_lea.smem %s0, 12
  %s25 = sld [smem:[%s24]]
  %s26 = scalar_lea.smem %s0, 13
  %s27 = sld [smem:[%s26]]
  %s28 = scalar_lea.smem %s0, 14
  %s29 = sld [smem:[%s28]]
  %s30 = scalar_lea.smem %s0, 15
  %s31 = sld [smem:[%s30]]
  %s32 = scalar_lea.smem %s0, 16
  %s33 = sld [smem:[%s32]]
  %s34 = scalar_lea.smem %s0, 17
  %s35 = sld [smem:[%s34]]
  %s36 = scalar_lea.smem %s0, 18
  %s37 = sld [smem:[%s36]]
  %s38 = scalar_lea.smem %s0, 19
  %s39 = sld [smem:[%s38]]
  %s40 = scalar_lea.smem %s0, 20
  %s41 = sld [smem:[%s40]]
  %s42 = scalar_lea.smem %s0, 21
  %s43 = sld [smem:[%s42]]
  %s44 = scalar_lea.smem %s0, 22
  %s45 = sld [smem:[%s44]]
  %s46 = scalar_lea.smem %s0, 23
  %s47 = sld [smem:[%s46]]
  %s48 = scalar_lea.smem %s0, 24
  %s49 = sld [smem:[%s48]]
  %s50 = scalar_lea.smem %s0, 25
  %s51 = sld [smem:[%s50]]
  %s52 = scalar_lea.smem %s0, 26
  %s53 = sld [smem:[%s52]]
  %s54 = scalar_lea.smem %s0, 27
  %s55 = sld [smem:[%s54]]
  %s56 = scalar_lea.smem %s0, 28
  %s57 = sld [smem:[%s56]]
  %s58 = scalar_lea.smem %s0, 29
  %s59 = sld [smem:[%s58]]
  %s60 = scalar_lea.smem %s0, 30
  %s61 = sld [smem:[%s60]]
  %s62 = sld [smem:[#allocation0]]
  $region202: #{tpu_custom_call.1} parent=0
    _
  %s64 = ssub.s32 1, %s62
  %s65 = scalar_select 0, %s64, %s62
  $region1: #{tpu_custom_call.1} parent=0
    #allocation2 [shape = 'u8[8192]{0}', space=vmem, size = 0x2000, scoped, tag = 'input window, operand 0, single buffered']
    #allocation3 [shape = 's32[1]{0}', space=sflag, size = 0x4, scoped, tag = 'scoped memory for tpu_custom_call.1']
    #allocation4 [shape = 's32[1]{0}', space=sflag, size = 0x4, scoped, tag = 'scoped memory for tpu_custom_call.1']
    #allocation5 [shape = 'u8[4096]{0}', space=vmem, size = 0x1000, scoped, tag = 'input window, operand 5, single buffered']
    #allocation6 [shape = 's32[1]{0}', space=sflag, size = 0x4, scoped, tag = 'scoped memory for tpu_custom_call.1']
    #allocation7 [shape = 'u8[512]{0}', space=vmem, size = 0x400, scoped, tag = 'input window, operand 6, single buffered']
    #allocation8 [shape = 'u8[512]{0}', space=vmem, size = 0x400, scoped, tag = 'input window, operand 8, single buffered']
    #allocation9 [shape = 's32[1]{0}', space=sflag, size = 0x4, scoped, tag = 'scoped memory for tpu_custom_call.1']
    #allocation10 [shape = 'u8[8192]{0}', space=vmem, size = 0x2000, scoped, tag = 'input window, operand 9, single buffered']
    #allocation11 [shape = 'u8[8192]{0}', space=vmem, size = 0x2000, scoped, tag = 'input window, operand 10, single buffered']
    #allocation12 [shape = 's32[1]{0}', space=sflag, size = 0x4, scoped, tag = 'scoped memory for tpu_custom_call.1']
    #allocation13 [shape = 'u8[8192]{0}', space=vmem, size = 0x2000, scoped, tag = 'input window, operand 11, single buffered']
    #allocation14 [shape = 'u8[32768]{0}', space=vmem, size = 0x8000, scoped, tag = 'input window, operand 14, single buffered']
    #allocation15 [shape = 's32[1]{0}', space=sflag, size = 0x4, scoped, tag = 'scoped memory for tpu_custom_call.1']
    #allocation16 [shape = 'u8[512]{0}', space=vmem, size = 0x400, scoped, tag = 'input window, operand 15, single buffered']
    #allocation17 [shape = 'u8[512]{0}', space=vmem, size = 0x400, scoped, tag = 'input window, operand 16, single buffered']
    #allocation18 [shape = 's32[1]{0}', space=sflag, size = 0x4, scoped, tag = 'scoped memory for tpu_custom_call.1']
    #allocation19 [shape = 'u8[512]{0}', space=vmem, size = 0x400, scoped, tag = 'input window, operand 17, single buffered']
    #allocation20 [shape = 'u8[512]{0}', space=vmem, size = 0x400, scoped, tag = 'input window, operand 18, single buffered']
    #allocation21 [shape = 's32[1]{0}', space=sflag, size = 0x4, scoped, tag = 'scoped memory for tpu_custom_call.1']
    #allocation22 [shape = 'u8[512]{0}', space=vmem, size = 0x400, scoped, tag = 'input window, operand 19, single buffered']
    #allocation23 [shape = 'u8[32768]{0}', space=vmem, size = 0x8000, scoped, tag = 'input window, operand 22, single buffered']
    #allocation24 [shape = 's32[1]{0}', space=sflag, size = 0x4, scoped, tag = 'scoped memory for tpu_custom_call.1']
    #allocation25 [shape = 'u8[32768]{0}', space=vmem, size = 0x8000, scoped, tag = 'input window, operand 24, single buffered']
    #allocation26 [shape = 'u8[32768]{0}', space=vmem, size = 0x8000, scoped, tag = 'input window, operand 25, single buffered']
    #allocation27 [shape = 's32[1]{0}', space=sflag, size = 0x4, scoped, tag = 'scoped memory for tpu_custom_call.1']
    #allocation28 [shape = 'u8[32768]{0}', space=vmem, size = 0x8000, scoped, tag = 'input window, operand 27, single buffered']
    #allocation29 [shape = 'u8[32768]{0}', space=vmem, size = 0x8000, scoped, tag = 'input window, operand 28, single buffered']
    #allocation30 [shape = 's32[1]{0}', space=sflag, size = 0x4, scoped, tag = 'scoped memory for tpu_custom_call.1']
    #allocation31 [shape = 'u8[12288]{0}', space=vmem, size = 0x3000, scoped, tag = 'output window, operand 0, single buffered']
    %66 = vsyncpa [#allocation3], 0
    %67 = vsyncpa [#allocation6], 0
    %68 = vsyncpa [#allocation9], 0
    %69 = vsyncpa [#allocation12], 0
    %70 = vsyncpa [#allocation15], 0
    %71 = vsyncpa [#allocation18], 0
    %72 = vsyncpa [#allocation21], 0
    %73 = vsyncpa [#allocation24], 0
    %74 = vsyncpa [#allocation27], 0
    %75 = vsyncpa [#allocation30], 0
    %76 = vsyncpa [#allocation4], 0
    // Predicated region
    $region2: #{tpu_custom_call.1} parent=1 // pred_check
      _
    $region3: #{tpu_custom_call.1} parent=1 // pred_check_branch
      %78 = sbr.rel (0) target = $region5
    $region4: #{tpu_custom_call.1} parent=1 // pred_region
      %s80 = ssub.s32 256, 256
      %81 = vsyncadd [#allocation3], %s80
      %s82 = sshll.u32 [#allocation2], 4
      %s83 = int_to_ptr.vmem [resolvable:$true] %s82
      %88 = dma.hbm_to_vmem [thread:$0]  %s1, 256, %s83, [#allocation3], 128, 128, 8
    $region5: #{tpu_custom_call.1} parent=1 // pred_fallthru
      _
    // Predicated region
    $region6: #{tpu_custom_call.1} parent=1 // pred_check
      _
    $region7: #{tpu_custom_call.1} parent=1 // pred_check_branch
      %90 = sbr.rel (0) target = $region9
    $region8: #{tpu_custom_call.1} parent=1 // pred_region
      _
    $region9: #{tpu_custom_call.1} parent=1 // pred_fallthru
      _
    // Predicated region
    $region10: #{tpu_custom_call.1} parent=1 // pred_check
      _
    $region11: #{tpu_custom_call.1} parent=1 // pred_check_branch
      %92 = sbr.rel (0) target = $region13
    $region12: #{tpu_custom_call.1} parent=1 // pred_region
      _
    $region13: #{tpu_custom_call.1} parent=1 // pred_fallthru
      _
    // Predicated region
    $region14: #{tpu_custom_call.1} parent=1 // pred_check
      _
    $region15: #{tpu_custom_call.1} parent=1 // pred_check_branch
      %94 = sbr.rel (0) target = $region17
    $region16: #{tpu_custom_call.1} parent=1 // pred_region
      _
    $region17: #{tpu_custom_call.1} parent=1 // pred_fallthru
      _
    // Predicated region
    $region18: #{tpu_custom_call.1} parent=1 // pred_check
      _
    $region19: #{tpu_custom_call.1} parent=1 // pred_check_branch
      %96 = sbr.rel (0) target = $region21
    $region20: #{tpu_custom_call.1} parent=1 // pred_region
      _
    $region21: #{tpu_custom_call.1} parent=1 // pred_fallthru
      _
    // Predicated region
    $region22: #{tpu_custom_call.1} parent=1 // pred_check
      _
    $region23: #{tpu_custom_call.1} parent=1 // pred_check_branch
      %98 = sbr.rel (0) target = $region25
    $region24: #{tpu_custom_call.1} parent=1 // pred_region
      %s100 = ssub.s32 128, 128
      %101 = vsyncadd [#allocation6], %s100
      %s103 = sshll.u32 [#allocation5], 4
      %s104 = int_to_ptr.vmem [resolvable:$true] %s103
      %106 = dma.hbm_to_vmem [thread:$0]  %s11, 128, %s104, [#allocation6]
    $region25: #{tpu_custom_call.1} parent=1 // pred_fallthru
      _
    // Predicated region
    $region26: #{tpu_custom_call.1} parent=1 // pred_check
      _
    $region27: #{tpu_custom_call.1} parent=1 // pred_check_branch
      %108 = sbr.rel (0) target = $region29
    $region28: #{tpu_custom_call.1} parent=1 // pred_region
      %s110 = ssub.s32 16, 16
      %111 = vsyncadd [#allocation6], %s110
      %s113 = sshll.u32 [#allocation7], 4
      %s114 = int_to_ptr.vmem [resolvable:$true] %s113
      %116 = dma.hbm_to_vmem [thread:$0]  %s13, 16, %s114, [#allocation6]
    $region29: #{tpu_custom_call.1} parent=1 // pred_fallthru
      _
    // Predicated region
    $region30: #{tpu_custom_call.1} parent=1 // pred_check
      _
    $region31: #{tpu_custom_call.1} parent=1 // pred_check_branch
      %118 = sbr.rel (0) target = $region33
    $region32: #{tpu_custom_call.1} parent=1 // pred_region
      _
    $region33: #{tpu_custom_call.1} parent=1 // pred_fallthru
      _
    // Predicated region
    $region34: #{tpu_custom_call.1} parent=1 // pred_check
      _
    $region35: #{tpu_custom_call.1} parent=1 // pred_check_branch
      %120 = sbr.rel (0) target = $region37
    $region36: #{tpu_custom_call.1} parent=1 // pred_region
      %s122 = ssub.s32 16, 16
      %123 = vsyncadd [#allocation9], %s122
      %s125 = sshll.u32 [#allocation8], 4
      %s126 = int_to_ptr.vmem [resolvable:$true] %s125
      %128 = dma.hbm_to_vmem [thread:$0]  %s17, 16, %s126, [#allocation9]
    $region37: #{tpu_custom_call.1} parent=1 // pred_fallthru
      _
    // Predicated region
    $region38: #{tpu_custom_call.1} parent=1 // pred_check
      _
    $region39: #{tpu_custom_call.1} parent=1 // pred_check_branch
      %130 = sbr.rel (0) target = $region41
    $region40: #{tpu_custom_call.1} parent=1 // pred_region
      %s132 = ssub.s32 256, 256
      %133 = vsyncadd [#allocation9], %s132
      %s134 = sshll.u32 [#allocation10], 4
      %s135 = int_to_ptr.vmem [resolvable:$true] %s134
      %140 = dma.hbm_to_vmem [thread:$0]  %s19, 256, %s135, [#allocation9], 128, 128, 8
    $region41: #{tpu_custom_call.1} parent=1 // pred_fallthru
      _
    // Predicated region
    $region42: #{tpu_custom_call.1} parent=1 // pred_check
      _
    $region43: #{tpu_custom_call.1} parent=1 // pred_check_branch
      %142 = sbr.rel (0) target = $region45
    $region44: #{tpu_custom_call.1} parent=1 // pred_region
      %s144 = ssub.s32 256, 256
      %145 = vsyncadd [#allocation12], %s144
      %s146 = sshll.u32 [#allocation11], 4
      %s147 = int_to_ptr.vmem [resolvable:$true] %s146
      %152 = dma.hbm_to_vmem [thread:$0]  %s21, 256, %s147, [#allocation12], 128, 128, 8
    $region45: #{tpu_custom_call.1} parent=1 // pred_fallthru
      _
    // Predicated region
    $region46: #{tpu_custom_call.1} parent=1 // pred_check
      _
    $region47: #{tpu_custom_call.1} parent=1 // pred_check_branch
      %154 = sbr.rel (0) target = $region49
    $region48: #{tpu_custom_call.1} parent=1 // pred_region
      %s156 = ssub.s32 256, 256
      %157 = vsyncadd [#allocation12], %s156
      %s158 = sshll.u32 [#allocation13], 4
      %s159 = int_to_ptr.vmem [resolvable:$true] %s158
      %164 = dma.hbm_to_vmem [thread:$0]  %s23, 256, %s159, [#allocation12], 128, 128, 8
    $region49: #{tpu_custom_call.1} parent=1 // pred_fallthru
      _
    // Predicated region
    $region50: #{tpu_custom_call.1} parent=1 // pred_check
      _
    $region51: #{tpu_custom_call.1} parent=1 // pred_check_branch
      %166 = sbr.rel (0) target = $region53
    $region52: #{tpu_custom_call.1} parent=1 // pred_region
      _
    $region53: #{tpu_custom_call.1} parent=1 // pred_fallthru
      _
    // Predicated region
    $region54: #{tpu_custom_call.1} parent=1 // pred_check
      _
    $region55: #{tpu_custom_call.1} parent=1 // pred_check_branch
      %168 = sbr.rel (0) target = $region57
    $region56: #{tpu_custom_call.1} parent=1 // pred_region
      _
    $region57: #{tpu_custom_call.1} parent=1 // pred_fallthru
      _
    // Predicated region
    $region58: #{tpu_custom_call.1} parent=1 // pred_check
      _
    $region59: #{tpu_custom_call.1} parent=1 // pred_check_branch
      %170 = sbr.rel (0) target = $region61
    $region60: #{tpu_custom_call.1} parent=1 // pred_region
      %s172 = ssub.s32 1024, 1024
      %173 = vsyncadd [#allocation15], %s172
      %s174 = sshll.u32 [#allocation14], 4
      %s175 = int_to_ptr.vmem [resolvable:$true] %s174
      %180 = dma.hbm_to_vmem [thread:$0]  %s29, 1024, %s175, [#allocation15], 128, 128, 8
    $region61: #{tpu_custom_call.1} parent=1 // pred_fallthru
      _
    // Predicated region
    $region62: #{tpu_custom_call.1} parent=1 // pred_check
      _
    $region63: #{tpu_custom_call.1} parent=1 // pred_check_branch
      %182 = sbr.rel (0) target = $region65
    $region64: #{tpu_custom_call.1} parent=1 // pred_region
      %s184 = ssub.s32 16, 16
      %185 = vsyncadd [#allocation15], %s184
      %s187 = sshll.u32 [#allocation16], 4
      %s188 = int_to_ptr.vmem [resolvable:$true] %s187
      %190 = dma.hbm_to_vmem [thread:$0]  %s31, 16, %s188, [#allocation15]
    $region65: #{tpu_custom_call.1} parent=1 // pred_fallthru
      _
    // Predicated region
    $region66: #{tpu_custom_call.1} parent=1 // pred_check
      _
    $region67: #{tpu_custom_call.1} parent=1 // pred_check_branch
      %192 = sbr.rel (0) target = $region69
    $region68: #{tpu_custom_call.1} parent=1 // pred_region
      %s194 = ssub.s32 16, 16
      %195 = vsyncadd [#allocation18], %s194
      %s197 = sshll.u32 [#allocation17], 4
      %s198 = int_to_ptr.vmem [resolvable:$true] %s197
      %200 = dma.hbm_to_vmem [thread:$0]  %s33, 16, %s198, [#allocation18]
    $region69: #{tpu_custom_call.1} parent=1 // pred_fallthru
      _
    // Predicated region
    $region70: #{tpu_custom_call.1} parent=1 // pred_check
      _
    $region71: #{tpu_custom_call.1} parent=1 // pred_check_branch
      %202 = sbr.rel (0) target = $region73
    $region72: #{tpu_custom_call.1} parent=1 // pred_region
      %s204 = ssub.s32 16, 16
      %205 = vsyncadd [#allocation18], %s204
      %s207 = sshll.u32 [#allocation19], 4
      %s208 = int_to_ptr.vmem [resolvable:$true] %s207
      %210 = dma.hbm_to_vmem [thread:$0]  %s35, 16, %s208, [#allocation18]
    $region73: #{tpu_custom_call.1} parent=1 // pred_fallthru
      _
    // Predicated region
    $region74: #{tpu_custom_call.1} parent=1 // pred_check
      _
    $region75: #{tpu_custom_call.1} parent=1 // pred_check_branch
      %212 = sbr.rel (0) target = $region77
    $region76: #{tpu_custom_call.1} parent=1 // pred_region
      %s214 = ssub.s32 16, 16
      %215 = vsyncadd [#allocation21], %s214
      %s217 = sshll.u32 [#allocation20], 4
      %s218 = int_to_ptr.vmem [resolvable:$true] %s217
      %220 = dma.hbm_to_vmem [thread:$0]  %s37, 16, %s218, [#allocation21]
    $region77: #{tpu_custom_call.1} parent=1 // pred_fallthru
      _
    // Predicated region
    $region78: #{tpu_custom_call.1} parent=1 // pred_check
      _
    $region79: #{tpu_custom_call.1} parent=1 // pred_check_branch
      %222 = sbr.rel (0) target = $region81
    $region80: #{tpu_custom_call.1} parent=1 // pred_region
      %s224 = ssub.s32 16, 16
      %225 = vsyncadd [#allocation21], %s224
      %s227 = sshll.u32 [#allocation22], 4
      %s228 = int_to_ptr.vmem [resolvable:$true] %s227
      %230 = dma.hbm_to_vmem [thread:$0]  %s39, 16, %s228, [#allocation21]
    $region81: #{tpu_custom_call.1} parent=1 // pred_fallthru
      _
    // Predicated region
    $region82: #{tpu_custom_call.1} parent=1 // pred_check
      _
    $region83: #{tpu_custom_call.1} parent=1 // pred_check_branch
      %232 = sbr.rel (0) target = $region85
    $region84: #{tpu_custom_call.1} parent=1 // pred_region
      _
    $region85: #{tpu_custom_call.1} parent=1 // pred_fallthru
      _
    // Predicated region
    $region86: #{tpu_custom_call.1} parent=1 // pred_check
      _
    $region87: #{tpu_custom_call.1} parent=1 // pred_check_branch
      %234 = sbr.rel (0) target = $region89
    $region88: #{tpu_custom_call.1} parent=1 // pred_region
      _
    $region89: #{tpu_custom_call.1} parent=1 // pred_fallthru
      _
    // Predicated region
    $region90: #{tpu_custom_call.1} parent=1 // pred_check
      _
    $region91: #{tpu_custom_call.1} parent=1 // pred_check_branch
      %236 = sbr.rel (0) target = $region93
    $region92: #{tpu_custom_call.1} parent=1 // pred_region
      %s238 = ssub.s32 1024, 1024
      %239 = vsyncadd [#allocation24], %s238
      %s240 = sshll.u32 [#allocation23], 4
      %s241 = int_to_ptr.vmem [resolvable:$true] %s240
      %246 = dma.hbm_to_vmem [thread:$0]  %s45, 1024, %s241, [#allocation24], 128, 128, 8
    $region93: #{tpu_custom_call.1} parent=1 // pred_fallthru
      _
    // Predicated region
    $region94: #{tpu_custom_call.1} parent=1 // pred_check
      _
    $region95: #{tpu_custom_call.1} parent=1 // pred_check_branch
      %248 = sbr.rel (0) target = $region97
    $region96: #{tpu_custom_call.1} parent=1 // pred_region
      _
    $region97: #{tpu_custom_call.1} parent=1 // pred_fallthru
      _
    // Predicated region
    $region98: #{tpu_custom_call.1} parent=1 // pred_check
      _
    $region99: #{tpu_custom_call.1} parent=1 // pred_check_branch
      %250 = sbr.rel (0) target = $region101
    $region100: #{tpu_custom_call.1} parent=1 // pred_region
      %s252 = ssub.s32 1024, 1024
      %253 = vsyncadd [#allocation24], %s252
      %s254 = sshll.u32 [#allocation25], 4
      %s255 = int_to_ptr.vmem [resolvable:$true] %s254
      %260 = dma.hbm_to_vmem [thread:$0]  %s49, 1024, %s255, [#allocation24], 128, 128, 8
    $region101: #{tpu_custom_call.1} parent=1 // pred_fallthru
      _
    // Predicated region
    $region102: #{tpu_custom_call.1} parent=1 // pred_check
      _
    $region103: #{tpu_custom_call.1} parent=1 // pred_check_branch
      %262 = sbr.rel (0) target = $region105
    $region104: #{tpu_custom_call.1} parent=1 // pred_region
      %s264 = ssub.s32 1024, 1024
      %265 = vsyncadd [#allocation27], %s264
      %s266 = sshll.u32 [#allocation26], 4
      %s267 = int_to_ptr.vmem [resolvable:$true] %s266
      %272 = dma.hbm_to_vmem [thread:$0]  %s51, 1024, %s267, [#allocation27], 128, 128, 8
    $region105: #{tpu_custom_call.1} parent=1 // pred_fallthru
      _
    // Predicated region
    $region106: #{tpu_custom_call.1} parent=1 // pred_check
      _
    $region107: #{tpu_custom_call.1} parent=1 // pred_check_branch
      %274 = sbr.rel (0) target = $region109
    $region108: #{tpu_custom_call.1} parent=1 // pred_region
      _
    $region109: #{tpu_custom_call.1} parent=1 // pred_fallthru
      _
    // Predicated region
    $region110: #{tpu_custom_call.1} parent=1 // pred_check
      _
    $region111: #{tpu_custom_call.1} parent=1 // pred_check_branch
      %276 = sbr.rel (0) target = $region113
    $region112: #{tpu_custom_call.1} parent=1 // pred_region
      %s278 = ssub.s32 1024, 1024
      %279 = vsyncadd [#allocation27], %s278
      %s280 = sshll.u32 [#allocation28], 4
      %s281 = int_to_ptr.vmem [resolvable:$true] %s280
      %286 = dma.hbm_to_vmem [thread:$0]  %s55, 1024, %s281, [#allocation27], 128, 128, 8
    $region113: #{tpu_custom_call.1} parent=1 // pred_fallthru
      _
    // Predicated region
    $region114: #{tpu_custom_call.1} parent=1 // pred_check
      _
    $region115: #{tpu_custom_call.1} parent=1 // pred_check_branch
      %288 = sbr.rel (0) target = $region117
    $region116: #{tpu_custom_call.1} parent=1 // pred_region
      %s290 = ssub.s32 1024, 1024
      %291 = vsyncadd [#allocation30], %s290
      %s292 = sshll.u32 [#allocation29], 4
      %s293 = int_to_ptr.vmem [resolvable:$true] %s292
      %298 = dma.hbm_to_vmem [thread:$0]  %s57, 1024, %s293, [#allocation30], 128, 128, 8
    $region117: #{tpu_custom_call.1} parent=1 // pred_fallthru
      _
    // Predicated region
    $region118: #{tpu_custom_call.1} parent=1 // pred_check
      _
    $region119: #{tpu_custom_call.1} parent=1 // pred_check_branch
      %300 = sbr.rel (0) target = $region121
    $region120: #{tpu_custom_call.1} parent=1 // pred_region
      _
    $region121: #{tpu_custom_call.1} parent=1 // pred_fallthru
      _
    // Predicated region
    $region122: #{tpu_custom_call.1} parent=1 // pred_check
      _
    $region123: #{tpu_custom_call.1} parent=1 // pred_check_branch
      %302 = sbr.rel (0) target = $region125
    $region124: #{tpu_custom_call.1} parent=1 // pred_region
      %303 = dma.done [#allocation3], 256
    $region125: #{tpu_custom_call.1} parent=1 // pred_fallthru
      _
    // Predicated region
    $region126: #{tpu_custom_call.1} parent=1 // pred_check
      _
    $region127: #{tpu_custom_call.1} parent=1 // pred_check_branch
      %305 = sbr.rel (0) target = $region129
    $region128: #{tpu_custom_call.1} parent=1 // pred_region
      %306 = dma.done [#allocation6], 128
    $region129: #{tpu_custom_call.1} parent=1 // pred_fallthru
      _
    // Predicated region
    $region130: #{tpu_custom_call.1} parent=1 // pred_check
      _
    $region131: #{tpu_custom_call.1} parent=1 // pred_check_branch
      %308 = sbr.rel (0) target = $region133
    $region132: #{tpu_custom_call.1} parent=1 // pred_region
      %309 = dma.done [#allocation6], 16
    $region133: #{tpu_custom_call.1} parent=1 // pred_fallthru
      _
    // Predicated region
    $region134: #{tpu_custom_call.1} parent=1 // pred_check
      _
    $region135: #{tpu_custom_call.1} parent=1 // pred_check_branch
      %311 = sbr.rel (0) target = $region137
    $region136: #{tpu_custom_call.1} parent=1 // pred_region
      %312 = dma.done [#allocation9], 16
    $region137: #{tpu_custom_call.1} parent=1 // pred_fallthru
      _
    // Predicated region
    $region138: #{tpu_custom_call.1} parent=1 // pred_check
      _
    $region139: #{tpu_custom_call.1} parent=1 // pred_check_branch
      %314 = sbr.rel (0) target = $region141
    $region140: #{tpu_custom_call.1} parent=1 // pred_region
      %315 = dma.done [#allocation9], 256
    $region141: #{tpu_custom_call.1} parent=1 // pred_fallthru
      _
    // Predicated region
    $region142: #{tpu_custom_call.1} parent=1 // pred_check
      _
    $region143: #{tpu_custom_call.1} parent=1 // pred_check_branch
      %317 = sbr.rel (0) target = $region145
    $region144: #{tpu_custom_call.1} parent=1 // pred_region
      %318 = dma.done [#allocation12], 256
    $region145: #{tpu_custom_call.1} parent=1 // pred_fallthru
      _
    // Predicated region
    $region146: #{tpu_custom_call.1} parent=1 // pred_check
      _
    $region147: #{tpu_custom_call.1} parent=1 // pred_check_branch
      %320 = sbr.rel (0) target = $region149
    $region148: #{tpu_custom_call.1} parent=1 // pred_region
      %321 = dma.done [#allocation12], 256
    $region149: #{tpu_custom_call.1} parent=1 // pred_fallthru
      _
    // Predicated region
    $region150: #{tpu_custom_call.1} parent=1 // pred_check
      _
    $region151: #{tpu_custom_call.1} parent=1 // pred_check_branch
      %323 = sbr.rel (0) target = $region153
    $region152: #{tpu_custom_call.1} parent=1 // pred_region
      %324 = dma.done [#allocation15], 1024
    $region153: #{tpu_custom_call.1} parent=1 // pred_fallthru
      _
    // Predicated region
    $region154: #{tpu_custom_call.1} parent=1 // pred_check
      _
    $region155: #{tpu_custom_call.1} parent=1 // pred_check_branch
      %326 = sbr.rel (0) target = $region157
    $region156: #{tpu_custom_call.1} parent=1 // pred_region
      %327 = dma.done [#allocation15], 16
    $region157: #{tpu_custom_call.1} parent=1 // pred_fallthru
      _
    // Predicated region
    $region158: #{tpu_custom_call.1} parent=1 // pred_check
      _
    $region159: #{tpu_custom_call.1} parent=1 // pred_check_branch
      %329 = sbr.rel (0) target = $region161
    $region160: #{tpu_custom_call.1} parent=1 // pred_region
      %330 = dma.done [#allocation18], 16
    $region161: #{tpu_custom_call.1} parent=1 // pred_fallthru
      _
    // Predicated region
    $region162: #{tpu_custom_call.1} parent=1 // pred_check
      _
    $region163: #{tpu_custom_call.1} parent=1 // pred_check_branch
      %332 = sbr.rel (0) target = $region165
    $region164: #{tpu_custom_call.1} parent=1 // pred_region
      %333 = dma.done [#allocation18], 16
    $region165: #{tpu_custom_call.1} parent=1 // pred_fallthru
      _
    // Predicated region
    $region166: #{tpu_custom_call.1} parent=1 // pred_check
      _
    $region167: #{tpu_custom_call.1} parent=1 // pred_check_branch
      %335 = sbr.rel (0) target = $region169
    $region168: #{tpu_custom_call.1} parent=1 // pred_region
      %336 = dma.done [#allocation21], 16
    $region169: #{tpu_custom_call.1} parent=1 // pred_fallthru
      _
    // Predicated region
    $region170: #{tpu_custom_call.1} parent=1 // pred_check
      _
    $region171: #{tpu_custom_call.1} parent=1 // pred_check_branch
      %338 = sbr.rel (0) target = $region173
    $region172: #{tpu_custom_call.1} parent=1 // pred_region
      %339 = dma.done [#allocation21], 16
    $region173: #{tpu_custom_call.1} parent=1 // pred_fallthru
      _
    // Predicated region
    $region174: #{tpu_custom_call.1} parent=1 // pred_check
      _
    $region175: #{tpu_custom_call.1} parent=1 // pred_check_branch
      %341 = sbr.rel (0) target = $region177
    $region176: #{tpu_custom_call.1} parent=1 // pred_region
      %342 = dma.done [#allocation24], 1024
    $region177: #{tpu_custom_call.1} parent=1 // pred_fallthru
      _
    // Predicated region
    $region178: #{tpu_custom_call.1} parent=1 // pred_check
      _
    $region179: #{tpu_custom_call.1} parent=1 // pred_check_branch
      %344 = sbr.rel (0) target = $region181
    $region180: #{tpu_custom_call.1} parent=1 // pred_region
      %345 = dma.done [#allocation24], 1024
    $region181: #{tpu_custom_call.1} parent=1 // pred_fallthru
      _
    // Predicated region
    $region182: #{tpu_custom_call.1} parent=1 // pred_check
      _
    $region183: #{tpu_custom_call.1} parent=1 // pred_check_branch
      %347 = sbr.rel (0) target = $region185
    $region184: #{tpu_custom_call.1} parent=1 // pred_region
      %348 = dma.done [#allocation27], 1024
    $region185: #{tpu_custom_call.1} parent=1 // pred_fallthru
      _
    // Predicated region
    $region186: #{tpu_custom_call.1} parent=1 // pred_check
      _
    $region187: #{tpu_custom_call.1} parent=1 // pred_check_branch
      %350 = sbr.rel (0) target = $region189
    $region188: #{tpu_custom_call.1} parent=1 // pred_region
      %351 = dma.done [#allocation27], 1024
    $region189: #{tpu_custom_call.1} parent=1 // pred_fallthru
      _
    // Predicated region
    $region190: #{tpu_custom_call.1} parent=1 // pred_check
      _
    $region191: #{tpu_custom_call.1} parent=1 // pred_check_branch
      %353 = sbr.rel (0) target = $region193
    $region192: #{tpu_custom_call.1} parent=1 // pred_region
      %354 = dma.done [#allocation30], 1024
    $region193: #{tpu_custom_call.1} parent=1 // pred_fallthru
      _
    %v355 = vld [vmem:[#allocation2] sm:$0xff]
    %v356 = vld [vmem:[#allocation2 + $0x8] sm:$0xff]
    %v357 = vld [vmem:[%s3] sm:$0xff]
    %v358 = vld [vmem:[%s3 + $0x8] sm:$0xff]
    %v359 = vld [vmem:[#allocation5] sm:$0xff]
    %vm360 = vcmask 64512
    %v362 = vsel %vm360, %v357, 0
    %v365 = vsel %vm360, %v358, 0
    %367 = vmatprep.subr.mxu0 0.0
    %368 = vmatpush1.msra.mxu0 %v359
    %369 = vmatprep.subr.mxu0 0.0
    %370 = vmatpush1.msra.mxu0 0.0
    %371 = vmatprep.subr.mxu0 0.0
    %372 = vmatpush1.msra.mxu0 0.0
    %373 = vmatprep.subr.mxu0 0.0
    %374 = vmatpush1.msra.mxu0 0.0
    %375 = vmatprep.subr.mxu0 0.0
    %376 = vmatpush1.msra.mxu0 0.0
    %377 = vmatprep.subr.mxu0 0.0
    %378 = vmatpush1.msra.mxu0 0.0
    %379 = vmatprep.subr.mxu0 0.0
    %380 = vmatpush1.msra.mxu0 0.0
    %381 = vmatprep.subr.mxu0 0.0
    %382 = vmatpush1.msra.mxu0 0.0
    %383 = vmatprep.subr.mxu0 0.0
    %384 = vmatpush1.msra.mxu0 0.0
    %385 = vmatprep.subr.mxu0 0.0
    %386 = vmatpush1.msra.mxu0 0.0
    %387 = vmatprep.subr.mxu0 0.0
    %388 = vmatpush1.msra.mxu0 0.0
    %389 = vmatprep.subr.mxu0 0.0
    %390 = vmatpush1.msra.mxu0 0.0
    %391 = vmatprep.subr.mxu0 0.0
    %392 = vmatpush1.msra.mxu0 0.0
    %393 = vmatprep.subr.mxu0 0.0
    %394 = vmatpush1.msra.mxu0 0.0
    %395 = vmatprep.subr.mxu0 0.0
    %396 = vmatpush1.msra.mxu0 0.0
    %397 = vmatprep.subr.mxu0 0.0
    %398 = vmatpush1.msra.mxu0 0.0
    %399 = vmatprep.subr.mxu0 0.0
    %400 = vmatpush1.msra.mxu0 0.0
    %401 = vmatprep.subr.mxu0 0.0
    %402 = vmatpush1.msra.mxu0 0.0
    %403 = vmatprep.subr.mxu0 0.0
    %404 = vmatpush1.msra.mxu0 0.0
    %405 = vmatprep.subr.mxu0 0.0
    %406 = vmatpush1.msra.mxu0 0.0
    %407 = vmatprep.subr.mxu0 0.0
    %408 = vmatpush1.msra.mxu0 0.0
    %409 = vmatprep.subr.mxu0 0.0
    %410 = vmatpush1.msra.mxu0 0.0
    %411 = vmatprep.subr.mxu0 0.0
    %412 = vmatpush1.msra.mxu0 0.0
    %413 = vmatprep.subr.mxu0 0.0
    %414 = vmatpush1.msra.mxu0 0.0
    %415 = vmatprep.subr.mxu0 0.0
    %416 = vmatpush1.msra.mxu0 0.0
    %417 = vmatprep.subr.mxu0 0.0
    %418 = vmatpush1.msra.mxu0 0.0
    %419 = vmatprep.subr.mxu0 0.0
    %420 = vmatpush1.msra.mxu0 0.0
    %421 = vmatprep.subr.mxu0 0.0
    %422 = vmatpush1.msra.mxu0 0.0
    %423 = vmatprep.subr.mxu0 0.0
    %424 = vmatpush1.msra.mxu0 0.0
    %425 = vmatprep.subr.mxu0 0.0
    %426 = vmatpush1.msra.mxu0 0.0
    %427 = vmatprep.subr.mxu0 0.0
    %428 = vmatpush1.msra.mxu0 0.0
    %429 = vmatprep.subr.mxu0 0.0
    %430 = vmatpush1.msra.mxu0 0.0
    %431 = vmatprep.mubr.f32.mxu0 0.0
    %432 = vmatmul.mubr.f32.gmra.mrb[0].mxu0 %v362
    %v433 = vpop.f32.mrb[0].mxu0
    %v434 = vadd.f32 0.0, %v433
    %v435 = vpop.f32.mrb[0].mxu0
    %436 = vmatprep.mubr.f32.mxu0 0.0
    %437 = vmatmul.mubr.f32.gmra.mrb[0].mxu0 %v365
    %v438 = vpop.f32.mrb[0].mxu0
    %v439 = vadd.f32 0.0, %v438
    %v440 = vpop.f32.mrb[0].mxu0
    %441 = vdwg.mxu0
    %v442 = vld [vmem:[#allocation7] sm:$0x1]
    %v444 = vlaneseq
    %v445 = vshrl.u32 %v444, 7
    %v446 = vsub.s32 0, %v445
    %v447 = vrot.slane %v442, %v446
    %vm449 = vcmask 130048
    %v451 = vsel %vm449, %v355, 0
    %v454 = vsel %vm449, %v356, 0
    %456 = vmatprep.subr.mxu0 0.0
    %457 = vmatpush1.msra.mxu0 %v434
    %458 = vmatprep.subr.mxu0 0.0
    %459 = vmatpush1.msra.mxu0 %v439
    %460 = vmatprep.subr.mxu0 0.0
    %461 = vmatpush1.msra.mxu0 0.0
    %462 = vmatprep.subr.mxu0 0.0
    %463 = vmatpush1.msra.mxu0 0.0
    %464 = vmatprep.subr.mxu0 0.0
    %465 = vmatpush1.msra.mxu0 0.0
    %466 = vmatprep.subr.mxu0 0.0
    %467 = vmatpush1.msra.mxu0 0.0
    %468 = vmatprep.subr.mxu0 0.0
    %469 = vmatpush1.msra.mxu0 0.0
    %470 = vmatprep.subr.mxu0 0.0
    %471 = vmatpush1.msra.mxu0 0.0
    %472 = vmatprep.subr.mxu0 0.0
    %473 = vmatpush1.msra.mxu0 0.0
    %474 = vmatprep.subr.mxu0 0.0
    %475 = vmatpush1.msra.mxu0 0.0
    %476 = vmatprep.subr.mxu0 0.0
    %477 = vmatpush1.msra.mxu0 0.0
    %478 = vmatprep.subr.mxu0 0.0
    %479 = vmatpush1.msra.mxu0 0.0
    %480 = vmatprep.subr.mxu0 0.0
    %481 = vmatpush1.msra.mxu0 0.0
    %482 = vmatprep.subr.mxu0 0.0
    %483 = vmatpush1.msra.mxu0 0.0
    %484 = vmatprep.subr.mxu0 0.0
    %485 = vmatpush1.msra.mxu0 0.0
    %486 = vmatprep.subr.mxu0 0.0
    %487 = vmatpush1.msra.mxu0 0.0
    %488 = vmatprep.subr.mxu0 0.0
    %489 = vmatpush1.msra.mxu0 0.0
    %490 = vmatprep.subr.mxu0 0.0
    %491 = vmatpush1.msra.mxu0 0.0
    %492 = vmatprep.subr.mxu0 0.0
    %493 = vmatpush1.msra.mxu0 0.0
    %494 = vmatprep.subr.mxu0 0.0
    %495 = vmatpush1.msra.mxu0 0.0
    %496 = vmatprep.subr.mxu0 0.0
    %497 = vmatpush1.msra.mxu0 0.0
    %498 = vmatprep.subr.mxu0 0.0
    %499 = vmatpush1.msra.mxu0 0.0
    %500 = vmatprep.subr.mxu0 0.0
    %501 = vmatpush1.msra.mxu0 0.0
    %502 = vmatprep.subr.mxu0 0.0
    %503 = vmatpush1.msra.mxu0 0.0
    %504 = vmatprep.subr.mxu0 0.0
    %505 = vmatpush1.msra.mxu0 0.0
    %506 = vmatprep.subr.mxu0 0.0
    %507 = vmatpush1.msra.mxu0 0.0
    %508 = vmatprep.subr.mxu0 0.0
    %509 = vmatpush1.msra.mxu0 0.0
    %510 = vmatprep.subr.mxu0 0.0
    %511 = vmatpush1.msra.mxu0 0.0
    %512 = vmatprep.subr.mxu0 0.0
    %513 = vmatpush1.msra.mxu0 0.0
    %514 = vmatprep.subr.mxu0 0.0
    %515 = vmatpush1.msra.mxu0 0.0
    %516 = vmatprep.subr.mxu0 0.0
    %517 = vmatpush1.msra.mxu0 0.0
    %518 = vmatprep.subr.mxu0 0.0
    %519 = vmatpush1.msra.mxu0 0.0
    %520 = vmatprep.mubr.f32.mxu0 0.0
    %521 = vmatmul.mubr.f32.gmra.mrb[0].mxu0 %v451
    %v522 = vpop.f32.mrb[0].mxu0
    %v523 = vadd.f32 %v447, %v522
    %v524 = vpop.f32.mrb[0].mxu0
    %525 = vmatprep.mubr.f32.mxu0 0.0
    %526 = vmatmul.mubr.f32.gmra.mrb[0].mxu0 %v454
    %v527 = vpop.f32.mrb[0].mxu0
    %v528 = vadd.f32 %v447, %v527
    %v529 = vpop.f32.mrb[0].mxu0
    %530 = vdwg.mxu0
    %v531 = vmax.f32 %v523, 0.0
    %v532 = vmax.f32 %v528, 0.0
    %v533 = vld [vmem:[%s15] sm:$0xff]
    %v534 = vld [vmem:[%s15 + $0x8] sm:$0xff]
    %v535 = vld [vmem:[%s15 + $0x10] sm:$0xff]
    %v536 = vld [vmem:[%s15 + $0x18] sm:$0xff]
    %v537 = vld [vmem:[%s15 + $0x20] sm:$0xff]
    %v538 = vld [vmem:[%s15 + $0x28] sm:$0xff]
    %v539 = vld [vmem:[%s15 + $0x30] sm:$0xff]
    %v540 = vld [vmem:[%s15 + $0x38] sm:$0xff]
    %vm541 = vcmask 523264
    %v543 = vsel %vm541, %v531, 0
    %v546 = vsel %vm541, %v532, 0
    %548 = vmatprep.subr.mxu0 0.0
    %549 = vmatpush1.msra.mxu0 %v533
    %550 = vmatprep.subr.mxu0 0.0
    %551 = vmatpush1.msra.mxu0 %v534
    %552 = vmatprep.subr.mxu0 0.0
    %553 = vmatpush1.msra.mxu0 %v535
    %554 = vmatprep.subr.mxu0 0.0
    %555 = vmatpush1.msra.mxu0 %v536
    %556 = vmatprep.subr.mxu0 0.0
    %557 = vmatpush1.msra.mxu0 %v537
    %558 = vmatprep.subr.mxu0 0.0
    %559 = vmatpush1.msra.mxu0 %v538
    %560 = vmatprep.subr.mxu0 0.0
    %561 = vmatpush1.msra.mxu0 %v539
    %562 = vmatprep.subr.mxu0 0.0
    %563 = vmatpush1.msra.mxu0 %v540
    %564 = vmatprep.subr.mxu0 0.0
    %565 = vmatpush1.msra.mxu0 0.0
    %566 = vmatprep.subr.mxu0 0.0
    %567 = vmatpush1.msra.mxu0 0.0
    %568 = vmatprep.subr.mxu0 0.0
    %569 = vmatpush1.msra.mxu0 0.0
    %570 = vmatprep.subr.mxu0 0.0
    %571 = vmatpush1.msra.mxu0 0.0
    %572 = vmatprep.subr.mxu0 0.0
    %573 = vmatpush1.msra.mxu0 0.0
    %574 = vmatprep.subr.mxu0 0.0
    %575 = vmatpush1.msra.mxu0 0.0
    %576 = vmatprep.subr.mxu0 0.0
    %577 = vmatpush1.msra.mxu0 0.0
    %578 = vmatprep.subr.mxu0 0.0
    %579 = vmatpush1.msra.mxu0 0.0
    %580 = vmatprep.subr.mxu0 0.0
    %581 = vmatpush1.msra.mxu0 0.0
    %582 = vmatprep.subr.mxu0 0.0
    %583 = vmatpush1.msra.mxu0 0.0
    %584 = vmatprep.subr.mxu0 0.0
    %585 = vmatpush1.msra.mxu0 0.0
    %586 = vmatprep.subr.mxu0 0.0
    %587 = vmatpush1.msra.mxu0 0.0
    %588 = vmatprep.subr.mxu0 0.0
    %589 = vmatpush1.msra.mxu0 0.0
    %590 = vmatprep.subr.mxu0 0.0
    %591 = vmatpush1.msra.mxu0 0.0
    %592 = vmatprep.subr.mxu0 0.0
    %593 = vmatpush1.msra.mxu0 0.0
    %594 = vmatprep.subr.mxu0 0.0
    %595 = vmatpush1.msra.mxu0 0.0
    %596 = vmatprep.subr.mxu0 0.0
    %597 = vmatpush1.msra.mxu0 0.0
    %598 = vmatprep.subr.mxu0 0.0
    %599 = vmatpush1.msra.mxu0 0.0
    %600 = vmatprep.subr.mxu0 0.0
    %601 = vmatpush1.msra.mxu0 0.0
    %602 = vmatprep.subr.mxu0 0.0
    %603 = vmatpush1.msra.mxu0 0.0
    %604 = vmatprep.subr.mxu0 0.0
    %605 = vmatpush1.msra.mxu0 0.0
    %606 = vmatprep.subr.mxu0 0.0
    %607 = vmatpush1.msra.mxu0 0.0
    %608 = vmatprep.subr.mxu0 0.0
    %609 = vmatpush1.msra.mxu0 0.0
    %610 = vmatprep.subr.mxu0 0.0
    %611 = vmatpush1.msra.mxu0 0.0
    %612 = vmatprep.mubr.f32.mxu0 0.0
    %613 = vmatmul.mubr.f32.gmra.mrb[0].mxu0 %v543
    %v614 = vpop.f32.mrb[0].mxu0
    %v615 = vadd.f32 0.0, %v614
    %v616 = vpop.f32.mrb[0].mxu0
    %617 = vmatprep.mubr.f32.mxu0 0.0
    %618 = vmatmul.mubr.f32.gmra.mrb[0].mxu0 %v546
    %v619 = vpop.f32.mrb[0].mxu0
    %v620 = vadd.f32 0.0, %v619
    %v621 = vpop.f32.mrb[0].mxu0
    %622 = vdwg.mxu0
    %v623 = vld [vmem:[#allocation8] sm:$0x1]
    %v625 = vlaneseq
    %v626 = vshrl.u32 %v625, 7
    %v627 = vsub.s32 0, %v626
    %v628 = vrot.slane %v623, %v627
    %630 = vmatprep.subr.mxu0 0.0
    %631 = vmatpush1.msra.mxu0 %v615
    %632 = vmatprep.subr.mxu0 0.0
    %633 = vmatpush1.msra.mxu0 %v620
    %634 = vmatprep.subr.mxu0 0.0
    %635 = vmatpush1.msra.mxu0 0.0
    %636 = vmatprep.subr.mxu0 0.0
    %637 = vmatpush1.msra.mxu0 0.0
    %638 = vmatprep.subr.mxu0 0.0
    %639 = vmatpush1.msra.mxu0 0.0
    %640 = vmatprep.subr.mxu0 0.0
    %641 = vmatpush1.msra.mxu0 0.0
    %642 = vmatprep.subr.mxu0 0.0
    %643 = vmatpush1.msra.mxu0 0.0
    %644 = vmatprep.subr.mxu0 0.0
    %645 = vmatpush1.msra.mxu0 0.0
    %646 = vmatprep.subr.mxu0 0.0
    %647 = vmatpush1.msra.mxu0 0.0
    %648 = vmatprep.subr.mxu0 0.0
    %649 = vmatpush1.msra.mxu0 0.0
    %650 = vmatprep.subr.mxu0 0.0
    %651 = vmatpush1.msra.mxu0 0.0
    %652 = vmatprep.subr.mxu0 0.0
    %653 = vmatpush1.msra.mxu0 0.0
    %654 = vmatprep.subr.mxu0 0.0
    %655 = vmatpush1.msra.mxu0 0.0
    %656 = vmatprep.subr.mxu0 0.0
    %657 = vmatpush1.msra.mxu0 0.0
    %658 = vmatprep.subr.mxu0 0.0
    %659 = vmatpush1.msra.mxu0 0.0
    %660 = vmatprep.subr.mxu0 0.0
    %661 = vmatpush1.msra.mxu0 0.0
    %662 = vmatprep.subr.mxu0 0.0
    %663 = vmatpush1.msra.mxu0 0.0
    %664 = vmatprep.subr.mxu0 0.0
    %665 = vmatpush1.msra.mxu0 0.0
    %666 = vmatprep.subr.mxu0 0.0
    %667 = vmatpush1.msra.mxu0 0.0
    %668 = vmatprep.subr.mxu0 0.0
    %669 = vmatpush1.msra.mxu0 0.0
    %670 = vmatprep.subr.mxu0 0.0
    %671 = vmatpush1.msra.mxu0 0.0
    %672 = vmatprep.subr.mxu0 0.0
    %673 = vmatpush1.msra.mxu0 0.0
    %674 = vmatprep.subr.mxu0 0.0
    %675 = vmatpush1.msra.mxu0 0.0
    %676 = vmatprep.subr.mxu0 0.0
    %677 = vmatpush1.msra.mxu0 0.0
    %678 = vmatprep.subr.mxu0 0.0
    %679 = vmatpush1.msra.mxu0 0.0
    %680 = vmatprep.subr.mxu0 0.0
    %681 = vmatpush1.msra.mxu0 0.0
    %682 = vmatprep.subr.mxu0 0.0
    %683 = vmatpush1.msra.mxu0 0.0
    %684 = vmatprep.subr.mxu0 0.0
    %685 = vmatpush1.msra.mxu0 0.0
    %686 = vmatprep.subr.mxu0 0.0
    %687 = vmatpush1.msra.mxu0 0.0
    %688 = vmatprep.subr.mxu0 0.0
    %689 = vmatpush1.msra.mxu0 0.0
    %690 = vmatprep.subr.mxu0 0.0
    %691 = vmatpush1.msra.mxu0 0.0
    %692 = vmatprep.subr.mxu0 0.0
    %693 = vmatpush1.msra.mxu0 0.0
    %694 = vmatprep.mubr.f32.mxu0 0.0
    %695 = vmatmul.mubr.f32.gmra.mrb[0].mxu0 %v451
    %v696 = vpop.f32.mrb[0].mxu0
    %v697 = vadd.f32 %v628, %v696
    %v698 = vpop.f32.mrb[0].mxu0
    %699 = vmatprep.mubr.f32.mxu0 0.0
    %700 = vmatmul.mubr.f32.gmra.mrb[0].mxu0 %v454
    %v701 = vpop.f32.mrb[0].mxu0
    %v702 = vadd.f32 %v628, %v701
    %v703 = vpop.f32.mrb[0].mxu0
    %704 = vdwg.mxu0
    %v705 = vmax.f32 %v697, 0.0
    %v706 = vmax.f32 %v702, 0.0
    %v707 = vld [vmem:[%s5] sm:$0xff]
    %v708 = vld [vmem:[%s5 + $0x8] sm:$0xff]
    %v709 = vld [vmem:[%s5 + $0x10] sm:$0xff]
    %v710 = vld [vmem:[%s5 + $0x18] sm:$0xff]
    %v711 = vld [vmem:[%s5 + $0x20] sm:$0xff]
    %v712 = vld [vmem:[%s5 + $0x28] sm:$0xff]
    %v713 = vld [vmem:[%s5 + $0x30] sm:$0xff]
    %v714 = vld [vmem:[%s5 + $0x38] sm:$0xff]
    %v715 = vld [vmem:[%s5 + $0x40] sm:$0xff]
    %v716 = vld [vmem:[%s5 + $0x48] sm:$0xff]
    %v717 = vld [vmem:[%s5 + $0x50] sm:$0xff]
    %v718 = vld [vmem:[%s5 + $0x58] sm:$0xff]
    %v719 = vld [vmem:[#allocation10] sm:$0xff]
    %v720 = vld [vmem:[#allocation10 + $0x8] sm:$0xff]
    %v721 = vld [vmem:[#allocation16] sm:$0x1]
    %v723 = vlaneseq
    %v724 = vshrl.u32 %v723, 7
    %v725 = vsub.s32 0, %v724
    %v726 = vrot.slane %v721, %v725
    %v729 = vsel %vm449, %v707, 0
    %v732 = vsel %vm449, %v708, 0
    %v735 = vsel %vm449, %v709, 0
    %v738 = vsel %vm449, %v710, 0
    %v741 = vsel %vm449, %v711, 0
    %v744 = vsel %vm449, %v712, 0
    %v747 = vsel %vm449, %v713, 0
    %v750 = vsel %vm449, %v714, 0
    %v753 = vsel %vm449, %v715, 0
    %v756 = vsel %vm449, %v716, 0
    %v759 = vsel %vm449, %v717, 0
    %v762 = vsel %vm449, %v718, 0
    %764 = vmatprep.subr.mxu0 0.0
    %765 = vmatpush1.msra.mxu0 %v719
    %766 = vmatprep.subr.mxu0 0.0
    %767 = vmatpush1.msra.mxu0 %v720
    %768 = vmatprep.subr.mxu0 0.0
    %769 = vmatpush1.msra.mxu0 0.0
    %770 = vmatprep.subr.mxu0 0.0
    %771 = vmatpush1.msra.mxu0 0.0
    %772 = vmatprep.subr.mxu0 0.0
    %773 = vmatpush1.msra.mxu0 0.0
    %774 = vmatprep.subr.mxu0 0.0
    %775 = vmatpush1.msra.mxu0 0.0
    %776 = vmatprep.subr.mxu0 0.0
    %777 = vmatpush1.msra.mxu0 0.0
    %778 = vmatprep.subr.mxu0 0.0
    %779 = vmatpush1.msra.mxu0 0.0
    %780 = vmatprep.subr.mxu0 0.0
    %781 = vmatpush1.msra.mxu0 0.0
    %782 = vmatprep.subr.mxu0 0.0
    %783 = vmatpush1.msra.mxu0 0.0
    %784 = vmatprep.subr.mxu0 0.0
    %785 = vmatpush1.msra.mxu0 0.0
    %786 = vmatprep.subr.mxu0 0.0
    %787 = vmatpush1.msra.mxu0 0.0
    %788 = vmatprep.subr.mxu0 0.0
    %789 = vmatpush1.msra.mxu0 0.0
    %790 = vmatprep.subr.mxu0 0.0
    %791 = vmatpush1.msra.mxu0 0.0
    %792 = vmatprep.subr.mxu0 0.0
    %793 = vmatpush1.msra.mxu0 0.0
    %794 = vmatprep.subr.mxu0 0.0
    %795 = vmatpush1.msra.mxu0 0.0
    %796 = vmatprep.subr.mxu0 0.0
    %797 = vmatpush1.msra.mxu0 0.0
    %798 = vmatprep.subr.mxu0 0.0
    %799 = vmatpush1.msra.mxu0 0.0
    %800 = vmatprep.subr.mxu0 0.0
    %801 = vmatpush1.msra.mxu0 0.0
    %802 = vmatprep.subr.mxu0 0.0
    %803 = vmatpush1.msra.mxu0 0.0
    %804 = vmatprep.subr.mxu0 0.0
    %805 = vmatpush1.msra.mxu0 0.0
    %806 = vmatprep.subr.mxu0 0.0
    %807 = vmatpush1.msra.mxu0 0.0
    %808 = vmatprep.subr.mxu0 0.0
    %809 = vmatpush1.msra.mxu0 0.0
    %810 = vmatprep.subr.mxu0 0.0
    %811 = vmatpush1.msra.mxu0 0.0
    %812 = vmatprep.subr.mxu0 0.0
    %813 = vmatpush1.msra.mxu0 0.0
    %814 = vmatprep.subr.mxu0 0.0
    %815 = vmatpush1.msra.mxu0 0.0
    %816 = vmatprep.subr.mxu0 0.0
    %817 = vmatpush1.msra.mxu0 0.0
    %818 = vmatprep.subr.mxu0 0.0
    %819 = vmatpush1.msra.mxu0 0.0
    %820 = vmatprep.subr.mxu0 0.0
    %821 = vmatpush1.msra.mxu0 0.0
    %822 = vmatprep.subr.mxu0 0.0
    %823 = vmatpush1.msra.mxu0 0.0
    %824 = vmatprep.subr.mxu0 0.0
    %825 = vmatpush1.msra.mxu0 0.0
    %826 = vmatprep.subr.mxu0 0.0
    %827 = vmatpush1.msra.mxu0 0.0
    %828 = vmatprep.mubr.f32.mxu0 0.0
    %829 = vmatmul.mubr.f32.gmra.mrb[0].mxu0 %v729
    %v830 = vpop.f32.mrb[0].mxu0
    %v831 = vadd.f32 %v726, %v830
    %v832 = vpop.f32.mrb[0].mxu0
    %833 = vmatprep.mubr.f32.mxu0 0.0
    %834 = vmatmul.mubr.f32.gmra.mrb[0].mxu0 %v732
    %v835 = vpop.f32.mrb[0].mxu0
    %v836 = vadd.f32 %v726, %v835
    %v837 = vpop.f32.mrb[0].mxu0
    %838 = vmatprep.mubr.f32.mxu0 0.0
    %839 = vmatmul.mubr.f32.gmra.mrb[0].mxu0 %v735
    %v840 = vpop.f32.mrb[0].mxu0
    %v841 = vadd.f32 %v726, %v840
    %v842 = vpop.f32.mrb[0].mxu0
    %843 = vmatprep.mubr.f32.mxu0 0.0
    %844 = vmatmul.mubr.f32.gmra.mrb[0].mxu0 %v738
    %v845 = vpop.f32.mrb[0].mxu0
    %v846 = vadd.f32 %v726, %v845
    %v847 = vpop.f32.mrb[0].mxu0
    %848 = vmatprep.mubr.f32.mxu0 0.0
    %849 = vmatmul.mubr.f32.gmra.mrb[0].mxu0 %v741
    %v850 = vpop.f32.mrb[0].mxu0
    %v851 = vadd.f32 %v726, %v850
    %v852 = vpop.f32.mrb[0].mxu0
    %853 = vmatprep.mubr.f32.mxu0 0.0
    %854 = vmatmul.mubr.f32.gmra.mrb[0].mxu0 %v744
    %v855 = vpop.f32.mrb[0].mxu0
    %v856 = vadd.f32 %v726, %v855
    %v857 = vpop.f32.mrb[0].mxu0
    %858 = vmatprep.mubr.f32.mxu0 0.0
    %859 = vmatmul.mubr.f32.gmra.mrb[0].mxu0 %v747
    %v860 = vpop.f32.mrb[0].mxu0
    %v861 = vadd.f32 %v726, %v860
    %v862 = vpop.f32.mrb[0].mxu0
    %863 = vmatprep.mubr.f32.mxu0 0.0
    %864 = vmatmul.mubr.f32.gmra.mrb[0].mxu0 %v750
    %v865 = vpop.f32.mrb[0].mxu0
    %v866 = vadd.f32 %v726, %v865
    %v867 = vpop.f32.mrb[0].mxu0
    %868 = vmatprep.mubr.f32.mxu0 0.0
    %869 = vmatmul.mubr.f32.gmra.mrb[0].mxu0 %v753
    %v870 = vpop.f32.mrb[0].mxu0
    %v871 = vadd.f32 %v726, %v870
    %v872 = vpop.f32.mrb[0].mxu0
    %873 = vmatprep.mubr.f32.mxu0 0.0
    %874 = vmatmul.mubr.f32.gmra.mrb[0].mxu0 %v756
    %v875 = vpop.f32.mrb[0].mxu0
    %v876 = vadd.f32 %v726, %v875
    %v877 = vpop.f32.mrb[0].mxu0
    %878 = vmatprep.mubr.f32.mxu0 0.0
    %879 = vmatmul.mubr.f32.gmra.mrb[0].mxu0 %v759
    %v880 = vpop.f32.mrb[0].mxu0
    %v881 = vadd.f32 %v726, %v880
    %v882 = vpop.f32.mrb[0].mxu0
    %883 = vmatprep.mubr.f32.mxu0 0.0
    %884 = vmatmul.mubr.f32.gmra.mrb[0].mxu0 %v762
    %v885 = vpop.f32.mrb[0].mxu0
    %v886 = vadd.f32 %v726, %v885
    %v887 = vpop.f32.mrb[0].mxu0
    %888 = vdwg.mxu0
    %v889 = vld [vmem:[#allocation11] sm:$0xff]
    %v890 = vld [vmem:[#allocation11 + $0x8] sm:$0xff]
    %v891 = vld [vmem:[#allocation17] sm:$0x1]
    %v893 = vlaneseq
    %v894 = vshrl.u32 %v893, 7
    %v895 = vsub.s32 0, %v894
    %v896 = vrot.slane %v891, %v895
    %898 = vmatprep.subr.mxu0 0.0
    %899 = vmatpush1.msra.mxu0 %v889
    %900 = vmatprep.subr.mxu0 0.0
    %901 = vmatpush1.msra.mxu0 %v890
    %902 = vmatprep.subr.mxu0 0.0
    %903 = vmatpush1.msra.mxu0 0.0
    %904 = vmatprep.subr.mxu0 0.0
    %905 = vmatpush1.msra.mxu0 0.0
    %906 = vmatprep.subr.mxu0 0.0
    %907 = vmatpush1.msra.mxu0 0.0
    %908 = vmatprep.subr.mxu0 0.0
    %909 = vmatpush1.msra.mxu0 0.0
    %910 = vmatprep.subr.mxu0 0.0
    %911 = vmatpush1.msra.mxu0 0.0
    %912 = vmatprep.subr.mxu0 0.0
    %913 = vmatpush1.msra.mxu0 0.0
    %914 = vmatprep.subr.mxu0 0.0
    %915 = vmatpush1.msra.mxu0 0.0
    %916 = vmatprep.subr.mxu0 0.0
    %917 = vmatpush1.msra.mxu0 0.0
    %918 = vmatprep.subr.mxu0 0.0
    %919 = vmatpush1.msra.mxu0 0.0
    %920 = vmatprep.subr.mxu0 0.0
    %921 = vmatpush1.msra.mxu0 0.0
    %922 = vmatprep.subr.mxu0 0.0
    %923 = vmatpush1.msra.mxu0 0.0
    %924 = vmatprep.subr.mxu0 0.0
    %925 = vmatpush1.msra.mxu0 0.0
    %926 = vmatprep.subr.mxu0 0.0
    %927 = vmatpush1.msra.mxu0 0.0
    %928 = vmatprep.subr.mxu0 0.0
    %929 = vmatpush1.msra.mxu0 0.0
    %930 = vmatprep.subr.mxu0 0.0
    %931 = vmatpush1.msra.mxu0 0.0
    %932 = vmatprep.subr.mxu0 0.0
    %933 = vmatpush1.msra.mxu0 0.0
    %934 = vmatprep.subr.mxu0 0.0
    %935 = vmatpush1.msra.mxu0 0.0
    %936 = vmatprep.subr.mxu0 0.0
    %937 = vmatpush1.msra.mxu0 0.0
    %938 = vmatprep.subr.mxu0 0.0
    %939 = vmatpush1.msra.mxu0 0.0
    %940 = vmatprep.subr.mxu0 0.0
    %941 = vmatpush1.msra.mxu0 0.0
    %942 = vmatprep.subr.mxu0 0.0
    %943 = vmatpush1.msra.mxu0 0.0
    %944 = vmatprep.subr.mxu0 0.0
    %945 = vmatpush1.msra.mxu0 0.0
    %946 = vmatprep.subr.mxu0 0.0
    %947 = vmatpush1.msra.mxu0 0.0
    %948 = vmatprep.subr.mxu0 0.0
    %949 = vmatpush1.msra.mxu0 0.0
    %950 = vmatprep.subr.mxu0 0.0
    %951 = vmatpush1.msra.mxu0 0.0
    %952 = vmatprep.subr.mxu0 0.0
    %953 = vmatpush1.msra.mxu0 0.0
    %954 = vmatprep.subr.mxu0 0.0
    %955 = vmatpush1.msra.mxu0 0.0
    %956 = vmatprep.subr.mxu0 0.0
    %957 = vmatpush1.msra.mxu0 0.0
    %958 = vmatprep.subr.mxu0 0.0
    %959 = vmatpush1.msra.mxu0 0.0
    %960 = vmatprep.subr.mxu0 0.0
    %961 = vmatpush1.msra.mxu0 0.0
    %962 = vmatprep.mubr.f32.mxu0 0.0
    %963 = vmatmul.mubr.f32.gmra.mrb[0].mxu0 %v729
    %v964 = vpop.f32.mrb[0].mxu0
    %v965 = vadd.f32 %v896, %v964
    %v966 = vpop.f32.mrb[0].mxu0
    %967 = vmatprep.mubr.f32.mxu0 0.0
    %968 = vmatmul.mubr.f32.gmra.mrb[0].mxu0 %v732
    %v969 = vpop.f32.mrb[0].mxu0
    %v970 = vadd.f32 %v896, %v969
    %v971 = vpop.f32.mrb[0].mxu0
    %972 = vmatprep.mubr.f32.mxu0 0.0
    %973 = vmatmul.mubr.f32.gmra.mrb[0].mxu0 %v735
    %v974 = vpop.f32.mrb[0].mxu0
    %v975 = vadd.f32 %v896, %v974
    %v976 = vpop.f32.mrb[0].mxu0
    %977 = vmatprep.mubr.f32.mxu0 0.0
    %978 = vmatmul.mubr.f32.gmra.mrb[0].mxu0 %v738
    %v979 = vpop.f32.mrb[0].mxu0
    %v980 = vadd.f32 %v896, %v979
    %v981 = vpop.f32.mrb[0].mxu0
    %982 = vmatprep.mubr.f32.mxu0 0.0
    %983 = vmatmul.mubr.f32.gmra.mrb[0].mxu0 %v741
    %v984 = vpop.f32.mrb[0].mxu0
    %v985 = vadd.f32 %v896, %v984
    %v986 = vpop.f32.mrb[0].mxu0
    %987 = vmatprep.mubr.f32.mxu0 0.0
    %988 = vmatmul.mubr.f32.gmra.mrb[0].mxu0 %v744
    %v989 = vpop.f32.mrb[0].mxu0
    %v990 = vadd.f32 %v896, %v989
    %v991 = vpop.f32.mrb[0].mxu0
    %992 = vmatprep.mubr.f32.mxu0 0.0
    %993 = vmatmul.mubr.f32.gmra.mrb[0].mxu0 %v747
    %v994 = vpop.f32.mrb[0].mxu0
    %v995 = vadd.f32 %v896, %v994
    %v996 = vpop.f32.mrb[0].mxu0
    %997 = vmatprep.mubr.f32.mxu0 0.0
    %998 = vmatmul.mubr.f32.gmra.mrb[0].mxu0 %v750
    %v999 = vpop.f32.mrb[0].mxu0
    %v1000 = vadd.f32 %v896, %v999
    %v1001 = vpop.f32.mrb[0].mxu0
    %1002 = vmatprep.mubr.f32.mxu0 0.0
    %1003 = vmatmul.mubr.f32.gmra.mrb[0].mxu0 %v753
    %v1004 = vpop.f32.mrb[0].mxu0
    %v1005 = vadd.f32 %v896, %v1004
    %v1006 = vpop.f32.mrb[0].mxu0
    %1007 = vmatprep.mubr.f32.mxu0 0.0
    %1008 = vmatmul.mubr.f32.gmra.mrb[0].mxu0 %v756
    %v1009 = vpop.f32.mrb[0].mxu0
    %v1010 = vadd.f32 %v896, %v1009
    %v1011 = vpop.f32.mrb[0].mxu0
    %1012 = vmatprep.mubr.f32.mxu0 0.0
    %1013 = vmatmul.mubr.f32.gmra.mrb[0].mxu0 %v759
    %v1014 = vpop.f32.mrb[0].mxu0
    %v1015 = vadd.f32 %v896, %v1014
    %v1016 = vpop.f32.mrb[0].mxu0
    %1017 = vmatprep.mubr.f32.mxu0 0.0
    %1018 = vmatmul.mubr.f32.gmra.mrb[0].mxu0 %v762
    %v1019 = vpop.f32.mrb[0].mxu0
    %v1020 = vadd.f32 %v896, %v1019
    %v1021 = vpop.f32.mrb[0].mxu0
    %1022 = vdwg.mxu0
    %v1023 = vld [vmem:[#allocation13] sm:$0xff]
    %v1024 = vld [vmem:[#allocation13 + $0x8] sm:$0xff]
    %v1025 = vld [vmem:[#allocation19] sm:$0x1]
    %v1027 = vlaneseq
    %v1028 = vshrl.u32 %v1027, 7
    %v1029 = vsub.s32 0, %v1028
    %v1030 = vrot.slane %v1025, %v1029
    %1032 = vmatprep.subr.mxu0 0.0
    %1033 = vmatpush1.msra.mxu0 %v1023
    %1034 = vmatprep.subr.mxu0 0.0
    %1035 = vmatpush1.msra.mxu0 %v1024
    %1036 = vmatprep.subr.mxu0 0.0
    %1037 = vmatpush1.msra.mxu0 0.0
    %1038 = vmatprep.subr.mxu0 0.0
    %1039 = vmatpush1.msra.mxu0 0.0
    %1040 = vmatprep.subr.mxu0 0.0
    %1041 = vmatpush1.msra.mxu0 0.0
    %1042 = vmatprep.subr.mxu0 0.0
    %1043 = vmatpush1.msra.mxu0 0.0
    %1044 = vmatprep.subr.mxu0 0.0
    %1045 = vmatpush1.msra.mxu0 0.0
    %1046 = vmatprep.subr.mxu0 0.0
    %1047 = vmatpush1.msra.mxu0 0.0
    %1048 = vmatprep.subr.mxu0 0.0
    %1049 = vmatpush1.msra.mxu0 0.0
    %1050 = vmatprep.subr.mxu0 0.0
    %1051 = vmatpush1.msra.mxu0 0.0
    %1052 = vmatprep.subr.mxu0 0.0
    %1053 = vmatpush1.msra.mxu0 0.0
    %1054 = vmatprep.subr.mxu0 0.0
    %1055 = vmatpush1.msra.mxu0 0.0
    %1056 = vmatprep.subr.mxu0 0.0
    %1057 = vmatpush1.msra.mxu0 0.0
    %1058 = vmatprep.subr.mxu0 0.0
    %1059 = vmatpush1.msra.mxu0 0.0
    %1060 = vmatprep.subr.mxu0 0.0
    %1061 = vmatpush1.msra.mxu0 0.0
    %1062 = vmatprep.subr.mxu0 0.0
    %1063 = vmatpush1.msra.mxu0 0.0
    %1064 = vmatprep.subr.mxu0 0.0
    %1065 = vmatpush1.msra.mxu0 0.0
    %1066 = vmatprep.subr.mxu0 0.0
    %1067 = vmatpush1.msra.mxu0 0.0
    %1068 = vmatprep.subr.mxu0 0.0
    %1069 = vmatpush1.msra.mxu0 0.0
    %1070 = vmatprep.subr.mxu0 0.0
    %1071 = vmatpush1.msra.mxu0 0.0
    %1072 = vmatprep.subr.mxu0 0.0
    %1073 = vmatpush1.msra.mxu0 0.0
    %1074 = vmatprep.subr.mxu0 0.0
    %1075 = vmatpush1.msra.mxu0 0.0
    %1076 = vmatprep.subr.mxu0 0.0
    %1077 = vmatpush1.msra.mxu0 0.0
    %1078 = vmatprep.subr.mxu0 0.0
    %1079 = vmatpush1.msra.mxu0 0.0
    %1080 = vmatprep.subr.mxu0 0.0
    %1081 = vmatpush1.msra.mxu0 0.0
    %1082 = vmatprep.subr.mxu0 0.0
    %1083 = vmatpush1.msra.mxu0 0.0
    %1084 = vmatprep.subr.mxu0 0.0
    %1085 = vmatpush1.msra.mxu0 0.0
    %1086 = vmatprep.subr.mxu0 0.0
    %1087 = vmatpush1.msra.mxu0 0.0
    %1088 = vmatprep.subr.mxu0 0.0
    %1089 = vmatpush1.msra.mxu0 0.0
    %1090 = vmatprep.subr.mxu0 0.0
    %1091 = vmatpush1.msra.mxu0 0.0
    %1092 = vmatprep.subr.mxu0 0.0
    %1093 = vmatpush1.msra.mxu0 0.0
    %1094 = vmatprep.subr.mxu0 0.0
    %1095 = vmatpush1.msra.mxu0 0.0
    %1096 = vmatprep.mubr.f32.mxu0 0.0
    %1097 = vmatmul.mubr.f32.gmra.mrb[0].mxu0 %v729
    %v1098 = vpop.f32.mrb[0].mxu0
    %v1099 = vadd.f32 %v1030, %v1098
    %v1100 = vpop.f32.mrb[0].mxu0
    %1101 = vmatprep.mubr.f32.mxu0 0.0
    %1102 = vmatmul.mubr.f32.gmra.mrb[0].mxu0 %v732
    %v1103 = vpop.f32.mrb[0].mxu0
    %v1104 = vadd.f32 %v1030, %v1103
    %v1105 = vpop.f32.mrb[0].mxu0
    %1106 = vmatprep.mubr.f32.mxu0 0.0
    %1107 = vmatmul.mubr.f32.gmra.mrb[0].mxu0 %v735
    %v1108 = vpop.f32.mrb[0].mxu0
    %v1109 = vadd.f32 %v1030, %v1108
    %v1110 = vpop.f32.mrb[0].mxu0
    %1111 = vmatprep.mubr.f32.mxu0 0.0
    %1112 = vmatmul.mubr.f32.gmra.mrb[0].mxu0 %v738
    %v1113 = vpop.f32.mrb[0].mxu0
    %v1114 = vadd.f32 %v1030, %v1113
    %v1115 = vpop.f32.mrb[0].mxu0
    %1116 = vmatprep.mubr.f32.mxu0 0.0
    %1117 = vmatmul.mubr.f32.gmra.mrb[0].mxu0 %v741
    %v1118 = vpop.f32.mrb[0].mxu0
    %v1119 = vadd.f32 %v1030, %v1118
    %v1120 = vpop.f32.mrb[0].mxu0
    %1121 = vmatprep.mubr.f32.mxu0 0.0
    %1122 = vmatmul.mubr.f32.gmra.mrb[0].mxu0 %v744
    %v1123 = vpop.f32.mrb[0].mxu0
    %v1124 = vadd.f32 %v1030, %v1123
    %v1125 = vpop.f32.mrb[0].mxu0
    %1126 = vmatprep.mubr.f32.mxu0 0.0
    %1127 = vmatmul.mubr.f32.gmra.mrb[0].mxu0 %v747
    %v1128 = vpop.f32.mrb[0].mxu0
    %v1129 = vadd.f32 %v1030, %v1128
    %v1130 = vpop.f32.mrb[0].mxu0
    %1131 = vmatprep.mubr.f32.mxu0 0.0
    %1132 = vmatmul.mubr.f32.gmra.mrb[0].mxu0 %v750
    %v1133 = vpop.f32.mrb[0].mxu0
    %v1134 = vadd.f32 %v1030, %v1133
    %v1135 = vpop.f32.mrb[0].mxu0
    %1136 = vmatprep.mubr.f32.mxu0 0.0
    %1137 = vmatmul.mubr.f32.gmra.mrb[0].mxu0 %v753
    %v1138 = vpop.f32.mrb[0].mxu0
    %v1139 = vadd.f32 %v1030, %v1138
    %v1140 = vpop.f32.mrb[0].mxu0
    %1141 = vmatprep.mubr.f32.mxu0 0.0
    %1142 = vmatmul.mubr.f32.gmra.mrb[0].mxu0 %v756
    %v1143 = vpop.f32.mrb[0].mxu0
    %v1144 = vadd.f32 %v1030, %v1143
    %v1145 = vpop.f32.mrb[0].mxu0
    %1146 = vmatprep.mubr.f32.mxu0 0.0
    %1147 = vmatmul.mubr.f32.gmra.mrb[0].mxu0 %v759
    %v1148 = vpop.f32.mrb[0].mxu0
    %v1149 = vadd.f32 %v1030, %v1148
    %v1150 = vpop.f32.mrb[0].mxu0
    %1151 = vmatprep.mubr.f32.mxu0 0.0
    %1152 = vmatmul.mubr.f32.gmra.mrb[0].mxu0 %v762
    %v1153 = vpop.f32.mrb[0].mxu0
    %v1154 = vadd.f32 %v1030, %v1153
    %v1155 = vpop.f32.mrb[0].mxu0
    %1156 = vdwg.mxu0
    %v1157 = vld [vmem:[%s25] sm:$0xff]
    %v1158 = vld [vmem:[%s25 + $0x8] sm:$0xff]
    %v1159 = vld [vmem:[%s25 + $0x10] sm:$0xff]
    %v1160 = vld [vmem:[%s25 + $0x18] sm:$0xff]
    %v1161 = vld [vmem:[%s25 + $0x20] sm:$0xff]
    %v1162 = vld [vmem:[%s25 + $0x28] sm:$0xff]
    %v1163 = vld [vmem:[%s25 + $0x30] sm:$0xff]
    %v1164 = vld [vmem:[%s25 + $0x38] sm:$0xff]
    %v1165 = vld [vmem:[%s27] sm:$0xff]
    %v1166 = vld [vmem:[%s27 + $0x8] sm:$0xff]
    %v1167 = vld [vmem:[%s27 + $0x10] sm:$0xff]
    %v1168 = vld [vmem:[%s27 + $0x18] sm:$0xff]
    %v1169 = vld [vmem:[%s27 + $0x20] sm:$0xff]
    %v1170 = vld [vmem:[%s27 + $0x28] sm:$0xff]
    %v1171 = vld [vmem:[%s27 + $0x30] sm:$0xff]
    %v1172 = vld [vmem:[%s27 + $0x38] sm:$0xff]
    %v1173 = vld [vmem:[#allocation14] sm:$0xff]
    %v1174 = vld [vmem:[#allocation14 + $0x8] sm:$0xff]
    %v1175 = vld [vmem:[#allocation14 + $0x10] sm:$0xff]
    %v1176 = vld [vmem:[#allocation14 + $0x18] sm:$0xff]
    %v1177 = vld [vmem:[#allocation14 + $0x20] sm:$0xff]
    %v1178 = vld [vmem:[#allocation14 + $0x28] sm:$0xff]
    %v1179 = vld [vmem:[#allocation14 + $0x30] sm:$0xff]
    %v1180 = vld [vmem:[#allocation14 + $0x38] sm:$0xff]
    %v1181 = vld [vmem:[#allocation20] sm:$0x1]
    %v1182 = vld [vmem:[#allocation22] sm:$0x1]
    %v1183 = vld [vmem:[%s41] sm:$0x1]
    %v1185 = vlaneseq
    %v1186 = vshrl.u32 %v1185, 7
    %v1187 = vsub.s32 0, %v1186
    %v1188 = vrot.slane %v1181, %v1187
    %v1191 = vsel %vm541, 0.0, 0
    %1193 = vmatprep.subr.mxu0 0.0
    %1194 = vmatpush1.msra.mxu0 %v1157
    %1195 = vmatprep.subr.mxu0 0.0
    %1196 = vmatpush1.msra.mxu0 %v1158
    %1197 = vmatprep.subr.mxu0 0.0
    %1198 = vmatpush1.msra.mxu0 %v1159
    %1199 = vmatprep.subr.mxu0 0.0
    %1200 = vmatpush1.msra.mxu0 %v1160
    %1201 = vmatprep.subr.mxu0 0.0
    %1202 = vmatpush1.msra.mxu0 %v1161
    %1203 = vmatprep.subr.mxu0 0.0
    %1204 = vmatpush1.msra.mxu0 %v1162
    %1205 = vmatprep.subr.mxu0 0.0
    %1206 = vmatpush1.msra.mxu0 %v1163
    %1207 = vmatprep.subr.mxu0 0.0
    %1208 = vmatpush1.msra.mxu0 %v1164
    %1209 = vmatprep.subr.mxu0 0.0
    %1210 = vmatpush1.msra.mxu0 0.0
    %1211 = vmatprep.subr.mxu0 0.0
    %1212 = vmatpush1.msra.mxu0 0.0
    %1213 = vmatprep.subr.mxu0 0.0
    %1214 = vmatpush1.msra.mxu0 0.0
    %1215 = vmatprep.subr.mxu0 0.0
    %1216 = vmatpush1.msra.mxu0 0.0
    %1217 = vmatprep.subr.mxu0 0.0
    %1218 = vmatpush1.msra.mxu0 0.0
    %1219 = vmatprep.subr.mxu0 0.0
    %1220 = vmatpush1.msra.mxu0 0.0
    %1221 = vmatprep.subr.mxu0 0.0
    %1222 = vmatpush1.msra.mxu0 0.0
    %1223 = vmatprep.subr.mxu0 0.0
    %1224 = vmatpush1.msra.mxu0 0.0
    %1225 = vmatprep.subr.mxu0 0.0
    %1226 = vmatpush1.msra.mxu0 0.0
    %1227 = vmatprep.subr.mxu0 0.0
    %1228 = vmatpush1.msra.mxu0 0.0
    %1229 = vmatprep.subr.mxu0 0.0
    %1230 = vmatpush1.msra.mxu0 0.0
    %1231 = vmatprep.subr.mxu0 0.0
    %1232 = vmatpush1.msra.mxu0 0.0
    %1233 = vmatprep.subr.mxu0 0.0
    %1234 = vmatpush1.msra.mxu0 0.0
    %1235 = vmatprep.subr.mxu0 0.0
    %1236 = vmatpush1.msra.mxu0 0.0
    %1237 = vmatprep.subr.mxu0 0.0
    %1238 = vmatpush1.msra.mxu0 0.0
    %1239 = vmatprep.subr.mxu0 0.0
    %1240 = vmatpush1.msra.mxu0 0.0
    %1241 = vmatprep.subr.mxu0 0.0
    %1242 = vmatpush1.msra.mxu0 0.0
    %1243 = vmatprep.subr.mxu0 0.0
    %1244 = vmatpush1.msra.mxu0 0.0
    %1245 = vmatprep.subr.mxu0 0.0
    %1246 = vmatpush1.msra.mxu0 0.0
    %1247 = vmatprep.subr.mxu0 0.0
    %1248 = vmatpush1.msra.mxu0 0.0
    %1249 = vmatprep.subr.mxu0 0.0
    %1250 = vmatpush1.msra.mxu0 0.0
    %1251 = vmatprep.subr.mxu0 0.0
    %1252 = vmatpush1.msra.mxu0 0.0
    %1253 = vmatprep.subr.mxu0 0.0
    %1254 = vmatpush1.msra.mxu0 0.0
    %1255 = vmatprep.subr.mxu0 0.0
    %1256 = vmatpush1.msra.mxu0 0.0
    %1257 = vmatprep.mubr.f32.mxu0 0.0
    %1258 = vmatmul.mubr.f32.gmra.mrb[0].mxu0 %v1191
    %v1259 = vpop.f32.mrb[0].mxu0
    %v1260 = vadd.f32 %v1188, %v1259
    %v1261 = vpop.f32.mrb[0].mxu0
    %1262 = vmatprep.mubr.f32.mxu0 0.0
    %1263 = vmatmul.mubr.f32.gmra.mrb[0].mxu0 %v1191
    %v1264 = vpop.f32.mrb[0].mxu0
    %v1265 = vadd.f32 %v1188, %v1264
    %v1266 = vpop.f32.mrb[0].mxu0
    %1267 = vdwg.mxu0
    %v1269 = vlaneseq
    %v1270 = vshrl.u32 %v1269, 7
    %v1271 = vsub.s32 0, %v1270
    %v1272 = vrot.slane %v1182, %v1271
    %1274 = vmatprep.subr.mxu0 0.0
    %1275 = vmatpush1.msra.mxu0 %v1165
    %1276 = vmatprep.subr.mxu0 0.0
    %1277 = vmatpush1.msra.mxu0 %v1166
    %1278 = vmatprep.subr.mxu0 0.0
    %1279 = vmatpush1.msra.mxu0 %v1167
    %1280 = vmatprep.subr.mxu0 0.0
    %1281 = vmatpush1.msra.mxu0 %v1168
    %1282 = vmatprep.subr.mxu0 0.0
    %1283 = vmatpush1.msra.mxu0 %v1169
    %1284 = vmatprep.subr.mxu0 0.0
    %1285 = vmatpush1.msra.mxu0 %v1170
    %1286 = vmatprep.subr.mxu0 0.0
    %1287 = vmatpush1.msra.mxu0 %v1171
    %1288 = vmatprep.subr.mxu0 0.0
    %1289 = vmatpush1.msra.mxu0 %v1172
    %1290 = vmatprep.subr.mxu0 0.0
    %1291 = vmatpush1.msra.mxu0 0.0
    %1292 = vmatprep.subr.mxu0 0.0
    %1293 = vmatpush1.msra.mxu0 0.0
    %1294 = vmatprep.subr.mxu0 0.0
    %1295 = vmatpush1.msra.mxu0 0.0
    %1296 = vmatprep.subr.mxu0 0.0
    %1297 = vmatpush1.msra.mxu0 0.0
    %1298 = vmatprep.subr.mxu0 0.0
    %1299 = vmatpush1.msra.mxu0 0.0
    %1300 = vmatprep.subr.mxu0 0.0
    %1301 = vmatpush1.msra.mxu0 0.0
    %1302 = vmatprep.subr.mxu0 0.0
    %1303 = vmatpush1.msra.mxu0 0.0
    %1304 = vmatprep.subr.mxu0 0.0
    %1305 = vmatpush1.msra.mxu0 0.0
    %1306 = vmatprep.subr.mxu0 0.0
    %1307 = vmatpush1.msra.mxu0 0.0
    %1308 = vmatprep.subr.mxu0 0.0
    %1309 = vmatpush1.msra.mxu0 0.0
    %1310 = vmatprep.subr.mxu0 0.0
    %1311 = vmatpush1.msra.mxu0 0.0
    %1312 = vmatprep.subr.mxu0 0.0
    %1313 = vmatpush1.msra.mxu0 0.0
    %1314 = vmatprep.subr.mxu0 0.0
    %1315 = vmatpush1.msra.mxu0 0.0
    %1316 = vmatprep.subr.mxu0 0.0
    %1317 = vmatpush1.msra.mxu0 0.0
    %1318 = vmatprep.subr.mxu0 0.0
    %1319 = vmatpush1.msra.mxu0 0.0
    %1320 = vmatprep.subr.mxu0 0.0
    %1321 = vmatpush1.msra.mxu0 0.0
    %1322 = vmatprep.subr.mxu0 0.0
    %1323 = vmatpush1.msra.mxu0 0.0
    %1324 = vmatprep.subr.mxu0 0.0
    %1325 = vmatpush1.msra.mxu0 0.0
    %1326 = vmatprep.subr.mxu0 0.0
    %1327 = vmatpush1.msra.mxu0 0.0
    %1328 = vmatprep.subr.mxu0 0.0
    %1329 = vmatpush1.msra.mxu0 0.0
    %1330 = vmatprep.subr.mxu0 0.0
    %1331 = vmatpush1.msra.mxu0 0.0
    %1332 = vmatprep.subr.mxu0 0.0
    %1333 = vmatpush1.msra.mxu0 0.0
    %1334 = vmatprep.subr.mxu0 0.0
    %1335 = vmatpush1.msra.mxu0 0.0
    %1336 = vmatprep.subr.mxu0 0.0
    %1337 = vmatpush1.msra.mxu0 0.0
    %1338 = vmatprep.mubr.f32.mxu0 0.0
    %1339 = vmatmul.mubr.f32.gmra.mrb[0].mxu0 %v1191
    %v1340 = vpop.f32.mrb[0].mxu0
    %v1341 = vadd.f32 %v1272, %v1340
    %v1342 = vpop.f32.mrb[0].mxu0
    %1343 = vmatprep.mubr.f32.mxu0 0.0
    %1344 = vmatmul.mubr.f32.gmra.mrb[0].mxu0 %v1191
    %v1345 = vpop.f32.mrb[0].mxu0
    %v1346 = vadd.f32 %v1272, %v1345
    %v1347 = vpop.f32.mrb[0].mxu0
    %1348 = vdwg.mxu0
    %v1350 = vlaneseq
    %v1351 = vshrl.u32 %v1350, 7
    %v1352 = vsub.s32 0, %v1351
    %v1353 = vrot.slane %v1183, %v1352
    %1355 = vmatprep.subr.mxu0 0.0
    %1356 = vmatpush1.msra.mxu0 %v1173
    %1357 = vmatprep.subr.mxu0 0.0
    %1358 = vmatpush1.msra.mxu0 %v1174
    %1359 = vmatprep.subr.mxu0 0.0
    %1360 = vmatpush1.msra.mxu0 %v1175
    %1361 = vmatprep.subr.mxu0 0.0
    %1362 = vmatpush1.msra.mxu0 %v1176
    %1363 = vmatprep.subr.mxu0 0.0
    %1364 = vmatpush1.msra.mxu0 %v1177
    %1365 = vmatprep.subr.mxu0 0.0
    %1366 = vmatpush1.msra.mxu0 %v1178
    %1367 = vmatprep.subr.mxu0 0.0
    %1368 = vmatpush1.msra.mxu0 %v1179
    %1369 = vmatprep.subr.mxu0 0.0
    %1370 = vmatpush1.msra.mxu0 %v1180
    %1371 = vmatprep.subr.mxu0 0.0
    %1372 = vmatpush1.msra.mxu0 0.0
    %1373 = vmatprep.subr.mxu0 0.0
    %1374 = vmatpush1.msra.mxu0 0.0
    %1375 = vmatprep.subr.mxu0 0.0
    %1376 = vmatpush1.msra.mxu0 0.0
    %1377 = vmatprep.subr.mxu0 0.0
    %1378 = vmatpush1.msra.mxu0 0.0
    %1379 = vmatprep.subr.mxu0 0.0
    %1380 = vmatpush1.msra.mxu0 0.0
    %1381 = vmatprep.subr.mxu0 0.0
    %1382 = vmatpush1.msra.mxu0 0.0
    %1383 = vmatprep.subr.mxu0 0.0
    %1384 = vmatpush1.msra.mxu0 0.0
    %1385 = vmatprep.subr.mxu0 0.0
    %1386 = vmatpush1.msra.mxu0 0.0
    %1387 = vmatprep.subr.mxu0 0.0
    %1388 = vmatpush1.msra.mxu0 0.0
    %1389 = vmatprep.subr.mxu0 0.0
    %1390 = vmatpush1.msra.mxu0 0.0
    %1391 = vmatprep.subr.mxu0 0.0
    %1392 = vmatpush1.msra.mxu0 0.0
    %1393 = vmatprep.subr.mxu0 0.0
    %1394 = vmatpush1.msra.mxu0 0.0
    %1395 = vmatprep.subr.mxu0 0.0
    %1396 = vmatpush1.msra.mxu0 0.0
    %1397 = vmatprep.subr.mxu0 0.0
    %1398 = vmatpush1.msra.mxu0 0.0
    %1399 = vmatprep.subr.mxu0 0.0
    %1400 = vmatpush1.msra.mxu0 0.0
    %1401 = vmatprep.subr.mxu0 0.0
    %1402 = vmatpush1.msra.mxu0 0.0
    %1403 = vmatprep.subr.mxu0 0.0
    %1404 = vmatpush1.msra.mxu0 0.0
    %1405 = vmatprep.subr.mxu0 0.0
    %1406 = vmatpush1.msra.mxu0 0.0
    %1407 = vmatprep.subr.mxu0 0.0
    %1408 = vmatpush1.msra.mxu0 0.0
    %1409 = vmatprep.subr.mxu0 0.0
    %1410 = vmatpush1.msra.mxu0 0.0
    %1411 = vmatprep.subr.mxu0 0.0
    %1412 = vmatpush1.msra.mxu0 0.0
    %1413 = vmatprep.subr.mxu0 0.0
    %1414 = vmatpush1.msra.mxu0 0.0
    %1415 = vmatprep.subr.mxu0 0.0
    %1416 = vmatpush1.msra.mxu0 0.0
    %1417 = vmatprep.subr.mxu0 0.0
    %1418 = vmatpush1.msra.mxu0 0.0
    %1419 = vmatprep.mubr.f32.mxu0 0.0
    %1420 = vmatmul.mubr.f32.gmra.mrb[0].mxu0 %v1191
    %v1421 = vpop.f32.mrb[0].mxu0
    %v1422 = vadd.f32 %v1353, %v1421
    %v1423 = vpop.f32.mrb[0].mxu0
    %1424 = vmatprep.mubr.f32.mxu0 0.0
    %1425 = vmatmul.mubr.f32.gmra.mrb[0].mxu0 %v1191
    %v1426 = vpop.f32.mrb[0].mxu0
    %v1427 = vadd.f32 %v1353, %v1426
    %v1428 = vpop.f32.mrb[0].mxu0
    %1429 = vdwg.mxu0
    %v1430 = vadd.f32 %v831, %v1260
    %v1431 = vadd.f32 %v836, %v1265
    %v1432 = vxor.u32 %v1430, 2147483648
    %v1433 = vxor.u32 %v1431, 2147483648
    %v1434 = vmul.f32 %v1432, 1.442695
    %v1435 = vpow.pop %v1434
    %v1436 = vmul.f32 %v1433, 1.442695
    %v1437 = vpow.pop %v1436
    %v1438 = vadd.f32 %v1435, 1.0
    %v1439 = vadd.f32 %v1437, 1.0
    %v1440 = vrcp.pop %v1438
    %v1441 = vmul.f32 1.0, %v1440
    %v1442 = vrcp.pop %v1439
    %v1443 = vmul.f32 1.0, %v1442
    %v1444 = vadd.f32 %v965, %v1341
    %v1445 = vadd.f32 %v970, %v1346
    %v1446 = vxor.u32 %v1444, 2147483648
    %v1447 = vxor.u32 %v1445, 2147483648
    %v1448 = vmul.f32 %v1446, 1.442695
    %v1449 = vpow.pop %v1448
    %v1450 = vmul.f32 %v1447, 1.442695
    %v1451 = vpow.pop %v1450
    %v1452 = vadd.f32 %v1449, 1.0
    %v1453 = vadd.f32 %v1451, 1.0
    %v1454 = vrcp.pop %v1452
    %v1455 = vmul.f32 1.0, %v1454
    %v1456 = vrcp.pop %v1453
    %v1457 = vmul.f32 1.0, %v1456
    %v1458 = vmul.f32 %v1441, %v1422
    %v1459 = vmul.f32 %v1443, %v1427
    %v1460 = vadd.f32 %v1099, %v1458
    %v1461 = vadd.f32 %v1104, %v1459
    %v1462 = vtanh.pop %v1460
    %v1463 = vtanh.pop %v1461
    %v1464 = vsub.f32 1.0, %v1455
    %v1465 = vsub.f32 1.0, %v1457
    %v1466 = vmul.f32 %v1464, %v1462
    %v1467 = vmul.f32 %v1465, %v1463
    %v1468 = vmul.f32 %v1455, 0.0
    %v1469 = vmul.f32 %v1457, 0.0
    %v1470 = vadd.f32 %v1466, %v1468
    %v1471 = vadd.f32 %v1467, %v1469
    %v1473 = vsel %vm541, %v1470, 0
    %v1476 = vsel %vm541, %v1471, 0
    %1478 = vmatprep.subr.mxu0 0.0
    %1479 = vmatpush1.msra.mxu0 %v1157
    %1480 = vmatprep.subr.mxu0 0.0
    %1481 = vmatpush1.msra.mxu0 %v1158
    %1482 = vmatprep.subr.mxu0 0.0
    %1483 = vmatpush1.msra.mxu0 %v1159
    %1484 = vmatprep.subr.mxu0 0.0
    %1485 = vmatpush1.msra.mxu0 %v1160
    %1486 = vmatprep.subr.mxu0 0.0
    %1487 = vmatpush1.msra.mxu0 %v1161
    %1488 = vmatprep.subr.mxu0 0.0
    %1489 = vmatpush1.msra.mxu0 %v1162
    %1490 = vmatprep.subr.mxu0 0.0
    %1491 = vmatpush1.msra.mxu0 %v1163
    %1492 = vmatprep.subr.mxu0 0.0
    %1493 = vmatpush1.msra.mxu0 %v1164
    %1494 = vmatprep.subr.mxu0 0.0
    %1495 = vmatpush1.msra.mxu0 0.0
    %1496 = vmatprep.subr.mxu0 0.0
    %1497 = vmatpush1.msra.mxu0 0.0
    %1498 = vmatprep.subr.mxu0 0.0
    %1499 = vmatpush1.msra.mxu0 0.0
    %1500 = vmatprep.subr.mxu0 0.0
    %1501 = vmatpush1.msra.mxu0 0.0
    %1502 = vmatprep.subr.mxu0 0.0
    %1503 = vmatpush1.msra.mxu0 0.0
    %1504 = vmatprep.subr.mxu0 0.0
    %1505 = vmatpush1.msra.mxu0 0.0
    %1506 = vmatprep.subr.mxu0 0.0
    %1507 = vmatpush1.msra.mxu0 0.0
    %1508 = vmatprep.subr.mxu0 0.0
    %1509 = vmatpush1.msra.mxu0 0.0
    %1510 = vmatprep.subr.mxu0 0.0
    %1511 = vmatpush1.msra.mxu0 0.0
    %1512 = vmatprep.subr.mxu0 0.0
    %1513 = vmatpush1.msra.mxu0 0.0
    %1514 = vmatprep.subr.mxu0 0.0
    %1515 = vmatpush1.msra.mxu0 0.0
    %1516 = vmatprep.subr.mxu0 0.0
    %1517 = vmatpush1.msra.mxu0 0.0
    %1518 = vmatprep.subr.mxu0 0.0
    %1519 = vmatpush1.msra.mxu0 0.0
    %1520 = vmatprep.subr.mxu0 0.0
    %1521 = vmatpush1.msra.mxu0 0.0
    %1522 = vmatprep.subr.mxu0 0.0
    %1523 = vmatpush1.msra.mxu0 0.0
    %1524 = vmatprep.subr.mxu0 0.0
    %1525 = vmatpush1.msra.mxu0 0.0
    %1526 = vmatprep.subr.mxu0 0.0
    %1527 = vmatpush1.msra.mxu0 0.0
    %1528 = vmatprep.subr.mxu0 0.0
    %1529 = vmatpush1.msra.mxu0 0.0
    %1530 = vmatprep.subr.mxu0 0.0
    %1531 = vmatpush1.msra.mxu0 0.0
    %1532 = vmatprep.subr.mxu0 0.0
    %1533 = vmatpush1.msra.mxu0 0.0
    %1534 = vmatprep.subr.mxu0 0.0
    %1535 = vmatpush1.msra.mxu0 0.0
    %1536 = vmatprep.subr.mxu0 0.0
    %1537 = vmatpush1.msra.mxu0 0.0
    %1538 = vmatprep.subr.mxu0 0.0
    %1539 = vmatpush1.msra.mxu0 0.0
    %1540 = vmatprep.subr.mxu0 0.0
    %1541 = vmatpush1.msra.mxu0 0.0
    %1542 = vmatprep.mubr.f32.mxu0 0.0
    %1543 = vmatmul.mubr.f32.gmra.mrb[0].mxu0 %v1473
    %v1544 = vpop.f32.mrb[0].mxu0
    %v1545 = vadd.f32 %v1188, %v1544
    %v1546 = vpop.f32.mrb[0].mxu0
    %1547 = vmatprep.mubr.f32.mxu0 0.0
    %1548 = vmatmul.mubr.f32.gmra.mrb[0].mxu0 %v1476
    %v1549 = vpop.f32.mrb[0].mxu0
    %v1550 = vadd.f32 %v1188, %v1549
    %v1551 = vpop.f32.mrb[0].mxu0
    %1552 = vdwg.mxu0
    %1553 = vmatprep.subr.mxu0 0.0
    %1554 = vmatpush1.msra.mxu0 %v1165
    %1555 = vmatprep.subr.mxu0 0.0
    %1556 = vmatpush1.msra.mxu0 %v1166
    %1557 = vmatprep.subr.mxu0 0.0
    %1558 = vmatpush1.msra.mxu0 %v1167
    %1559 = vmatprep.subr.mxu0 0.0
    %1560 = vmatpush1.msra.mxu0 %v1168
    %1561 = vmatprep.subr.mxu0 0.0
    %1562 = vmatpush1.msra.mxu0 %v1169
    %1563 = vmatprep.subr.mxu0 0.0
    %1564 = vmatpush1.msra.mxu0 %v1170
    %1565 = vmatprep.subr.mxu0 0.0
    %1566 = vmatpush1.msra.mxu0 %v1171
    %1567 = vmatprep.subr.mxu0 0.0
    %1568 = vmatpush1.msra.mxu0 %v1172
    %1569 = vmatprep.subr.mxu0 0.0
    %1570 = vmatpush1.msra.mxu0 0.0
    %1571 = vmatprep.subr.mxu0 0.0
    %1572 = vmatpush1.msra.mxu0 0.0
    %1573 = vmatprep.subr.mxu0 0.0
    %1574 = vmatpush1.msra.mxu0 0.0
    %1575 = vmatprep.subr.mxu0 0.0
    %1576 = vmatpush1.msra.mxu0 0.0
    %1577 = vmatprep.subr.mxu0 0.0
    %1578 = vmatpush1.msra.mxu0 0.0
    %1579 = vmatprep.subr.mxu0 0.0
    %1580 = vmatpush1.msra.mxu0 0.0
    %1581 = vmatprep.subr.mxu0 0.0
    %1582 = vmatpush1.msra.mxu0 0.0
    %1583 = vmatprep.subr.mxu0 0.0
    %1584 = vmatpush1.msra.mxu0 0.0
    %1585 = vmatprep.subr.mxu0 0.0
    %1586 = vmatpush1.msra.mxu0 0.0
    %1587 = vmatprep.subr.mxu0 0.0
    %1588 = vmatpush1.msra.mxu0 0.0
    %1589 = vmatprep.subr.mxu0 0.0
    %1590 = vmatpush1.msra.mxu0 0.0
    %1591 = vmatprep.subr.mxu0 0.0
    %1592 = vmatpush1.msra.mxu0 0.0
    %1593 = vmatprep.subr.mxu0 0.0
    %1594 = vmatpush1.msra.mxu0 0.0
    %1595 = vmatprep.subr.mxu0 0.0
    %1596 = vmatpush1.msra.mxu0 0.0
    %1597 = vmatprep.subr.mxu0 0.0
    %1598 = vmatpush1.msra.mxu0 0.0
    %1599 = vmatprep.subr.mxu0 0.0
    %1600 = vmatpush1.msra.mxu0 0.0
    %1601 = vmatprep.subr.mxu0 0.0
    %1602 = vmatpush1.msra.mxu0 0.0
    %1603 = vmatprep.subr.mxu0 0.0
    %1604 = vmatpush1.msra.mxu0 0.0
    %1605 = vmatprep.subr.mxu0 0.0
    %1606 = vmatpush1.msra.mxu0 0.0
    %1607 = vmatprep.subr.mxu0 0.0
    %1608 = vmatpush1.msra.mxu0 0.0
    %1609 = vmatprep.subr.mxu0 0.0
    %1610 = vmatpush1.msra.mxu0 0.0
    %1611 = vmatprep.subr.mxu0 0.0
    %1612 = vmatpush1.msra.mxu0 0.0
    %1613 = vmatprep.subr.mxu0 0.0
    %1614 = vmatpush1.msra.mxu0 0.0
    %1615 = vmatprep.subr.mxu0 0.0
    %1616 = vmatpush1.msra.mxu0 0.0
    %1617 = vmatprep.mubr.f32.mxu0 0.0
    %1618 = vmatmul.mubr.f32.gmra.mrb[0].mxu0 %v1473
    %v1619 = vpop.f32.mrb[0].mxu0
    %v1620 = vadd.f32 %v1272, %v1619
    %v1621 = vpop.f32.mrb[0].mxu0
    %1622 = vmatprep.mubr.f32.mxu0 0.0
    %1623 = vmatmul.mubr.f32.gmra.mrb[0].mxu0 %v1476
    %v1624 = vpop.f32.mrb[0].mxu0
    %v1625 = vadd.f32 %v1272, %v1624
    %v1626 = vpop.f32.mrb[0].mxu0
    %1627 = vdwg.mxu0
    %1628 = vmatprep.subr.mxu0 0.0
    %1629 = vmatpush1.msra.mxu0 %v1173
    %1630 = vmatprep.subr.mxu0 0.0
    %1631 = vmatpush1.msra.mxu0 %v1174
    %1632 = vmatprep.subr.mxu0 0.0
    %1633 = vmatpush1.msra.mxu0 %v1175
    %1634 = vmatprep.subr.mxu0 0.0
    %1635 = vmatpush1.msra.mxu0 %v1176
    %1636 = vmatprep.subr.mxu0 0.0
    %1637 = vmatpush1.msra.mxu0 %v1177
    %1638 = vmatprep.subr.mxu0 0.0
    %1639 = vmatpush1.msra.mxu0 %v1178
    %1640 = vmatprep.subr.mxu0 0.0
    %1641 = vmatpush1.msra.mxu0 %v1179
    %1642 = vmatprep.subr.mxu0 0.0
    %1643 = vmatpush1.msra.mxu0 %v1180
    %1644 = vmatprep.subr.mxu0 0.0
    %1645 = vmatpush1.msra.mxu0 0.0
    %1646 = vmatprep.subr.mxu0 0.0
    %1647 = vmatpush1.msra.mxu0 0.0
    %1648 = vmatprep.subr.mxu0 0.0
    %1649 = vmatpush1.msra.mxu0 0.0
    %1650 = vmatprep.subr.mxu0 0.0
    %1651 = vmatpush1.msra.mxu0 0.0
    %1652 = vmatprep.subr.mxu0 0.0
    %1653 = vmatpush1.msra.mxu0 0.0
    %1654 = vmatprep.subr.mxu0 0.0
    %1655 = vmatpush1.msra.mxu0 0.0
    %1656 = vmatprep.subr.mxu0 0.0
    %1657 = vmatpush1.msra.mxu0 0.0
    %1658 = vmatprep.subr.mxu0 0.0
    %1659 = vmatpush1.msra.mxu0 0.0
    %1660 = vmatprep.subr.mxu0 0.0
    %1661 = vmatpush1.msra.mxu0 0.0
    %1662 = vmatprep.subr.mxu0 0.0
    %1663 = vmatpush1.msra.mxu0 0.0
    %1664 = vmatprep.subr.mxu0 0.0
    %1665 = vmatpush1.msra.mxu0 0.0
    %1666 = vmatprep.subr.mxu0 0.0
    %1667 = vmatpush1.msra.mxu0 0.0
    %1668 = vmatprep.subr.mxu0 0.0
    %1669 = vmatpush1.msra.mxu0 0.0
    %1670 = vmatprep.subr.mxu0 0.0
    %1671 = vmatpush1.msra.mxu0 0.0
    %1672 = vmatprep.subr.mxu0 0.0
    %1673 = vmatpush1.msra.mxu0 0.0
    %1674 = vmatprep.subr.mxu0 0.0
    %1675 = vmatpush1.msra.mxu0 0.0
    %1676 = vmatprep.subr.mxu0 0.0
    %1677 = vmatpush1.msra.mxu0 0.0
    %1678 = vmatprep.subr.mxu0 0.0
    %1679 = vmatpush1.msra.mxu0 0.0
    %1680 = vmatprep.subr.mxu0 0.0
    %1681 = vmatpush1.msra.mxu0 0.0
    %1682 = vmatprep.subr.mxu0 0.0
    %1683 = vmatpush1.msra.mxu0 0.0
    %1684 = vmatprep.subr.mxu0 0.0
    %1685 = vmatpush1.msra.mxu0 0.0
    %1686 = vmatprep.subr.mxu0 0.0
    %1687 = vmatpush1.msra.mxu0 0.0
    %1688 = vmatprep.subr.mxu0 0.0
    %1689 = vmatpush1.msra.mxu0 0.0
    %1690 = vmatprep.subr.mxu0 0.0
    %1691 = vmatpush1.msra.mxu0 0.0
    %1692 = vmatprep.mubr.f32.mxu0 0.0
    %1693 = vmatmul.mubr.f32.gmra.mrb[0].mxu0 %v1473
    %v1694 = vpop.f32.mrb[0].mxu0
    %v1695 = vadd.f32 %v1353, %v1694
    %v1696 = vpop.f32.mrb[0].mxu0
    %1697 = vmatprep.mubr.f32.mxu0 0.0
    %1698 = vmatmul.mubr.f32.gmra.mrb[0].mxu0 %v1476
    %v1699 = vpop.f32.mrb[0].mxu0
    %v1700 = vadd.f32 %v1353, %v1699
    %v1701 = vpop.f32.mrb[0].mxu0
    %1702 = vdwg.mxu0
    %v1703 = vadd.f32 %v841, %v1545
    %v1704 = vadd.f32 %v846, %v1550
    %v1705 = vxor.u32 %v1703, 2147483648
    %v1706 = vxor.u32 %v1704, 2147483648
    %v1707 = vmul.f32 %v1705, 1.442695
    %v1708 = vpow.pop %v1707
    %v1709 = vmul.f32 %v1706, 1.442695
    %v1710 = vpow.pop %v1709
    %v1711 = vadd.f32 %v1708, 1.0
    %v1712 = vadd.f32 %v1710, 1.0
    %v1713 = vrcp.pop %v1711
    %v1714 = vmul.f32 1.0, %v1713
    %v1715 = vrcp.pop %v1712
    %v1716 = vmul.f32 1.0, %v1715
    %v1717 = vadd.f32 %v975, %v1620
    %v1718 = vadd.f32 %v980, %v1625
    %v1719 = vxor.u32 %v1717, 2147483648
    %v1720 = vxor.u32 %v1718, 2147483648
    %v1721 = vmul.f32 %v1719, 1.442695
    %v1722 = vpow.pop %v1721
    %v1723 = vmul.f32 %v1720, 1.442695
    %v1724 = vpow.pop %v1723
    %v1725 = vadd.f32 %v1722, 1.0
    %v1726 = vadd.f32 %v1724, 1.0
    %v1727 = vrcp.pop %v1725
    %v1728 = vmul.f32 1.0, %v1727
    %v1729 = vrcp.pop %v1726
    %v1730 = vmul.f32 1.0, %v1729
    %v1731 = vmul.f32 %v1714, %v1695
    %v1732 = vmul.f32 %v1716, %v1700
    %v1733 = vadd.f32 %v1109, %v1731
    %v1734 = vadd.f32 %v1114, %v1732
    %v1735 = vtanh.pop %v1733
    %v1736 = vtanh.pop %v1734
    %v1737 = vsub.f32 1.0, %v1728
    %v1738 = vsub.f32 1.0, %v1730
    %v1739 = vmul.f32 %v1737, %v1735
    %v1740 = vmul.f32 %v1738, %v1736
    %v1741 = vmul.f32 %v1728, %v1470
    %v1742 = vmul.f32 %v1730, %v1471
    %v1743 = vadd.f32 %v1739, %v1741
    %v1744 = vadd.f32 %v1740, %v1742
    %v1746 = vsel %vm541, %v1743, 0
    %v1749 = vsel %vm541, %v1744, 0
    %1751 = vmatprep.subr.mxu0 0.0
    %1752 = vmatpush1.msra.mxu0 %v1157
    %1753 = vmatprep.subr.mxu0 0.0
    %1754 = vmatpush1.msra.mxu0 %v1158
    %1755 = vmatprep.subr.mxu0 0.0
    %1756 = vmatpush1.msra.mxu0 %v1159
    %1757 = vmatprep.subr.mxu0 0.0
    %1758 = vmatpush1.msra.mxu0 %v1160
    %1759 = vmatprep.subr.mxu0 0.0
    %1760 = vmatpush1.msra.mxu0 %v1161
    %1761 = vmatprep.subr.mxu0 0.0
    %1762 = vmatpush1.msra.mxu0 %v1162
    %1763 = vmatprep.subr.mxu0 0.0
    %1764 = vmatpush1.msra.mxu0 %v1163
    %1765 = vmatprep.subr.mxu0 0.0
    %1766 = vmatpush1.msra.mxu0 %v1164
    %1767 = vmatprep.subr.mxu0 0.0
    %1768 = vmatpush1.msra.mxu0 0.0
    %1769 = vmatprep.subr.mxu0 0.0
    %1770 = vmatpush1.msra.mxu0 0.0
    %1771 = vmatprep.subr.mxu0 0.0
    %1772 = vmatpush1.msra.mxu0 0.0
    %1773 = vmatprep.subr.mxu0 0.0
    %1774 = vmatpush1.msra.mxu0 0.0
    %1775 = vmatprep.subr.mxu0 0.0
    %1776 = vmatpush1.msra.mxu0 0.0
    %1777 = vmatprep.subr.mxu0 0.0
    %1778 = vmatpush1.msra.mxu0 0.0
    %1779 = vmatprep.subr.mxu0 0.0
    %1780 = vmatpush1.msra.mxu0 0.0
    %1781 = vmatprep.subr.mxu0 0.0
    %1782 = vmatpush1.msra.mxu0 0.0
    %1783 = vmatprep.subr.mxu0 0.0
    %1784 = vmatpush1.msra.mxu0 0.0
    %1785 = vmatprep.subr.mxu0 0.0
    %1786 = vmatpush1.msra.mxu0 0.0
    %1787 = vmatprep.subr.mxu0 0.0
    %1788 = vmatpush1.msra.mxu0 0.0
    %1789 = vmatprep.subr.mxu0 0.0
    %1790 = vmatpush1.msra.mxu0 0.0
    %1791 = vmatprep.subr.mxu0 0.0
    %1792 = vmatpush1.msra.mxu0 0.0
    %1793 = vmatprep.subr.mxu0 0.0
    %1794 = vmatpush1.msra.mxu0 0.0
    %1795 = vmatprep.subr.mxu0 0.0
    %1796 = vmatpush1.msra.mxu0 0.0
    %1797 = vmatprep.subr.mxu0 0.0
    %1798 = vmatpush1.msra.mxu0 0.0
    %1799 = vmatprep.subr.mxu0 0.0
    %1800 = vmatpush1.msra.mxu0 0.0
    %1801 = vmatprep.subr.mxu0 0.0
    %1802 = vmatpush1.msra.mxu0 0.0
    %1803 = vmatprep.subr.mxu0 0.0
    %1804 = vmatpush1.msra.mxu0 0.0
    %1805 = vmatprep.subr.mxu0 0.0
    %1806 = vmatpush1.msra.mxu0 0.0
    %1807 = vmatprep.subr.mxu0 0.0
    %1808 = vmatpush1.msra.mxu0 0.0
    %1809 = vmatprep.subr.mxu0 0.0
    %1810 = vmatpush1.msra.mxu0 0.0
    %1811 = vmatprep.subr.mxu0 0.0
    %1812 = vmatpush1.msra.mxu0 0.0
    %1813 = vmatprep.subr.mxu0 0.0
    %1814 = vmatpush1.msra.mxu0 0.0
    %1815 = vmatprep.mubr.f32.mxu0 0.0
    %1816 = vmatmul.mubr.f32.gmra.mrb[0].mxu0 %v1746
    %v1817 = vpop.f32.mrb[0].mxu0
    %v1818 = vadd.f32 %v1188, %v1817
    %v1819 = vpop.f32.mrb[0].mxu0
    %1820 = vmatprep.mubr.f32.mxu0 0.0
    %1821 = vmatmul.mubr.f32.gmra.mrb[0].mxu0 %v1749
    %v1822 = vpop.f32.mrb[0].mxu0
    %v1823 = vadd.f32 %v1188, %v1822
    %v1824 = vpop.f32.mrb[0].mxu0
    %1825 = vdwg.mxu0
    %1826 = vmatprep.subr.mxu0 0.0
    %1827 = vmatpush1.msra.mxu0 %v1165
    %1828 = vmatprep.subr.mxu0 0.0
    %1829 = vmatpush1.msra.mxu0 %v1166
    %1830 = vmatprep.subr.mxu0 0.0
    %1831 = vmatpush1.msra.mxu0 %v1167
    %1832 = vmatprep.subr.mxu0 0.0
    %1833 = vmatpush1.msra.mxu0 %v1168
    %1834 = vmatprep.subr.mxu0 0.0
    %1835 = vmatpush1.msra.mxu0 %v1169
    %1836 = vmatprep.subr.mxu0 0.0
    %1837 = vmatpush1.msra.mxu0 %v1170
    %1838 = vmatprep.subr.mxu0 0.0
    %1839 = vmatpush1.msra.mxu0 %v1171
    %1840 = vmatprep.subr.mxu0 0.0
    %1841 = vmatpush1.msra.mxu0 %v1172
    %1842 = vmatprep.subr.mxu0 0.0
    %1843 = vmatpush1.msra.mxu0 0.0
    %1844 = vmatprep.subr.mxu0 0.0
    %1845 = vmatpush1.msra.mxu0 0.0
    %1846 = vmatprep.subr.mxu0 0.0
    %1847 = vmatpush1.msra.mxu0 0.0
    %1848 = vmatprep.subr.mxu0 0.0
    %1849 = vmatpush1.msra.mxu0 0.0
    %1850 = vmatprep.subr.mxu0 0.0
    %1851 = vmatpush1.msra.mxu0 0.0
    %1852 = vmatprep.subr.mxu0 0.0
    %1853 = vmatpush1.msra.mxu0 0.0
    %1854 = vmatprep.subr.mxu0 0.0
    %1855 = vmatpush1.msra.mxu0 0.0
    %1856 = vmatprep.subr.mxu0 0.0
    %1857 = vmatpush1.msra.mxu0 0.0
    %1858 = vmatprep.subr.mxu0 0.0
    %1859 = vmatpush1.msra.mxu0 0.0
    %1860 = vmatprep.subr.mxu0 0.0
    %1861 = vmatpush1.msra.mxu0 0.0
    %1862 = vmatprep.subr.mxu0 0.0
    %1863 = vmatpush1.msra.mxu0 0.0
    %1864 = vmatprep.subr.mxu0 0.0
    %1865 = vmatpush1.msra.mxu0 0.0
    %1866 = vmatprep.subr.mxu0 0.0
    %1867 = vmatpush1.msra.mxu0 0.0
    %1868 = vmatprep.subr.mxu0 0.0
    %1869 = vmatpush1.msra.mxu0 0.0
    %1870 = vmatprep.subr.mxu0 0.0
    %1871 = vmatpush1.msra.mxu0 0.0
    %1872 = vmatprep.subr.mxu0 0.0
    %1873 = vmatpush1.msra.mxu0 0.0
    %1874 = vmatprep.subr.mxu0 0.0
    %1875 = vmatpush1.msra.mxu0 0.0
    %1876 = vmatprep.subr.mxu0 0.0
    %1877 = vmatpush1.msra.mxu0 0.0
    %1878 = vmatprep.subr.mxu0 0.0
    %1879 = vmatpush1.msra.mxu0 0.0
    %1880 = vmatprep.subr.mxu0 0.0
    %1881 = vmatpush1.msra.mxu0 0.0
    %1882 = vmatprep.subr.mxu0 0.0
    %1883 = vmatpush1.msra.mxu0 0.0
    %1884 = vmatprep.subr.mxu0 0.0
    %1885 = vmatpush1.msra.mxu0 0.0
    %1886 = vmatprep.subr.mxu0 0.0
    %1887 = vmatpush1.msra.mxu0 0.0
    %1888 = vmatprep.subr.mxu0 0.0
    %1889 = vmatpush1.msra.mxu0 0.0
    %1890 = vmatprep.mubr.f32.mxu0 0.0
    %1891 = vmatmul.mubr.f32.gmra.mrb[0].mxu0 %v1746
    %v1892 = vpop.f32.mrb[0].mxu0
    %v1893 = vadd.f32 %v1272, %v1892
    %v1894 = vpop.f32.mrb[0].mxu0
    %1895 = vmatprep.mubr.f32.mxu0 0.0
    %1896 = vmatmul.mubr.f32.gmra.mrb[0].mxu0 %v1749
    %v1897 = vpop.f32.mrb[0].mxu0
    %v1898 = vadd.f32 %v1272, %v1897
    %v1899 = vpop.f32.mrb[0].mxu0
    %1900 = vdwg.mxu0
    %1901 = vmatprep.subr.mxu0 0.0
    %1902 = vmatpush1.msra.mxu0 %v1173
    %1903 = vmatprep.subr.mxu0 0.0
    %1904 = vmatpush1.msra.mxu0 %v1174
    %1905 = vmatprep.subr.mxu0 0.0
    %1906 = vmatpush1.msra.mxu0 %v1175
    %1907 = vmatprep.subr.mxu0 0.0
    %1908 = vmatpush1.msra.mxu0 %v1176
    %1909 = vmatprep.subr.mxu0 0.0
    %1910 = vmatpush1.msra.mxu0 %v1177
    %1911 = vmatprep.subr.mxu0 0.0
    %1912 = vmatpush1.msra.mxu0 %v1178
    %1913 = vmatprep.subr.mxu0 0.0
    %1914 = vmatpush1.msra.mxu0 %v1179
    %1915 = vmatprep.subr.mxu0 0.0
    %1916 = vmatpush1.msra.mxu0 %v1180
    %1917 = vmatprep.subr.mxu0 0.0
    %1918 = vmatpush1.msra.mxu0 0.0
    %1919 = vmatprep.subr.mxu0 0.0
    %1920 = vmatpush1.msra.mxu0 0.0
    %1921 = vmatprep.subr.mxu0 0.0
    %1922 = vmatpush1.msra.mxu0 0.0
    %1923 = vmatprep.subr.mxu0 0.0
    %1924 = vmatpush1.msra.mxu0 0.0
    %1925 = vmatprep.subr.mxu0 0.0
    %1926 = vmatpush1.msra.mxu0 0.0
    %1927 = vmatprep.subr.mxu0 0.0
    %1928 = vmatpush1.msra.mxu0 0.0
    %1929 = vmatprep.subr.mxu0 0.0
    %1930 = vmatpush1.msra.mxu0 0.0
    %1931 = vmatprep.subr.mxu0 0.0
    %1932 = vmatpush1.msra.mxu0 0.0
    %1933 = vmatprep.subr.mxu0 0.0
    %1934 = vmatpush1.msra.mxu0 0.0
    %1935 = vmatprep.subr.mxu0 0.0
    %1936 = vmatpush1.msra.mxu0 0.0
    %1937 = vmatprep.subr.mxu0 0.0
    %1938 = vmatpush1.msra.mxu0 0.0
    %1939 = vmatprep.subr.mxu0 0.0
    %1940 = vmatpush1.msra.mxu0 0.0
    %1941 = vmatprep.subr.mxu0 0.0
    %1942 = vmatpush1.msra.mxu0 0.0
    %1943 = vmatprep.subr.mxu0 0.0
    %1944 = vmatpush1.msra.mxu0 0.0
    %1945 = vmatprep.subr.mxu0 0.0
    %1946 = vmatpush1.msra.mxu0 0.0
    %1947 = vmatprep.subr.mxu0 0.0
    %1948 = vmatpush1.msra.mxu0 0.0
    %1949 = vmatprep.subr.mxu0 0.0
    %1950 = vmatpush1.msra.mxu0 0.0
    %1951 = vmatprep.subr.mxu0 0.0
    %1952 = vmatpush1.msra.mxu0 0.0
    %1953 = vmatprep.subr.mxu0 0.0
    %1954 = vmatpush1.msra.mxu0 0.0
    %1955 = vmatprep.subr.mxu0 0.0
    %1956 = vmatpush1.msra.mxu0 0.0
    %1957 = vmatprep.subr.mxu0 0.0
    %1958 = vmatpush1.msra.mxu0 0.0
    %1959 = vmatprep.subr.mxu0 0.0
    %1960 = vmatpush1.msra.mxu0 0.0
    %1961 = vmatprep.subr.mxu0 0.0
    %1962 = vmatpush1.msra.mxu0 0.0
    %1963 = vmatprep.subr.mxu0 0.0
    %1964 = vmatpush1.msra.mxu0 0.0
    %1965 = vmatprep.mubr.f32.mxu0 0.0
    %1966 = vmatmul.mubr.f32.gmra.mrb[0].mxu0 %v1746
    %v1967 = vpop.f32.mrb[0].mxu0
    %v1968 = vadd.f32 %v1353, %v1967
    %v1969 = vpop.f32.mrb[0].mxu0
    %1970 = vmatprep.mubr.f32.mxu0 0.0
    %1971 = vmatmul.mubr.f32.gmra.mrb[0].mxu0 %v1749
    %v1972 = vpop.f32.mrb[0].mxu0
    %v1973 = vadd.f32 %v1353, %v1972
    %v1974 = vpop.f32.mrb[0].mxu0
    %1975 = vdwg.mxu0
    %v1976 = vadd.f32 %v851, %v1818
    %v1977 = vadd.f32 %v856, %v1823
    %v1978 = vxor.u32 %v1976, 2147483648
    %v1979 = vxor.u32 %v1977, 2147483648
    %v1980 = vmul.f32 %v1978, 1.442695
    %v1981 = vpow.pop %v1980
    %v1982 = vmul.f32 %v1979, 1.442695
    %v1983 = vpow.pop %v1982
    %v1984 = vadd.f32 %v1981, 1.0
    %v1985 = vadd.f32 %v1983, 1.0
    %v1986 = vrcp.pop %v1984
    %v1987 = vmul.f32 1.0, %v1986
    %v1988 = vrcp.pop %v1985
    %v1989 = vmul.f32 1.0, %v1988
    %v1990 = vadd.f32 %v985, %v1893
    %v1991 = vadd.f32 %v990, %v1898
    %v1992 = vxor.u32 %v1990, 2147483648
    %v1993 = vxor.u32 %v1991, 2147483648
    %v1994 = vmul.f32 %v1992, 1.442695
    %v1995 = vpow.pop %v1994
    %v1996 = vmul.f32 %v1993, 1.442695
    %v1997 = vpow.pop %v1996
    %v1998 = vadd.f32 %v1995, 1.0
    %v1999 = vadd.f32 %v1997, 1.0
    %v2000 = vrcp.pop %v1998
    %v2001 = vmul.f32 1.0, %v2000
    %v2002 = vrcp.pop %v1999
    %v2003 = vmul.f32 1.0, %v2002
    %v2004 = vmul.f32 %v1987, %v1968
    %v2005 = vmul.f32 %v1989, %v1973
    %v2006 = vadd.f32 %v1119, %v2004
    %v2007 = vadd.f32 %v1124, %v2005
    %v2008 = vtanh.pop %v2006
    %v2009 = vtanh.pop %v2007
    %v2010 = vsub.f32 1.0, %v2001
    %v2011 = vsub.f32 1.0, %v2003
    %v2012 = vmul.f32 %v2010, %v2008
    %v2013 = vmul.f32 %v2011, %v2009
    %v2014 = vmul.f32 %v2001, %v1743
    %v2015 = vmul.f32 %v2003, %v1744
    %v2016 = vadd.f32 %v2012, %v2014
    %v2017 = vadd.f32 %v2013, %v2015
    %v2019 = vsel %vm541, %v2016, 0
    %v2022 = vsel %vm541, %v2017, 0
    %2024 = vmatprep.subr.mxu0 0.0
    %2025 = vmatpush1.msra.mxu0 %v1157
    %2026 = vmatprep.subr.mxu0 0.0
    %2027 = vmatpush1.msra.mxu0 %v1158
    %2028 = vmatprep.subr.mxu0 0.0
    %2029 = vmatpush1.msra.mxu0 %v1159
    %2030 = vmatprep.subr.mxu0 0.0
    %2031 = vmatpush1.msra.mxu0 %v1160
    %2032 = vmatprep.subr.mxu0 0.0
    %2033 = vmatpush1.msra.mxu0 %v1161
    %2034 = vmatprep.subr.mxu0 0.0
    %2035 = vmatpush1.msra.mxu0 %v1162
    %2036 = vmatprep.subr.mxu0 0.0
    %2037 = vmatpush1.msra.mxu0 %v1163
    %2038 = vmatprep.subr.mxu0 0.0
    %2039 = vmatpush1.msra.mxu0 %v1164
    %2040 = vmatprep.subr.mxu0 0.0
    %2041 = vmatpush1.msra.mxu0 0.0
    %2042 = vmatprep.subr.mxu0 0.0
    %2043 = vmatpush1.msra.mxu0 0.0
    %2044 = vmatprep.subr.mxu0 0.0
    %2045 = vmatpush1.msra.mxu0 0.0
    %2046 = vmatprep.subr.mxu0 0.0
    %2047 = vmatpush1.msra.mxu0 0.0
    %2048 = vmatprep.subr.mxu0 0.0
    %2049 = vmatpush1.msra.mxu0 0.0
    %2050 = vmatprep.subr.mxu0 0.0
    %2051 = vmatpush1.msra.mxu0 0.0
    %2052 = vmatprep.subr.mxu0 0.0
    %2053 = vmatpush1.msra.mxu0 0.0
    %2054 = vmatprep.subr.mxu0 0.0
    %2055 = vmatpush1.msra.mxu0 0.0
    %2056 = vmatprep.subr.mxu0 0.0
    %2057 = vmatpush1.msra.mxu0 0.0
    %2058 = vmatprep.subr.mxu0 0.0
    %2059 = vmatpush1.msra.mxu0 0.0
    %2060 = vmatprep.subr.mxu0 0.0
    %2061 = vmatpush1.msra.mxu0 0.0
    %2062 = vmatprep.subr.mxu0 0.0
    %2063 = vmatpush1.msra.mxu0 0.0
    %2064 = vmatprep.subr.mxu0 0.0
    %2065 = vmatpush1.msra.mxu0 0.0
    %2066 = vmatprep.subr.mxu0 0.0
    %2067 = vmatpush1.msra.mxu0 0.0
    %2068 = vmatprep.subr.mxu0 0.0
    %2069 = vmatpush1.msra.mxu0 0.0
    %2070 = vmatprep.subr.mxu0 0.0
    %2071 = vmatpush1.msra.mxu0 0.0
    %2072 = vmatprep.subr.mxu0 0.0
    %2073 = vmatpush1.msra.mxu0 0.0
    %2074 = vmatprep.subr.mxu0 0.0
    %2075 = vmatpush1.msra.mxu0 0.0
    %2076 = vmatprep.subr.mxu0 0.0
    %2077 = vmatpush1.msra.mxu0 0.0
    %2078 = vmatprep.subr.mxu0 0.0
    %2079 = vmatpush1.msra.mxu0 0.0
    %2080 = vmatprep.subr.mxu0 0.0
    %2081 = vmatpush1.msra.mxu0 0.0
    %2082 = vmatprep.subr.mxu0 0.0
    %2083 = vmatpush1.msra.mxu0 0.0
    %2084 = vmatprep.subr.mxu0 0.0
    %2085 = vmatpush1.msra.mxu0 0.0
    %2086 = vmatprep.subr.mxu0 0.0
    %2087 = vmatpush1.msra.mxu0 0.0
    %2088 = vmatprep.mubr.f32.mxu0 0.0
    %2089 = vmatmul.mubr.f32.gmra.mrb[0].mxu0 %v2019
    %v2090 = vpop.f32.mrb[0].mxu0
    %v2091 = vadd.f32 %v1188, %v2090
    %v2092 = vpop.f32.mrb[0].mxu0
    %2093 = vmatprep.mubr.f32.mxu0 0.0
    %2094 = vmatmul.mubr.f32.gmra.mrb[0].mxu0 %v2022
    %v2095 = vpop.f32.mrb[0].mxu0
    %v2096 = vadd.f32 %v1188, %v2095
    %v2097 = vpop.f32.mrb[0].mxu0
    %2098 = vdwg.mxu0
    %2099 = vmatprep.subr.mxu0 0.0
    %2100 = vmatpush1.msra.mxu0 %v1165
    %2101 = vmatprep.subr.mxu0 0.0
    %2102 = vmatpush1.msra.mxu0 %v1166
    %2103 = vmatprep.subr.mxu0 0.0
    %2104 = vmatpush1.msra.mxu0 %v1167
    %2105 = vmatprep.subr.mxu0 0.0
    %2106 = vmatpush1.msra.mxu0 %v1168
    %2107 = vmatprep.subr.mxu0 0.0
    %2108 = vmatpush1.msra.mxu0 %v1169
    %2109 = vmatprep.subr.mxu0 0.0
    %2110 = vmatpush1.msra.mxu0 %v1170
    %2111 = vmatprep.subr.mxu0 0.0
    %2112 = vmatpush1.msra.mxu0 %v1171
    %2113 = vmatprep.subr.mxu0 0.0
    %2114 = vmatpush1.msra.mxu0 %v1172
    %2115 = vmatprep.subr.mxu0 0.0
    %2116 = vmatpush1.msra.mxu0 0.0
    %2117 = vmatprep.subr.mxu0 0.0
    %2118 = vmatpush1.msra.mxu0 0.0
    %2119 = vmatprep.subr.mxu0 0.0
    %2120 = vmatpush1.msra.mxu0 0.0
    %2121 = vmatprep.subr.mxu0 0.0
    %2122 = vmatpush1.msra.mxu0 0.0
    %2123 = vmatprep.subr.mxu0 0.0
    %2124 = vmatpush1.msra.mxu0 0.0
    %2125 = vmatprep.subr.mxu0 0.0
    %2126 = vmatpush1.msra.mxu0 0.0
    %2127 = vmatprep.subr.mxu0 0.0
    %2128 = vmatpush1.msra.mxu0 0.0
    %2129 = vmatprep.subr.mxu0 0.0
    %2130 = vmatpush1.msra.mxu0 0.0
    %2131 = vmatprep.subr.mxu0 0.0
    %2132 = vmatpush1.msra.mxu0 0.0
    %2133 = vmatprep.subr.mxu0 0.0
    %2134 = vmatpush1.msra.mxu0 0.0
    %2135 = vmatprep.subr.mxu0 0.0
    %2136 = vmatpush1.msra.mxu0 0.0
    %2137 = vmatprep.subr.mxu0 0.0
    %2138 = vmatpush1.msra.mxu0 0.0
    %2139 = vmatprep.subr.mxu0 0.0
    %2140 = vmatpush1.msra.mxu0 0.0
    %2141 = vmatprep.subr.mxu0 0.0
    %2142 = vmatpush1.msra.mxu0 0.0
    %2143 = vmatprep.subr.mxu0 0.0
    %2144 = vmatpush1.msra.mxu0 0.0
    %2145 = vmatprep.subr.mxu0 0.0
    %2146 = vmatpush1.msra.mxu0 0.0
    %2147 = vmatprep.subr.mxu0 0.0
    %2148 = vmatpush1.msra.mxu0 0.0
    %2149 = vmatprep.subr.mxu0 0.0
    %2150 = vmatpush1.msra.mxu0 0.0
    %2151 = vmatprep.subr.mxu0 0.0
    %2152 = vmatpush1.msra.mxu0 0.0
    %2153 = vmatprep.subr.mxu0 0.0
    %2154 = vmatpush1.msra.mxu0 0.0
    %2155 = vmatprep.subr.mxu0 0.0
    %2156 = vmatpush1.msra.mxu0 0.0
    %2157 = vmatprep.subr.mxu0 0.0
    %2158 = vmatpush1.msra.mxu0 0.0
    %2159 = vmatprep.subr.mxu0 0.0
    %2160 = vmatpush1.msra.mxu0 0.0
    %2161 = vmatprep.subr.mxu0 0.0
    %2162 = vmatpush1.msra.mxu0 0.0
    %2163 = vmatprep.mubr.f32.mxu0 0.0
    %2164 = vmatmul.mubr.f32.gmra.mrb[0].mxu0 %v2019
    %v2165 = vpop.f32.mrb[0].mxu0
    %v2166 = vadd.f32 %v1272, %v2165
    %v2167 = vpop.f32.mrb[0].mxu0
    %2168 = vmatprep.mubr.f32.mxu0 0.0
    %2169 = vmatmul.mubr.f32.gmra.mrb[0].mxu0 %v2022
    %v2170 = vpop.f32.mrb[0].mxu0
    %v2171 = vadd.f32 %v1272, %v2170
    %v2172 = vpop.f32.mrb[0].mxu0
    %2173 = vdwg.mxu0
    %2174 = vmatprep.subr.mxu0 0.0
    %2175 = vmatpush1.msra.mxu0 %v1173
    %2176 = vmatprep.subr.mxu0 0.0
    %2177 = vmatpush1.msra.mxu0 %v1174
    %2178 = vmatprep.subr.mxu0 0.0
    %2179 = vmatpush1.msra.mxu0 %v1175
    %2180 = vmatprep.subr.mxu0 0.0
    %2181 = vmatpush1.msra.mxu0 %v1176
    %2182 = vmatprep.subr.mxu0 0.0
    %2183 = vmatpush1.msra.mxu0 %v1177
    %2184 = vmatprep.subr.mxu0 0.0
    %2185 = vmatpush1.msra.mxu0 %v1178
    %2186 = vmatprep.subr.mxu0 0.0
    %2187 = vmatpush1.msra.mxu0 %v1179
    %2188 = vmatprep.subr.mxu0 0.0
    %2189 = vmatpush1.msra.mxu0 %v1180
    %2190 = vmatprep.subr.mxu0 0.0
    %2191 = vmatpush1.msra.mxu0 0.0
    %2192 = vmatprep.subr.mxu0 0.0
    %2193 = vmatpush1.msra.mxu0 0.0
    %2194 = vmatprep.subr.mxu0 0.0
    %2195 = vmatpush1.msra.mxu0 0.0
    %2196 = vmatprep.subr.mxu0 0.0
    %2197 = vmatpush1.msra.mxu0 0.0
    %2198 = vmatprep.subr.mxu0 0.0
    %2199 = vmatpush1.msra.mxu0 0.0
    %2200 = vmatprep.subr.mxu0 0.0
    %2201 = vmatpush1.msra.mxu0 0.0
    %2202 = vmatprep.subr.mxu0 0.0
    %2203 = vmatpush1.msra.mxu0 0.0
    %2204 = vmatprep.subr.mxu0 0.0
    %2205 = vmatpush1.msra.mxu0 0.0
    %2206 = vmatprep.subr.mxu0 0.0
    %2207 = vmatpush1.msra.mxu0 0.0
    %2208 = vmatprep.subr.mxu0 0.0
    %2209 = vmatpush1.msra.mxu0 0.0
    %2210 = vmatprep.subr.mxu0 0.0
    %2211 = vmatpush1.msra.mxu0 0.0
    %2212 = vmatprep.subr.mxu0 0.0
    %2213 = vmatpush1.msra.mxu0 0.0
    %2214 = vmatprep.subr.mxu0 0.0
    %2215 = vmatpush1.msra.mxu0 0.0
    %2216 = vmatprep.subr.mxu0 0.0
    %2217 = vmatpush1.msra.mxu0 0.0
    %2218 = vmatprep.subr.mxu0 0.0
    %2219 = vmatpush1.msra.mxu0 0.0
    %2220 = vmatprep.subr.mxu0 0.0
    %2221 = vmatpush1.msra.mxu0 0.0
    %2222 = vmatprep.subr.mxu0 0.0
    %2223 = vmatpush1.msra.mxu0 0.0
    %2224 = vmatprep.subr.mxu0 0.0
    %2225 = vmatpush1.msra.mxu0 0.0
    %2226 = vmatprep.subr.mxu0 0.0
    %2227 = vmatpush1.msra.mxu0 0.0
    %2228 = vmatprep.subr.mxu0 0.0
    %2229 = vmatpush1.msra.mxu0 0.0
    %2230 = vmatprep.subr.mxu0 0.0
    %2231 = vmatpush1.msra.mxu0 0.0
    %2232 = vmatprep.subr.mxu0 0.0
    %2233 = vmatpush1.msra.mxu0 0.0
    %2234 = vmatprep.subr.mxu0 0.0
    %2235 = vmatpush1.msra.mxu0 0.0
    %2236 = vmatprep.subr.mxu0 0.0
    %2237 = vmatpush1.msra.mxu0 0.0
    %2238 = vmatprep.mubr.f32.mxu0 0.0
    %2239 = vmatmul.mubr.f32.gmra.mrb[0].mxu0 %v2019
    %v2240 = vpop.f32.mrb[0].mxu0
    %v2241 = vadd.f32 %v1353, %v2240
    %v2242 = vpop.f32.mrb[0].mxu0
    %2243 = vmatprep.mubr.f32.mxu0 0.0
    %2244 = vmatmul.mubr.f32.gmra.mrb[0].mxu0 %v2022
    %v2245 = vpop.f32.mrb[0].mxu0
    %v2246 = vadd.f32 %v1353, %v2245
    %v2247 = vpop.f32.mrb[0].mxu0
    %2248 = vdwg.mxu0
    %v2249 = vadd.f32 %v861, %v2091
    %v2250 = vadd.f32 %v866, %v2096
    %v2251 = vxor.u32 %v2249, 2147483648
    %v2252 = vxor.u32 %v2250, 2147483648
    %v2253 = vmul.f32 %v2251, 1.442695
    %v2254 = vpow.pop %v2253
    %v2255 = vmul.f32 %v2252, 1.442695
    %v2256 = vpow.pop %v2255
    %v2257 = vadd.f32 %v2254, 1.0
    %v2258 = vadd.f32 %v2256, 1.0
    %v2259 = vrcp.pop %v2257
    %v2260 = vmul.f32 1.0, %v2259
    %v2261 = vrcp.pop %v2258
    %v2262 = vmul.f32 1.0, %v2261
    %v2263 = vadd.f32 %v995, %v2166
    %v2264 = vadd.f32 %v1000, %v2171
    %v2265 = vxor.u32 %v2263, 2147483648
    %v2266 = vxor.u32 %v2264, 2147483648
    %v2267 = vmul.f32 %v2265, 1.442695
    %v2268 = vpow.pop %v2267
    %v2269 = vmul.f32 %v2266, 1.442695
    %v2270 = vpow.pop %v2269
    %v2271 = vadd.f32 %v2268, 1.0
    %v2272 = vadd.f32 %v2270, 1.0
    %v2273 = vrcp.pop %v2271
    %v2274 = vmul.f32 1.0, %v2273
    %v2275 = vrcp.pop %v2272
    %v2276 = vmul.f32 1.0, %v2275
    %v2277 = vmul.f32 %v2260, %v2241
    %v2278 = vmul.f32 %v2262, %v2246
    %v2279 = vadd.f32 %v1129, %v2277
    %v2280 = vadd.f32 %v1134, %v2278
    %v2281 = vtanh.pop %v2279
    %v2282 = vtanh.pop %v2280
    %v2283 = vsub.f32 1.0, %v2274
    %v2284 = vsub.f32 1.0, %v2276
    %v2285 = vmul.f32 %v2283, %v2281
    %v2286 = vmul.f32 %v2284, %v2282
    %v2287 = vmul.f32 %v2274, %v2016
    %v2288 = vmul.f32 %v2276, %v2017
    %v2289 = vadd.f32 %v2285, %v2287
    %v2290 = vadd.f32 %v2286, %v2288
    %v2292 = vsel %vm541, %v2289, 0
    %v2295 = vsel %vm541, %v2290, 0
    %2297 = vmatprep.subr.mxu0 0.0
    %2298 = vmatpush1.msra.mxu0 %v1157
    %2299 = vmatprep.subr.mxu0 0.0
    %2300 = vmatpush1.msra.mxu0 %v1158
    %2301 = vmatprep.subr.mxu0 0.0
    %2302 = vmatpush1.msra.mxu0 %v1159
    %2303 = vmatprep.subr.mxu0 0.0
    %2304 = vmatpush1.msra.mxu0 %v1160
    %2305 = vmatprep.subr.mxu0 0.0
    %2306 = vmatpush1.msra.mxu0 %v1161
    %2307 = vmatprep.subr.mxu0 0.0
    %2308 = vmatpush1.msra.mxu0 %v1162
    %2309 = vmatprep.subr.mxu0 0.0
    %2310 = vmatpush1.msra.mxu0 %v1163
    %2311 = vmatprep.subr.mxu0 0.0
    %2312 = vmatpush1.msra.mxu0 %v1164
    %2313 = vmatprep.subr.mxu0 0.0
    %2314 = vmatpush1.msra.mxu0 0.0
    %2315 = vmatprep.subr.mxu0 0.0
    %2316 = vmatpush1.msra.mxu0 0.0
    %2317 = vmatprep.subr.mxu0 0.0
    %2318 = vmatpush1.msra.mxu0 0.0
    %2319 = vmatprep.subr.mxu0 0.0
    %2320 = vmatpush1.msra.mxu0 0.0
    %2321 = vmatprep.subr.mxu0 0.0
    %2322 = vmatpush1.msra.mxu0 0.0
    %2323 = vmatprep.subr.mxu0 0.0
    %2324 = vmatpush1.msra.mxu0 0.0
    %2325 = vmatprep.subr.mxu0 0.0
    %2326 = vmatpush1.msra.mxu0 0.0
    %2327 = vmatprep.subr.mxu0 0.0
    %2328 = vmatpush1.msra.mxu0 0.0
    %2329 = vmatprep.subr.mxu0 0.0
    %2330 = vmatpush1.msra.mxu0 0.0
    %2331 = vmatprep.subr.mxu0 0.0
    %2332 = vmatpush1.msra.mxu0 0.0
    %2333 = vmatprep.subr.mxu0 0.0
    %2334 = vmatpush1.msra.mxu0 0.0
    %2335 = vmatprep.subr.mxu0 0.0
    %2336 = vmatpush1.msra.mxu0 0.0
    %2337 = vmatprep.subr.mxu0 0.0
    %2338 = vmatpush1.msra.mxu0 0.0
    %2339 = vmatprep.subr.mxu0 0.0
    %2340 = vmatpush1.msra.mxu0 0.0
    %2341 = vmatprep.subr.mxu0 0.0
    %2342 = vmatpush1.msra.mxu0 0.0
    %2343 = vmatprep.subr.mxu0 0.0
    %2344 = vmatpush1.msra.mxu0 0.0
    %2345 = vmatprep.subr.mxu0 0.0
    %2346 = vmatpush1.msra.mxu0 0.0
    %2347 = vmatprep.subr.mxu0 0.0
    %2348 = vmatpush1.msra.mxu0 0.0
    %2349 = vmatprep.subr.mxu0 0.0
    %2350 = vmatpush1.msra.mxu0 0.0
    %2351 = vmatprep.subr.mxu0 0.0
    %2352 = vmatpush1.msra.mxu0 0.0
    %2353 = vmatprep.subr.mxu0 0.0
    %2354 = vmatpush1.msra.mxu0 0.0
    %2355 = vmatprep.subr.mxu0 0.0
    %2356 = vmatpush1.msra.mxu0 0.0
    %2357 = vmatprep.subr.mxu0 0.0
    %2358 = vmatpush1.msra.mxu0 0.0
    %2359 = vmatprep.subr.mxu0 0.0
    %2360 = vmatpush1.msra.mxu0 0.0
    %2361 = vmatprep.mubr.f32.mxu0 0.0
    %2362 = vmatmul.mubr.f32.gmra.mrb[0].mxu0 %v2292
    %v2363 = vpop.f32.mrb[0].mxu0
    %v2364 = vadd.f32 %v1188, %v2363
    %v2365 = vpop.f32.mrb[0].mxu0
    %2366 = vmatprep.mubr.f32.mxu0 0.0
    %2367 = vmatmul.mubr.f32.gmra.mrb[0].mxu0 %v2295
    %v2368 = vpop.f32.mrb[0].mxu0
    %v2369 = vadd.f32 %v1188, %v2368
    %v2370 = vpop.f32.mrb[0].mxu0
    %2371 = vdwg.mxu0
    %2372 = vmatprep.subr.mxu0 0.0
    %2373 = vmatpush1.msra.mxu0 %v1165
    %2374 = vmatprep.subr.mxu0 0.0
    %2375 = vmatpush1.msra.mxu0 %v1166
    %2376 = vmatprep.subr.mxu0 0.0
    %2377 = vmatpush1.msra.mxu0 %v1167
    %2378 = vmatprep.subr.mxu0 0.0
    %2379 = vmatpush1.msra.mxu0 %v1168
    %2380 = vmatprep.subr.mxu0 0.0
    %2381 = vmatpush1.msra.mxu0 %v1169
    %2382 = vmatprep.subr.mxu0 0.0
    %2383 = vmatpush1.msra.mxu0 %v1170
    %2384 = vmatprep.subr.mxu0 0.0
    %2385 = vmatpush1.msra.mxu0 %v1171
    %2386 = vmatprep.subr.mxu0 0.0
    %2387 = vmatpush1.msra.mxu0 %v1172
    %2388 = vmatprep.subr.mxu0 0.0
    %2389 = vmatpush1.msra.mxu0 0.0
    %2390 = vmatprep.subr.mxu0 0.0
    %2391 = vmatpush1.msra.mxu0 0.0
    %2392 = vmatprep.subr.mxu0 0.0
    %2393 = vmatpush1.msra.mxu0 0.0
    %2394 = vmatprep.subr.mxu0 0.0
    %2395 = vmatpush1.msra.mxu0 0.0
    %2396 = vmatprep.subr.mxu0 0.0
    %2397 = vmatpush1.msra.mxu0 0.0
    %2398 = vmatprep.subr.mxu0 0.0
    %2399 = vmatpush1.msra.mxu0 0.0
    %2400 = vmatprep.subr.mxu0 0.0
    %2401 = vmatpush1.msra.mxu0 0.0
    %2402 = vmatprep.subr.mxu0 0.0
    %2403 = vmatpush1.msra.mxu0 0.0
    %2404 = vmatprep.subr.mxu0 0.0
    %2405 = vmatpush1.msra.mxu0 0.0
    %2406 = vmatprep.subr.mxu0 0.0
    %2407 = vmatpush1.msra.mxu0 0.0
    %2408 = vmatprep.subr.mxu0 0.0
    %2409 = vmatpush1.msra.mxu0 0.0
    %2410 = vmatprep.subr.mxu0 0.0
    %2411 = vmatpush1.msra.mxu0 0.0
    %2412 = vmatprep.subr.mxu0 0.0
    %2413 = vmatpush1.msra.mxu0 0.0
    %2414 = vmatprep.subr.mxu0 0.0
    %2415 = vmatpush1.msra.mxu0 0.0
    %2416 = vmatprep.subr.mxu0 0.0
    %2417 = vmatpush1.msra.mxu0 0.0
    %2418 = vmatprep.subr.mxu0 0.0
    %2419 = vmatpush1.msra.mxu0 0.0
    %2420 = vmatprep.subr.mxu0 0.0
    %2421 = vmatpush1.msra.mxu0 0.0
    %2422 = vmatprep.subr.mxu0 0.0
    %2423 = vmatpush1.msra.mxu0 0.0
    %2424 = vmatprep.subr.mxu0 0.0
    %2425 = vmatpush1.msra.mxu0 0.0
    %2426 = vmatprep.subr.mxu0 0.0
    %2427 = vmatpush1.msra.mxu0 0.0
    %2428 = vmatprep.subr.mxu0 0.0
    %2429 = vmatpush1.msra.mxu0 0.0
    %2430 = vmatprep.subr.mxu0 0.0
    %2431 = vmatpush1.msra.mxu0 0.0
    %2432 = vmatprep.subr.mxu0 0.0
    %2433 = vmatpush1.msra.mxu0 0.0
    %2434 = vmatprep.subr.mxu0 0.0
    %2435 = vmatpush1.msra.mxu0 0.0
    %2436 = vmatprep.mubr.f32.mxu0 0.0
    %2437 = vmatmul.mubr.f32.gmra.mrb[0].mxu0 %v2292
    %v2438 = vpop.f32.mrb[0].mxu0
    %v2439 = vadd.f32 %v1272, %v2438
    %v2440 = vpop.f32.mrb[0].mxu0
    %2441 = vmatprep.mubr.f32.mxu0 0.0
    %2442 = vmatmul.mubr.f32.gmra.mrb[0].mxu0 %v2295
    %v2443 = vpop.f32.mrb[0].mxu0
    %v2444 = vadd.f32 %v1272, %v2443
    %v2445 = vpop.f32.mrb[0].mxu0
    %2446 = vdwg.mxu0
    %2447 = vmatprep.subr.mxu0 0.0
    %2448 = vmatpush1.msra.mxu0 %v1173
    %2449 = vmatprep.subr.mxu0 0.0
    %2450 = vmatpush1.msra.mxu0 %v1174
    %2451 = vmatprep.subr.mxu0 0.0
    %2452 = vmatpush1.msra.mxu0 %v1175
    %2453 = vmatprep.subr.mxu0 0.0
    %2454 = vmatpush1.msra.mxu0 %v1176
    %2455 = vmatprep.subr.mxu0 0.0
    %2456 = vmatpush1.msra.mxu0 %v1177
    %2457 = vmatprep.subr.mxu0 0.0
    %2458 = vmatpush1.msra.mxu0 %v1178
    %2459 = vmatprep.subr.mxu0 0.0
    %2460 = vmatpush1.msra.mxu0 %v1179
    %2461 = vmatprep.subr.mxu0 0.0
    %2462 = vmatpush1.msra.mxu0 %v1180
    %2463 = vmatprep.subr.mxu0 0.0
    %2464 = vmatpush1.msra.mxu0 0.0
    %2465 = vmatprep.subr.mxu0 0.0
    %2466 = vmatpush1.msra.mxu0 0.0
    %2467 = vmatprep.subr.mxu0 0.0
    %2468 = vmatpush1.msra.mxu0 0.0
    %2469 = vmatprep.subr.mxu0 0.0
    %2470 = vmatpush1.msra.mxu0 0.0
    %2471 = vmatprep.subr.mxu0 0.0
    %2472 = vmatpush1.msra.mxu0 0.0
    %2473 = vmatprep.subr.mxu0 0.0
    %2474 = vmatpush1.msra.mxu0 0.0
    %2475 = vmatprep.subr.mxu0 0.0
    %2476 = vmatpush1.msra.mxu0 0.0
    %2477 = vmatprep.subr.mxu0 0.0
    %2478 = vmatpush1.msra.mxu0 0.0
    %2479 = vmatprep.subr.mxu0 0.0
    %2480 = vmatpush1.msra.mxu0 0.0
    %2481 = vmatprep.subr.mxu0 0.0
    %2482 = vmatpush1.msra.mxu0 0.0
    %2483 = vmatprep.subr.mxu0 0.0
    %2484 = vmatpush1.msra.mxu0 0.0
    %2485 = vmatprep.subr.mxu0 0.0
    %2486 = vmatpush1.msra.mxu0 0.0
    %2487 = vmatprep.subr.mxu0 0.0
    %2488 = vmatpush1.msra.mxu0 0.0
    %2489 = vmatprep.subr.mxu0 0.0
    %2490 = vmatpush1.msra.mxu0 0.0
    %2491 = vmatprep.subr.mxu0 0.0
    %2492 = vmatpush1.msra.mxu0 0.0
    %2493 = vmatprep.subr.mxu0 0.0
    %2494 = vmatpush1.msra.mxu0 0.0
    %2495 = vmatprep.subr.mxu0 0.0
    %2496 = vmatpush1.msra.mxu0 0.0
    %2497 = vmatprep.subr.mxu0 0.0
    %2498 = vmatpush1.msra.mxu0 0.0
    %2499 = vmatprep.subr.mxu0 0.0
    %2500 = vmatpush1.msra.mxu0 0.0
    %2501 = vmatprep.subr.mxu0 0.0
    %2502 = vmatpush1.msra.mxu0 0.0
    %2503 = vmatprep.subr.mxu0 0.0
    %2504 = vmatpush1.msra.mxu0 0.0
    %2505 = vmatprep.subr.mxu0 0.0
    %2506 = vmatpush1.msra.mxu0 0.0
    %2507 = vmatprep.subr.mxu0 0.0
    %2508 = vmatpush1.msra.mxu0 0.0
    %2509 = vmatprep.subr.mxu0 0.0
    %2510 = vmatpush1.msra.mxu0 0.0
    %2511 = vmatprep.mubr.f32.mxu0 0.0
    %2512 = vmatmul.mubr.f32.gmra.mrb[0].mxu0 %v2292
    %v2513 = vpop.f32.mrb[0].mxu0
    %v2514 = vadd.f32 %v1353, %v2513
    %v2515 = vpop.f32.mrb[0].mxu0
    %2516 = vmatprep.mubr.f32.mxu0 0.0
    %2517 = vmatmul.mubr.f32.gmra.mrb[0].mxu0 %v2295
    %v2518 = vpop.f32.mrb[0].mxu0
    %v2519 = vadd.f32 %v1353, %v2518
    %v2520 = vpop.f32.mrb[0].mxu0
    %2521 = vdwg.mxu0
    %v2522 = vadd.f32 %v871, %v2364
    %v2523 = vadd.f32 %v876, %v2369
    %v2524 = vxor.u32 %v2522, 2147483648
    %v2525 = vxor.u32 %v2523, 2147483648
    %v2526 = vmul.f32 %v2524, 1.442695
    %v2527 = vpow.pop %v2526
    %v2528 = vmul.f32 %v2525, 1.442695
    %v2529 = vpow.pop %v2528
    %v2530 = vadd.f32 %v2527, 1.0
    %v2531 = vadd.f32 %v2529, 1.0
    %v2532 = vrcp.pop %v2530
    %v2533 = vmul.f32 1.0, %v2532
    %v2534 = vrcp.pop %v2531
    %v2535 = vmul.f32 1.0, %v2534
    %v2536 = vadd.f32 %v1005, %v2439
    %v2537 = vadd.f32 %v1010, %v2444
    %v2538 = vxor.u32 %v2536, 2147483648
    %v2539 = vxor.u32 %v2537, 2147483648
    %v2540 = vmul.f32 %v2538, 1.442695
    %v2541 = vpow.pop %v2540
    %v2542 = vmul.f32 %v2539, 1.442695
    %v2543 = vpow.pop %v2542
    %v2544 = vadd.f32 %v2541, 1.0
    %v2545 = vadd.f32 %v2543, 1.0
    %v2546 = vrcp.pop %v2544
    %v2547 = vmul.f32 1.0, %v2546
    %v2548 = vrcp.pop %v2545
    %v2549 = vmul.f32 1.0, %v2548
    %v2550 = vmul.f32 %v2533, %v2514
    %v2551 = vmul.f32 %v2535, %v2519
    %v2552 = vadd.f32 %v1139, %v2550
    %v2553 = vadd.f32 %v1144, %v2551
    %v2554 = vtanh.pop %v2552
    %v2555 = vtanh.pop %v2553
    %v2556 = vsub.f32 1.0, %v2547
    %v2557 = vsub.f32 1.0, %v2549
    %v2558 = vmul.f32 %v2556, %v2554
    %v2559 = vmul.f32 %v2557, %v2555
    %v2560 = vmul.f32 %v2547, %v2289
    %v2561 = vmul.f32 %v2549, %v2290
    %v2562 = vadd.f32 %v2558, %v2560
    %v2563 = vadd.f32 %v2559, %v2561
    %v2565 = vsel %vm541, %v2562, 0
    %v2568 = vsel %vm541, %v2563, 0
    %2570 = vmatprep.subr.mxu0 0.0
    %2571 = vmatpush1.msra.mxu0 %v1157
    %2572 = vmatprep.subr.mxu0 0.0
    %2573 = vmatpush1.msra.mxu0 %v1158
    %2574 = vmatprep.subr.mxu0 0.0
    %2575 = vmatpush1.msra.mxu0 %v1159
    %2576 = vmatprep.subr.mxu0 0.0
    %2577 = vmatpush1.msra.mxu0 %v1160
    %2578 = vmatprep.subr.mxu0 0.0
    %2579 = vmatpush1.msra.mxu0 %v1161
    %2580 = vmatprep.subr.mxu0 0.0
    %2581 = vmatpush1.msra.mxu0 %v1162
    %2582 = vmatprep.subr.mxu0 0.0
    %2583 = vmatpush1.msra.mxu0 %v1163
    %2584 = vmatprep.subr.mxu0 0.0
    %2585 = vmatpush1.msra.mxu0 %v1164
    %2586 = vmatprep.subr.mxu0 0.0
    %2587 = vmatpush1.msra.mxu0 0.0
    %2588 = vmatprep.subr.mxu0 0.0
    %2589 = vmatpush1.msra.mxu0 0.0
    %2590 = vmatprep.subr.mxu0 0.0
    %2591 = vmatpush1.msra.mxu0 0.0
    %2592 = vmatprep.subr.mxu0 0.0
    %2593 = vmatpush1.msra.mxu0 0.0
    %2594 = vmatprep.subr.mxu0 0.0
    %2595 = vmatpush1.msra.mxu0 0.0
    %2596 = vmatprep.subr.mxu0 0.0
    %2597 = vmatpush1.msra.mxu0 0.0
    %2598 = vmatprep.subr.mxu0 0.0
    %2599 = vmatpush1.msra.mxu0 0.0
    %2600 = vmatprep.subr.mxu0 0.0
    %2601 = vmatpush1.msra.mxu0 0.0
    %2602 = vmatprep.subr.mxu0 0.0
    %2603 = vmatpush1.msra.mxu0 0.0
    %2604 = vmatprep.subr.mxu0 0.0
    %2605 = vmatpush1.msra.mxu0 0.0
    %2606 = vmatprep.subr.mxu0 0.0
    %2607 = vmatpush1.msra.mxu0 0.0
    %2608 = vmatprep.subr.mxu0 0.0
    %2609 = vmatpush1.msra.mxu0 0.0
    %2610 = vmatprep.subr.mxu0 0.0
    %2611 = vmatpush1.msra.mxu0 0.0
    %2612 = vmatprep.subr.mxu0 0.0
    %2613 = vmatpush1.msra.mxu0 0.0
    %2614 = vmatprep.subr.mxu0 0.0
    %2615 = vmatpush1.msra.mxu0 0.0
    %2616 = vmatprep.subr.mxu0 0.0
    %2617 = vmatpush1.msra.mxu0 0.0
    %2618 = vmatprep.subr.mxu0 0.0
    %2619 = vmatpush1.msra.mxu0 0.0
    %2620 = vmatprep.subr.mxu0 0.0
    %2621 = vmatpush1.msra.mxu0 0.0
    %2622 = vmatprep.subr.mxu0 0.0
    %2623 = vmatpush1.msra.mxu0 0.0
    %2624 = vmatprep.subr.mxu0 0.0
    %2625 = vmatpush1.msra.mxu0 0.0
    %2626 = vmatprep.subr.mxu0 0.0
    %2627 = vmatpush1.msra.mxu0 0.0
    %2628 = vmatprep.subr.mxu0 0.0
    %2629 = vmatpush1.msra.mxu0 0.0
    %2630 = vmatprep.subr.mxu0 0.0
    %2631 = vmatpush1.msra.mxu0 0.0
    %2632 = vmatprep.subr.mxu0 0.0
    %2633 = vmatpush1.msra.mxu0 0.0
    %2634 = vmatprep.mubr.f32.mxu0 0.0
    %2635 = vmatmul.mubr.f32.gmra.mrb[0].mxu0 %v2565
    %v2636 = vpop.f32.mrb[0].mxu0
    %v2637 = vadd.f32 %v1188, %v2636
    %v2638 = vpop.f32.mrb[0].mxu0
    %2639 = vmatprep.mubr.f32.mxu0 0.0
    %2640 = vmatmul.mubr.f32.gmra.mrb[0].mxu0 %v2568
    %v2641 = vpop.f32.mrb[0].mxu0
    %v2642 = vadd.f32 %v1188, %v2641
    %v2643 = vpop.f32.mrb[0].mxu0
    %2644 = vdwg.mxu0
    %2645 = vmatprep.subr.mxu0 0.0
    %2646 = vmatpush1.msra.mxu0 %v1165
    %2647 = vmatprep.subr.mxu0 0.0
    %2648 = vmatpush1.msra.mxu0 %v1166
    %2649 = vmatprep.subr.mxu0 0.0
    %2650 = vmatpush1.msra.mxu0 %v1167
    %2651 = vmatprep.subr.mxu0 0.0
    %2652 = vmatpush1.msra.mxu0 %v1168
    %2653 = vmatprep.subr.mxu0 0.0
    %2654 = vmatpush1.msra.mxu0 %v1169
    %2655 = vmatprep.subr.mxu0 0.0
    %2656 = vmatpush1.msra.mxu0 %v1170
    %2657 = vmatprep.subr.mxu0 0.0
    %2658 = vmatpush1.msra.mxu0 %v1171
    %2659 = vmatprep.subr.mxu0 0.0
    %2660 = vmatpush1.msra.mxu0 %v1172
    %2661 = vmatprep.subr.mxu0 0.0
    %2662 = vmatpush1.msra.mxu0 0.0
    %2663 = vmatprep.subr.mxu0 0.0
    %2664 = vmatpush1.msra.mxu0 0.0
    %2665 = vmatprep.subr.mxu0 0.0
    %2666 = vmatpush1.msra.mxu0 0.0
    %2667 = vmatprep.subr.mxu0 0.0
    %2668 = vmatpush1.msra.mxu0 0.0
    %2669 = vmatprep.subr.mxu0 0.0
    %2670 = vmatpush1.msra.mxu0 0.0
    %2671 = vmatprep.subr.mxu0 0.0
    %2672 = vmatpush1.msra.mxu0 0.0
    %2673 = vmatprep.subr.mxu0 0.0
    %2674 = vmatpush1.msra.mxu0 0.0
    %2675 = vmatprep.subr.mxu0 0.0
    %2676 = vmatpush1.msra.mxu0 0.0
    %2677 = vmatprep.subr.mxu0 0.0
    %2678 = vmatpush1.msra.mxu0 0.0
    %2679 = vmatprep.subr.mxu0 0.0
    %2680 = vmatpush1.msra.mxu0 0.0
    %2681 = vmatprep.subr.mxu0 0.0
    %2682 = vmatpush1.msra.mxu0 0.0
    %2683 = vmatprep.subr.mxu0 0.0
    %2684 = vmatpush1.msra.mxu0 0.0
    %2685 = vmatprep.subr.mxu0 0.0
    %2686 = vmatpush1.msra.mxu0 0.0
    %2687 = vmatprep.subr.mxu0 0.0
    %2688 = vmatpush1.msra.mxu0 0.0
    %2689 = vmatprep.subr.mxu0 0.0
    %2690 = vmatpush1.msra.mxu0 0.0
    %2691 = vmatprep.subr.mxu0 0.0
    %2692 = vmatpush1.msra.mxu0 0.0
    %2693 = vmatprep.subr.mxu0 0.0
    %2694 = vmatpush1.msra.mxu0 0.0
    %2695 = vmatprep.subr.mxu0 0.0
    %2696 = vmatpush1.msra.mxu0 0.0
    %2697 = vmatprep.subr.mxu0 0.0
    %2698 = vmatpush1.msra.mxu0 0.0
    %2699 = vmatprep.subr.mxu0 0.0
    %2700 = vmatpush1.msra.mxu0 0.0
    %2701 = vmatprep.subr.mxu0 0.0
    %2702 = vmatpush1.msra.mxu0 0.0
    %2703 = vmatprep.subr.mxu0 0.0
    %2704 = vmatpush1.msra.mxu0 0.0
    %2705 = vmatprep.subr.mxu0 0.0
    %2706 = vmatpush1.msra.mxu0 0.0
    %2707 = vmatprep.subr.mxu0 0.0
    %2708 = vmatpush1.msra.mxu0 0.0
    %2709 = vmatprep.mubr.f32.mxu0 0.0
    %2710 = vmatmul.mubr.f32.gmra.mrb[0].mxu0 %v2565
    %v2711 = vpop.f32.mrb[0].mxu0
    %v2712 = vadd.f32 %v1272, %v2711
    %v2713 = vpop.f32.mrb[0].mxu0
    %2714 = vmatprep.mubr.f32.mxu0 0.0
    %2715 = vmatmul.mubr.f32.gmra.mrb[0].mxu0 %v2568
    %v2716 = vpop.f32.mrb[0].mxu0
    %v2717 = vadd.f32 %v1272, %v2716
    %v2718 = vpop.f32.mrb[0].mxu0
    %2719 = vdwg.mxu0
    %2720 = vmatprep.subr.mxu0 0.0
    %2721 = vmatpush1.msra.mxu0 %v1173
    %2722 = vmatprep.subr.mxu0 0.0
    %2723 = vmatpush1.msra.mxu0 %v1174
    %2724 = vmatprep.subr.mxu0 0.0
    %2725 = vmatpush1.msra.mxu0 %v1175
    %2726 = vmatprep.subr.mxu0 0.0
    %2727 = vmatpush1.msra.mxu0 %v1176
    %2728 = vmatprep.subr.mxu0 0.0
    %2729 = vmatpush1.msra.mxu0 %v1177
    %2730 = vmatprep.subr.mxu0 0.0
    %2731 = vmatpush1.msra.mxu0 %v1178
    %2732 = vmatprep.subr.mxu0 0.0
    %2733 = vmatpush1.msra.mxu0 %v1179
    %2734 = vmatprep.subr.mxu0 0.0
    %2735 = vmatpush1.msra.mxu0 %v1180
    %2736 = vmatprep.subr.mxu0 0.0
    %2737 = vmatpush1.msra.mxu0 0.0
    %2738 = vmatprep.subr.mxu0 0.0
    %2739 = vmatpush1.msra.mxu0 0.0
    %2740 = vmatprep.subr.mxu0 0.0
    %2741 = vmatpush1.msra.mxu0 0.0
    %2742 = vmatprep.subr.mxu0 0.0
    %2743 = vmatpush1.msra.mxu0 0.0
    %2744 = vmatprep.subr.mxu0 0.0
    %2745 = vmatpush1.msra.mxu0 0.0
    %2746 = vmatprep.subr.mxu0 0.0
    %2747 = vmatpush1.msra.mxu0 0.0
    %2748 = vmatprep.subr.mxu0 0.0
    %2749 = vmatpush1.msra.mxu0 0.0
    %2750 = vmatprep.subr.mxu0 0.0
    %2751 = vmatpush1.msra.mxu0 0.0
    %2752 = vmatprep.subr.mxu0 0.0
    %2753 = vmatpush1.msra.mxu0 0.0
    %2754 = vmatprep.subr.mxu0 0.0
    %2755 = vmatpush1.msra.mxu0 0.0
    %2756 = vmatprep.subr.mxu0 0.0
    %2757 = vmatpush1.msra.mxu0 0.0
    %2758 = vmatprep.subr.mxu0 0.0
    %2759 = vmatpush1.msra.mxu0 0.0
    %2760 = vmatprep.subr.mxu0 0.0
    %2761 = vmatpush1.msra.mxu0 0.0
    %2762 = vmatprep.subr.mxu0 0.0
    %2763 = vmatpush1.msra.mxu0 0.0
    %2764 = vmatprep.subr.mxu0 0.0
    %2765 = vmatpush1.msra.mxu0 0.0
    %2766 = vmatprep.subr.mxu0 0.0
    %2767 = vmatpush1.msra.mxu0 0.0
    %2768 = vmatprep.subr.mxu0 0.0
    %2769 = vmatpush1.msra.mxu0 0.0
    %2770 = vmatprep.subr.mxu0 0.0
    %2771 = vmatpush1.msra.mxu0 0.0
    %2772 = vmatprep.subr.mxu0 0.0
    %2773 = vmatpush1.msra.mxu0 0.0
    %2774 = vmatprep.subr.mxu0 0.0
    %2775 = vmatpush1.msra.mxu0 0.0
    %2776 = vmatprep.subr.mxu0 0.0
    %2777 = vmatpush1.msra.mxu0 0.0
    %2778 = vmatprep.subr.mxu0 0.0
    %2779 = vmatpush1.msra.mxu0 0.0
    %2780 = vmatprep.subr.mxu0 0.0
    %2781 = vmatpush1.msra.mxu0 0.0
    %2782 = vmatprep.subr.mxu0 0.0
    %2783 = vmatpush1.msra.mxu0 0.0
    %2784 = vmatprep.mubr.f32.mxu0 0.0
    %2785 = vmatmul.mubr.f32.gmra.mrb[0].mxu0 %v2565
    %v2786 = vpop.f32.mrb[0].mxu0
    %v2787 = vadd.f32 %v1353, %v2786
    %v2788 = vpop.f32.mrb[0].mxu0
    %2789 = vmatprep.mubr.f32.mxu0 0.0
    %2790 = vmatmul.mubr.f32.gmra.mrb[0].mxu0 %v2568
    %v2791 = vpop.f32.mrb[0].mxu0
    %v2792 = vadd.f32 %v1353, %v2791
    %v2793 = vpop.f32.mrb[0].mxu0
    %2794 = vdwg.mxu0
    %v2795 = vadd.f32 %v881, %v2637
    %v2796 = vadd.f32 %v886, %v2642
    %v2797 = vxor.u32 %v2795, 2147483648
    %v2798 = vxor.u32 %v2796, 2147483648
    %v2799 = vmul.f32 %v2797, 1.442695
    %v2800 = vpow.pop %v2799
    %v2801 = vmul.f32 %v2798, 1.442695
    %v2802 = vpow.pop %v2801
    %v2803 = vadd.f32 %v2800, 1.0
    %v2804 = vadd.f32 %v2802, 1.0
    %v2805 = vrcp.pop %v2803
    %v2806 = vmul.f32 1.0, %v2805
    %v2807 = vrcp.pop %v2804
    %v2808 = vmul.f32 1.0, %v2807
    %v2809 = vadd.f32 %v1015, %v2712
    %v2810 = vadd.f32 %v1020, %v2717
    %v2811 = vxor.u32 %v2809, 2147483648
    %v2812 = vxor.u32 %v2810, 2147483648
    %v2813 = vmul.f32 %v2811, 1.442695
    %v2814 = vpow.pop %v2813
    %v2815 = vmul.f32 %v2812, 1.442695
    %v2816 = vpow.pop %v2815
    %v2817 = vadd.f32 %v2814, 1.0
    %v2818 = vadd.f32 %v2816, 1.0
    %v2819 = vrcp.pop %v2817
    %v2820 = vmul.f32 1.0, %v2819
    %v2821 = vrcp.pop %v2818
    %v2822 = vmul.f32 1.0, %v2821
    %v2823 = vmul.f32 %v2806, %v2787
    %v2824 = vmul.f32 %v2808, %v2792
    %v2825 = vadd.f32 %v1149, %v2823
    %v2826 = vadd.f32 %v1154, %v2824
    %v2827 = vtanh.pop %v2825
    %v2828 = vtanh.pop %v2826
    %v2829 = vsub.f32 1.0, %v2820
    %v2830 = vsub.f32 1.0, %v2822
    %v2831 = vmul.f32 %v2829, %v2827
    %v2832 = vmul.f32 %v2830, %v2828
    %v2833 = vmul.f32 %v2820, %v2562
    %v2834 = vmul.f32 %v2822, %v2563
    %v2835 = vadd.f32 %v2831, %v2833
    %v2836 = vadd.f32 %v2832, %v2834
    %v2837 = vld [vmem:[%s43] sm:$0xff]
    %v2838 = vld [vmem:[%s43 + $0x8] sm:$0xff]
    %v2839 = vld [vmem:[%s43 + $0x10] sm:$0xff]
    %v2840 = vld [vmem:[%s43 + $0x18] sm:$0xff]
    %v2841 = vld [vmem:[%s43 + $0x20] sm:$0xff]
    %v2842 = vld [vmem:[%s43 + $0x28] sm:$0xff]
    %v2843 = vld [vmem:[%s43 + $0x30] sm:$0xff]
    %v2844 = vld [vmem:[%s43 + $0x38] sm:$0xff]
    %v2846 = vsel %vm541, %v705, 0
    %v2849 = vsel %vm541, %v706, 0
    %2851 = vmatprep.subr.mxu0 0.0
    %2852 = vmatpush1.msra.mxu0 %v2837
    %2853 = vmatprep.subr.mxu0 0.0
    %2854 = vmatpush1.msra.mxu0 %v2838
    %2855 = vmatprep.subr.mxu0 0.0
    %2856 = vmatpush1.msra.mxu0 %v2839
    %2857 = vmatprep.subr.mxu0 0.0
    %2858 = vmatpush1.msra.mxu0 %v2840
    %2859 = vmatprep.subr.mxu0 0.0
    %2860 = vmatpush1.msra.mxu0 %v2841
    %2861 = vmatprep.subr.mxu0 0.0
    %2862 = vmatpush1.msra.mxu0 %v2842
    %2863 = vmatprep.subr.mxu0 0.0
    %2864 = vmatpush1.msra.mxu0 %v2843
    %2865 = vmatprep.subr.mxu0 0.0
    %2866 = vmatpush1.msra.mxu0 %v2844
    %2867 = vmatprep.subr.mxu0 0.0
    %2868 = vmatpush1.msra.mxu0 0.0
    %2869 = vmatprep.subr.mxu0 0.0
    %2870 = vmatpush1.msra.mxu0 0.0
    %2871 = vmatprep.subr.mxu0 0.0
    %2872 = vmatpush1.msra.mxu0 0.0
    %2873 = vmatprep.subr.mxu0 0.0
    %2874 = vmatpush1.msra.mxu0 0.0
    %2875 = vmatprep.subr.mxu0 0.0
    %2876 = vmatpush1.msra.mxu0 0.0
    %2877 = vmatprep.subr.mxu0 0.0
    %2878 = vmatpush1.msra.mxu0 0.0
    %2879 = vmatprep.subr.mxu0 0.0
    %2880 = vmatpush1.msra.mxu0 0.0
    %2881 = vmatprep.subr.mxu0 0.0
    %2882 = vmatpush1.msra.mxu0 0.0
    %2883 = vmatprep.subr.mxu0 0.0
    %2884 = vmatpush1.msra.mxu0 0.0
    %2885 = vmatprep.subr.mxu0 0.0
    %2886 = vmatpush1.msra.mxu0 0.0
    %2887 = vmatprep.subr.mxu0 0.0
    %2888 = vmatpush1.msra.mxu0 0.0
    %2889 = vmatprep.subr.mxu0 0.0
    %2890 = vmatpush1.msra.mxu0 0.0
    %2891 = vmatprep.subr.mxu0 0.0
    %2892 = vmatpush1.msra.mxu0 0.0
    %2893 = vmatprep.subr.mxu0 0.0
    %2894 = vmatpush1.msra.mxu0 0.0
    %2895 = vmatprep.subr.mxu0 0.0
    %2896 = vmatpush1.msra.mxu0 0.0
    %2897 = vmatprep.subr.mxu0 0.0
    %2898 = vmatpush1.msra.mxu0 0.0
    %2899 = vmatprep.subr.mxu0 0.0
    %2900 = vmatpush1.msra.mxu0 0.0
    %2901 = vmatprep.subr.mxu0 0.0
    %2902 = vmatpush1.msra.mxu0 0.0
    %2903 = vmatprep.subr.mxu0 0.0
    %2904 = vmatpush1.msra.mxu0 0.0
    %2905 = vmatprep.subr.mxu0 0.0
    %2906 = vmatpush1.msra.mxu0 0.0
    %2907 = vmatprep.subr.mxu0 0.0
    %2908 = vmatpush1.msra.mxu0 0.0
    %2909 = vmatprep.subr.mxu0 0.0
    %2910 = vmatpush1.msra.mxu0 0.0
    %2911 = vmatprep.subr.mxu0 0.0
    %2912 = vmatpush1.msra.mxu0 0.0
    %2913 = vmatprep.subr.mxu0 0.0
    %2914 = vmatpush1.msra.mxu0 0.0
    %2915 = vmatprep.mubr.f32.mxu0 0.0
    %2916 = vmatmul.mubr.f32.gmra.mrb[0].mxu0 %v2846
    %v2917 = vpop.f32.mrb[0].mxu0
    %v2918 = vadd.f32 0.0, %v2917
    %v2919 = vpop.f32.mrb[0].mxu0
    %2920 = vmatprep.mubr.f32.mxu0 0.0
    %2921 = vmatmul.mubr.f32.gmra.mrb[0].mxu0 %v2849
    %v2922 = vpop.f32.mrb[0].mxu0
    %v2923 = vadd.f32 0.0, %v2922
    %v2924 = vpop.f32.mrb[0].mxu0
    %2925 = vdwg.mxu0
    %v2926 = vld [vmem:[#allocation23] sm:$0xff]
    %v2927 = vld [vmem:[#allocation23 + $0x8] sm:$0xff]
    %v2928 = vld [vmem:[#allocation23 + $0x10] sm:$0xff]
    %v2929 = vld [vmem:[#allocation23 + $0x18] sm:$0xff]
    %v2930 = vld [vmem:[#allocation23 + $0x20] sm:$0xff]
    %v2931 = vld [vmem:[#allocation23 + $0x28] sm:$0xff]
    %v2932 = vld [vmem:[#allocation23 + $0x30] sm:$0xff]
    %v2933 = vld [vmem:[#allocation23 + $0x38] sm:$0xff]
    %2934 = vmatprep.subr.mxu0 0.0
    %2935 = vmatpush1.msra.mxu0 %v2926
    %2936 = vmatprep.subr.mxu0 0.0
    %2937 = vmatpush1.msra.mxu0 %v2927
    %2938 = vmatprep.subr.mxu0 0.0
    %2939 = vmatpush1.msra.mxu0 %v2928
    %2940 = vmatprep.subr.mxu0 0.0
    %2941 = vmatpush1.msra.mxu0 %v2929
    %2942 = vmatprep.subr.mxu0 0.0
    %2943 = vmatpush1.msra.mxu0 %v2930
    %2944 = vmatprep.subr.mxu0 0.0
    %2945 = vmatpush1.msra.mxu0 %v2931
    %2946 = vmatprep.subr.mxu0 0.0
    %2947 = vmatpush1.msra.mxu0 %v2932
    %2948 = vmatprep.subr.mxu0 0.0
    %2949 = vmatpush1.msra.mxu0 %v2933
    %2950 = vmatprep.subr.mxu0 0.0
    %2951 = vmatpush1.msra.mxu0 0.0
    %2952 = vmatprep.subr.mxu0 0.0
    %2953 = vmatpush1.msra.mxu0 0.0
    %2954 = vmatprep.subr.mxu0 0.0
    %2955 = vmatpush1.msra.mxu0 0.0
    %2956 = vmatprep.subr.mxu0 0.0
    %2957 = vmatpush1.msra.mxu0 0.0
    %2958 = vmatprep.subr.mxu0 0.0
    %2959 = vmatpush1.msra.mxu0 0.0
    %2960 = vmatprep.subr.mxu0 0.0
    %2961 = vmatpush1.msra.mxu0 0.0
    %2962 = vmatprep.subr.mxu0 0.0
    %2963 = vmatpush1.msra.mxu0 0.0
    %2964 = vmatprep.subr.mxu0 0.0
    %2965 = vmatpush1.msra.mxu0 0.0
    %2966 = vmatprep.subr.mxu0 0.0
    %2967 = vmatpush1.msra.mxu0 0.0
    %2968 = vmatprep.subr.mxu0 0.0
    %2969 = vmatpush1.msra.mxu0 0.0
    %2970 = vmatprep.subr.mxu0 0.0
    %2971 = vmatpush1.msra.mxu0 0.0
    %2972 = vmatprep.subr.mxu0 0.0
    %2973 = vmatpush1.msra.mxu0 0.0
    %2974 = vmatprep.subr.mxu0 0.0
    %2975 = vmatpush1.msra.mxu0 0.0
    %2976 = vmatprep.subr.mxu0 0.0
    %2977 = vmatpush1.msra.mxu0 0.0
    %2978 = vmatprep.subr.mxu0 0.0
    %2979 = vmatpush1.msra.mxu0 0.0
    %2980 = vmatprep.subr.mxu0 0.0
    %2981 = vmatpush1.msra.mxu0 0.0
    %2982 = vmatprep.subr.mxu0 0.0
    %2983 = vmatpush1.msra.mxu0 0.0
    %2984 = vmatprep.subr.mxu0 0.0
    %2985 = vmatpush1.msra.mxu0 0.0
    %2986 = vmatprep.subr.mxu0 0.0
    %2987 = vmatpush1.msra.mxu0 0.0
    %2988 = vmatprep.subr.mxu0 0.0
    %2989 = vmatpush1.msra.mxu0 0.0
    %2990 = vmatprep.subr.mxu0 0.0
    %2991 = vmatpush1.msra.mxu0 0.0
    %2992 = vmatprep.subr.mxu0 0.0
    %2993 = vmatpush1.msra.mxu0 0.0
    %2994 = vmatprep.subr.mxu0 0.0
    %2995 = vmatpush1.msra.mxu0 0.0
    %2996 = vmatprep.subr.mxu0 0.0
    %2997 = vmatpush1.msra.mxu0 0.0
    %2998 = vmatprep.mubr.f32.mxu0 0.0
    %2999 = vmatmul.mubr.f32.gmra.mrb[0].mxu0 %v2846
    %v3000 = vpop.f32.mrb[0].mxu0
    %v3001 = vadd.f32 0.0, %v3000
    %v3002 = vpop.f32.mrb[0].mxu0
    %3003 = vmatprep.mubr.f32.mxu0 0.0
    %3004 = vmatmul.mubr.f32.gmra.mrb[0].mxu0 %v2849
    %v3005 = vpop.f32.mrb[0].mxu0
    %v3006 = vadd.f32 0.0, %v3005
    %v3007 = vpop.f32.mrb[0].mxu0
    %3008 = vdwg.mxu0
    %v3009 = vld [vmem:[#allocation25] sm:$0xff]
    %v3010 = vld [vmem:[#allocation25 + $0x8] sm:$0xff]
    %v3011 = vld [vmem:[#allocation25 + $0x10] sm:$0xff]
    %v3012 = vld [vmem:[#allocation25 + $0x18] sm:$0xff]
    %v3013 = vld [vmem:[#allocation25 + $0x20] sm:$0xff]
    %v3014 = vld [vmem:[#allocation25 + $0x28] sm:$0xff]
    %v3015 = vld [vmem:[#allocation25 + $0x30] sm:$0xff]
    %v3016 = vld [vmem:[#allocation25 + $0x38] sm:$0xff]
    %v3018 = vsel %vm541, %v2835, 0
    %v3021 = vsel %vm541, %v2836, 0
    %3023 = vmatprep.subr.mxu0 0.0
    %3024 = vmatpush1.msra.mxu0 %v3009
    %3025 = vmatprep.subr.mxu0 0.0
    %3026 = vmatpush1.msra.mxu0 %v3010
    %3027 = vmatprep.subr.mxu0 0.0
    %3028 = vmatpush1.msra.mxu0 %v3011
    %3029 = vmatprep.subr.mxu0 0.0
    %3030 = vmatpush1.msra.mxu0 %v3012
    %3031 = vmatprep.subr.mxu0 0.0
    %3032 = vmatpush1.msra.mxu0 %v3013
    %3033 = vmatprep.subr.mxu0 0.0
    %3034 = vmatpush1.msra.mxu0 %v3014
    %3035 = vmatprep.subr.mxu0 0.0
    %3036 = vmatpush1.msra.mxu0 %v3015
    %3037 = vmatprep.subr.mxu0 0.0
    %3038 = vmatpush1.msra.mxu0 %v3016
    %3039 = vmatprep.subr.mxu0 0.0
    %3040 = vmatpush1.msra.mxu0 0.0
    %3041 = vmatprep.subr.mxu0 0.0
    %3042 = vmatpush1.msra.mxu0 0.0
    %3043 = vmatprep.subr.mxu0 0.0
    %3044 = vmatpush1.msra.mxu0 0.0
    %3045 = vmatprep.subr.mxu0 0.0
    %3046 = vmatpush1.msra.mxu0 0.0
    %3047 = vmatprep.subr.mxu0 0.0
    %3048 = vmatpush1.msra.mxu0 0.0
    %3049 = vmatprep.subr.mxu0 0.0
    %3050 = vmatpush1.msra.mxu0 0.0
    %3051 = vmatprep.subr.mxu0 0.0
    %3052 = vmatpush1.msra.mxu0 0.0
    %3053 = vmatprep.subr.mxu0 0.0
    %3054 = vmatpush1.msra.mxu0 0.0
    %3055 = vmatprep.subr.mxu0 0.0
    %3056 = vmatpush1.msra.mxu0 0.0
    %3057 = vmatprep.subr.mxu0 0.0
    %3058 = vmatpush1.msra.mxu0 0.0
    %3059 = vmatprep.subr.mxu0 0.0
    %3060 = vmatpush1.msra.mxu0 0.0
    %3061 = vmatprep.subr.mxu0 0.0
    %3062 = vmatpush1.msra.mxu0 0.0
    %3063 = vmatprep.subr.mxu0 0.0
    %3064 = vmatpush1.msra.mxu0 0.0
    %3065 = vmatprep.subr.mxu0 0.0
    %3066 = vmatpush1.msra.mxu0 0.0
    %3067 = vmatprep.subr.mxu0 0.0
    %3068 = vmatpush1.msra.mxu0 0.0
    %3069 = vmatprep.subr.mxu0 0.0
    %3070 = vmatpush1.msra.mxu0 0.0
    %3071 = vmatprep.subr.mxu0 0.0
    %3072 = vmatpush1.msra.mxu0 0.0
    %3073 = vmatprep.subr.mxu0 0.0
    %3074 = vmatpush1.msra.mxu0 0.0
    %3075 = vmatprep.subr.mxu0 0.0
    %3076 = vmatpush1.msra.mxu0 0.0
    %3077 = vmatprep.subr.mxu0 0.0
    %3078 = vmatpush1.msra.mxu0 0.0
    %3079 = vmatprep.subr.mxu0 0.0
    %3080 = vmatpush1.msra.mxu0 0.0
    %3081 = vmatprep.subr.mxu0 0.0
    %3082 = vmatpush1.msra.mxu0 0.0
    %3083 = vmatprep.subr.mxu0 0.0
    %3084 = vmatpush1.msra.mxu0 0.0
    %3085 = vmatprep.subr.mxu0 0.0
    %3086 = vmatpush1.msra.mxu0 0.0
    %3087 = vmatprep.mubr.f32.mxu0 0.0
    %3088 = vmatmul.mubr.f32.gmra.mrb[0].mxu0 %v3018
    %v3089 = vpop.f32.mrb[0].mxu0
    %v3090 = vadd.f32 0.0, %v3089
    %v3091 = vpop.f32.mrb[0].mxu0
    %3092 = vmatprep.mubr.f32.mxu0 0.0
    %3093 = vmatmul.mubr.f32.gmra.mrb[0].mxu0 %v3021
    %v3094 = vpop.f32.mrb[0].mxu0
    %v3095 = vadd.f32 0.0, %v3094
    %v3096 = vpop.f32.mrb[0].mxu0
    %3097 = vdwg.mxu0
    %v3098 = vld [vmem:[#allocation26] sm:$0xff]
    %v3099 = vld [vmem:[#allocation26 + $0x8] sm:$0xff]
    %v3100 = vld [vmem:[#allocation26 + $0x10] sm:$0xff]
    %v3101 = vld [vmem:[#allocation26 + $0x18] sm:$0xff]
    %v3102 = vld [vmem:[#allocation26 + $0x20] sm:$0xff]
    %v3103 = vld [vmem:[#allocation26 + $0x28] sm:$0xff]
    %v3104 = vld [vmem:[#allocation26 + $0x30] sm:$0xff]
    %v3105 = vld [vmem:[#allocation26 + $0x38] sm:$0xff]
    %3106 = vmatprep.subr.mxu0 0.0
    %3107 = vmatpush1.msra.mxu0 %v3098
    %3108 = vmatprep.subr.mxu0 0.0
    %3109 = vmatpush1.msra.mxu0 %v3099
    %3110 = vmatprep.subr.mxu0 0.0
    %3111 = vmatpush1.msra.mxu0 %v3100
    %3112 = vmatprep.subr.mxu0 0.0
    %3113 = vmatpush1.msra.mxu0 %v3101
    %3114 = vmatprep.subr.mxu0 0.0
    %3115 = vmatpush1.msra.mxu0 %v3102
    %3116 = vmatprep.subr.mxu0 0.0
    %3117 = vmatpush1.msra.mxu0 %v3103
    %3118 = vmatprep.subr.mxu0 0.0
    %3119 = vmatpush1.msra.mxu0 %v3104
    %3120 = vmatprep.subr.mxu0 0.0
    %3121 = vmatpush1.msra.mxu0 %v3105
    %3122 = vmatprep.subr.mxu0 0.0
    %3123 = vmatpush1.msra.mxu0 0.0
    %3124 = vmatprep.subr.mxu0 0.0
    %3125 = vmatpush1.msra.mxu0 0.0
    %3126 = vmatprep.subr.mxu0 0.0
    %3127 = vmatpush1.msra.mxu0 0.0
    %3128 = vmatprep.subr.mxu0 0.0
    %3129 = vmatpush1.msra.mxu0 0.0
    %3130 = vmatprep.subr.mxu0 0.0
    %3131 = vmatpush1.msra.mxu0 0.0
    %3132 = vmatprep.subr.mxu0 0.0
    %3133 = vmatpush1.msra.mxu0 0.0
    %3134 = vmatprep.subr.mxu0 0.0
    %3135 = vmatpush1.msra.mxu0 0.0
    %3136 = vmatprep.subr.mxu0 0.0
    %3137 = vmatpush1.msra.mxu0 0.0
    %3138 = vmatprep.subr.mxu0 0.0
    %3139 = vmatpush1.msra.mxu0 0.0
    %3140 = vmatprep.subr.mxu0 0.0
    %3141 = vmatpush1.msra.mxu0 0.0
    %3142 = vmatprep.subr.mxu0 0.0
    %3143 = vmatpush1.msra.mxu0 0.0
    %3144 = vmatprep.subr.mxu0 0.0
    %3145 = vmatpush1.msra.mxu0 0.0
    %3146 = vmatprep.subr.mxu0 0.0
    %3147 = vmatpush1.msra.mxu0 0.0
    %3148 = vmatprep.subr.mxu0 0.0
    %3149 = vmatpush1.msra.mxu0 0.0
    %3150 = vmatprep.subr.mxu0 0.0
    %3151 = vmatpush1.msra.mxu0 0.0
    %3152 = vmatprep.subr.mxu0 0.0
    %3153 = vmatpush1.msra.mxu0 0.0
    %3154 = vmatprep.subr.mxu0 0.0
    %3155 = vmatpush1.msra.mxu0 0.0
    %3156 = vmatprep.subr.mxu0 0.0
    %3157 = vmatpush1.msra.mxu0 0.0
    %3158 = vmatprep.subr.mxu0 0.0
    %3159 = vmatpush1.msra.mxu0 0.0
    %3160 = vmatprep.subr.mxu0 0.0
    %3161 = vmatpush1.msra.mxu0 0.0
    %3162 = vmatprep.subr.mxu0 0.0
    %3163 = vmatpush1.msra.mxu0 0.0
    %3164 = vmatprep.subr.mxu0 0.0
    %3165 = vmatpush1.msra.mxu0 0.0
    %3166 = vmatprep.subr.mxu0 0.0
    %3167 = vmatpush1.msra.mxu0 0.0
    %3168 = vmatprep.subr.mxu0 0.0
    %3169 = vmatpush1.msra.mxu0 0.0
    %3170 = vmatprep.mubr.f32.mxu0 0.0
    %3171 = vmatmul.mubr.f32.gmra.mrb[0].mxu0 %v3018
    %v3172 = vpop.f32.mrb[0].mxu0
    %v3173 = vadd.f32 0.0, %v3172
    %v3174 = vpop.f32.mrb[0].mxu0
    %3175 = vmatprep.mubr.f32.mxu0 0.0
    %3176 = vmatmul.mubr.f32.gmra.mrb[0].mxu0 %v3021
    %v3177 = vpop.f32.mrb[0].mxu0
    %v3178 = vadd.f32 0.0, %v3177
    %v3179 = vpop.f32.mrb[0].mxu0
    %3180 = vdwg.mxu0
    %v3181 = vlaneseq
    %v3182 = vand.u32 %v3181, 127
    %v3183 = vld [vmem:[%s7] sm:$0xff]
    %v3184 = vld [vmem:[%s7 + $0x8] sm:$0xff]
    %v3185 = vld [vmem:[%s7 + $0x10] sm:$0xff]
    %3186 = vset.pattern.permute.xlu0 0
    %3187 = vperm.xlu0 %3186, %v3183
    %v3188 = vpop.permute.xlu0 %3187
    %3189 = vset.pattern.permute.xlu0 0
    %3190 = vperm.xlu0 %3189, %v3184
    %v3191 = vpop.permute.xlu0 %3190
    %3192 = vset.pattern.permute.xlu0 0
    %3193 = vperm.xlu0 %3192, %v3185
    %v3194 = vpop.permute.xlu0 %3193
    %vm3195 = vcmp.eq.s32.totalorder %v3182, %v3188
    %vm3196 = vcmp.eq.s32.totalorder %v3182, %v3191
    %vm3197 = vcmp.eq.s32.totalorder %v3182, %v3194
    %v3198 = vsel %vm3195, 1, 0
    %v3199 = vsel %vm3196, 1, 0
    %v3200 = vsel %vm3197, 1, 0
    %v3201 = vcvt.s32.f32 %v3198
    %v3202 = vcvt.s32.f32 %v3199
    %v3203 = vcvt.s32.f32 %v3200
    %v3204 = vld [vmem:[%s9] sm:$0xff]
    %v3205 = vld [vmem:[%s9 + $0x8] sm:$0xff]
    %v3206 = vld [vmem:[%s9 + $0x10] sm:$0xff]
    %3207 = vset.pattern.permute.xlu0 0
    %3208 = vperm.xlu0 %3207, %v3204
    %v3209 = vpop.permute.xlu0 %3208
    %3210 = vset.pattern.permute.xlu0 0
    %3211 = vperm.xlu0 %3210, %v3205
    %v3212 = vpop.permute.xlu0 %3211
    %3213 = vset.pattern.permute.xlu0 0
    %3214 = vperm.xlu0 %3213, %v3206
    %v3215 = vpop.permute.xlu0 %3214
    %vm3216 = vcmp.eq.s32.totalorder %v3182, %v3209
    %vm3217 = vcmp.eq.s32.totalorder %v3182, %v3212
    %vm3218 = vcmp.eq.s32.totalorder %v3182, %v3215
    %v3219 = vsel %vm3216, 1, 0
    %v3220 = vsel %vm3217, 1, 0
    %v3221 = vsel %vm3218, 1, 0
    %v3222 = vcvt.s32.f32 %v3219
    %v3223 = vcvt.s32.f32 %v3220
    %v3224 = vcvt.s32.f32 %v3221
    %v3226 = vsel %vm449, %v3222, 0
    %v3229 = vsel %vm449, %v3223, 0
    %v3232 = vsel %vm449, %v3224, 0
    %3234 = vmatprep.subr.mxu0 0.0
    %3235 = vmatpush1.msra.mxu0 %v3001
    %3236 = vmatprep.subr.mxu0 0.0
    %3237 = vmatpush1.msra.mxu0 %v3006
    %3238 = vmatprep.subr.mxu0 0.0
    %3239 = vmatpush1.msra.mxu0 0.0
    %3240 = vmatprep.subr.mxu0 0.0
    %3241 = vmatpush1.msra.mxu0 0.0
    %3242 = vmatprep.subr.mxu0 0.0
    %3243 = vmatpush1.msra.mxu0 0.0
    %3244 = vmatprep.subr.mxu0 0.0
    %3245 = vmatpush1.msra.mxu0 0.0
    %3246 = vmatprep.subr.mxu0 0.0
    %3247 = vmatpush1.msra.mxu0 0.0
    %3248 = vmatprep.subr.mxu0 0.0
    %3249 = vmatpush1.msra.mxu0 0.0
    %3250 = vmatprep.subr.mxu0 0.0
    %3251 = vmatpush1.msra.mxu0 0.0
    %3252 = vmatprep.subr.mxu0 0.0
    %3253 = vmatpush1.msra.mxu0 0.0
    %3254 = vmatprep.subr.mxu0 0.0
    %3255 = vmatpush1.msra.mxu0 0.0
    %3256 = vmatprep.subr.mxu0 0.0
    %3257 = vmatpush1.msra.mxu0 0.0
    %3258 = vmatprep.subr.mxu0 0.0
    %3259 = vmatpush1.msra.mxu0 0.0
    %3260 = vmatprep.subr.mxu0 0.0
    %3261 = vmatpush1.msra.mxu0 0.0
    %3262 = vmatprep.subr.mxu0 0.0
    %3263 = vmatpush1.msra.mxu0 0.0
    %3264 = vmatprep.subr.mxu0 0.0
    %3265 = vmatpush1.msra.mxu0 0.0
    %3266 = vmatprep.subr.mxu0 0.0
    %3267 = vmatpush1.msra.mxu0 0.0
    %3268 = vmatprep.subr.mxu0 0.0
    %3269 = vmatpush1.msra.mxu0 0.0
    %3270 = vmatprep.subr.mxu0 0.0
    %3271 = vmatpush1.msra.mxu0 0.0
    %3272 = vmatprep.subr.mxu0 0.0
    %3273 = vmatpush1.msra.mxu0 0.0
    %3274 = vmatprep.subr.mxu0 0.0
    %3275 = vmatpush1.msra.mxu0 0.0
    %3276 = vmatprep.subr.mxu0 0.0
    %3277 = vmatpush1.msra.mxu0 0.0
    %3278 = vmatprep.subr.mxu0 0.0
    %3279 = vmatpush1.msra.mxu0 0.0
    %3280 = vmatprep.subr.mxu0 0.0
    %3281 = vmatpush1.msra.mxu0 0.0
    %3282 = vmatprep.subr.mxu0 0.0
    %3283 = vmatpush1.msra.mxu0 0.0
    %3284 = vmatprep.subr.mxu0 0.0
    %3285 = vmatpush1.msra.mxu0 0.0
    %3286 = vmatprep.subr.mxu0 0.0
    %3287 = vmatpush1.msra.mxu0 0.0
    %3288 = vmatprep.subr.mxu0 0.0
    %3289 = vmatpush1.msra.mxu0 0.0
    %3290 = vmatprep.subr.mxu0 0.0
    %3291 = vmatpush1.msra.mxu0 0.0
    %3292 = vmatprep.subr.mxu0 0.0
    %3293 = vmatpush1.msra.mxu0 0.0
    %3294 = vmatprep.subr.mxu0 0.0
    %3295 = vmatpush1.msra.mxu0 0.0
    %3296 = vmatprep.subr.mxu0 0.0
    %3297 = vmatpush1.msra.mxu0 0.0
    %3298 = vmatprep.mubr.f32.mxu0 0.0
    %3299 = vmatmul.mubr.f32.gmra.mrb[0].mxu0 %v3226
    %v3300 = vpop.f32.mrb[0].mxu0
    %v3301 = vadd.f32 0.0, %v3300
    %v3302 = vpop.f32.mrb[0].mxu0
    %3303 = vmatprep.mubr.f32.mxu0 0.0
    %3304 = vmatmul.mubr.f32.gmra.mrb[0].mxu0 %v3229
    %v3305 = vpop.f32.mrb[0].mxu0
    %v3306 = vadd.f32 0.0, %v3305
    %v3307 = vpop.f32.mrb[0].mxu0
    %3308 = vmatprep.mubr.f32.mxu0 0.0
    %3309 = vmatmul.mubr.f32.gmra.mrb[0].mxu0 %v3232
    %v3310 = vpop.f32.mrb[0].mxu0
    %v3311 = vadd.f32 0.0, %v3310
    %v3312 = vpop.f32.mrb[0].mxu0
    %3313 = vdwg.mxu0
    %v3315 = vsel %vm449, %v3201, 0
    %v3318 = vsel %vm449, %v3202, 0
    %v3321 = vsel %vm449, %v3203, 0
    %3323 = vmatprep.subr.mxu0 0.0
    %3324 = vmatpush1.msra.mxu0 %v2918
    %3325 = vmatprep.subr.mxu0 0.0
    %3326 = vmatpush1.msra.mxu0 %v2923
    %3327 = vmatprep.subr.mxu0 0.0
    %3328 = vmatpush1.msra.mxu0 0.0
    %3329 = vmatprep.subr.mxu0 0.0
    %3330 = vmatpush1.msra.mxu0 0.0
    %3331 = vmatprep.subr.mxu0 0.0
    %3332 = vmatpush1.msra.mxu0 0.0
    %3333 = vmatprep.subr.mxu0 0.0
    %3334 = vmatpush1.msra.mxu0 0.0
    %3335 = vmatprep.subr.mxu0 0.0
    %3336 = vmatpush1.msra.mxu0 0.0
    %3337 = vmatprep.subr.mxu0 0.0
    %3338 = vmatpush1.msra.mxu0 0.0
    %3339 = vmatprep.subr.mxu0 0.0
    %3340 = vmatpush1.msra.mxu0 0.0
    %3341 = vmatprep.subr.mxu0 0.0
    %3342 = vmatpush1.msra.mxu0 0.0
    %3343 = vmatprep.subr.mxu0 0.0
    %3344 = vmatpush1.msra.mxu0 0.0
    %3345 = vmatprep.subr.mxu0 0.0
    %3346 = vmatpush1.msra.mxu0 0.0
    %3347 = vmatprep.subr.mxu0 0.0
    %3348 = vmatpush1.msra.mxu0 0.0
    %3349 = vmatprep.subr.mxu0 0.0
    %3350 = vmatpush1.msra.mxu0 0.0
    %3351 = vmatprep.subr.mxu0 0.0
    %3352 = vmatpush1.msra.mxu0 0.0
    %3353 = vmatprep.subr.mxu0 0.0
    %3354 = vmatpush1.msra.mxu0 0.0
    %3355 = vmatprep.subr.mxu0 0.0
    %3356 = vmatpush1.msra.mxu0 0.0
    %3357 = vmatprep.subr.mxu0 0.0
    %3358 = vmatpush1.msra.mxu0 0.0
    %3359 = vmatprep.subr.mxu0 0.0
    %3360 = vmatpush1.msra.mxu0 0.0
    %3361 = vmatprep.subr.mxu0 0.0
    %3362 = vmatpush1.msra.mxu0 0.0
    %3363 = vmatprep.subr.mxu0 0.0
    %3364 = vmatpush1.msra.mxu0 0.0
    %3365 = vmatprep.subr.mxu0 0.0
    %3366 = vmatpush1.msra.mxu0 0.0
    %3367 = vmatprep.subr.mxu0 0.0
    %3368 = vmatpush1.msra.mxu0 0.0
    %3369 = vmatprep.subr.mxu0 0.0
    %3370 = vmatpush1.msra.mxu0 0.0
    %3371 = vmatprep.subr.mxu0 0.0
    %3372 = vmatpush1.msra.mxu0 0.0
    %3373 = vmatprep.subr.mxu0 0.0
    %3374 = vmatpush1.msra.mxu0 0.0
    %3375 = vmatprep.subr.mxu0 0.0
    %3376 = vmatpush1.msra.mxu0 0.0
    %3377 = vmatprep.subr.mxu0 0.0
    %3378 = vmatpush1.msra.mxu0 0.0
    %3379 = vmatprep.subr.mxu0 0.0
    %3380 = vmatpush1.msra.mxu0 0.0
    %3381 = vmatprep.subr.mxu0 0.0
    %3382 = vmatpush1.msra.mxu0 0.0
    %3383 = vmatprep.subr.mxu0 0.0
    %3384 = vmatpush1.msra.mxu0 0.0
    %3385 = vmatprep.subr.mxu0 0.0
    %3386 = vmatpush1.msra.mxu0 0.0
    %3387 = vmatprep.mubr.f32.mxu0 0.0
    %3388 = vmatmul.mubr.f32.gmra.mrb[0].mxu0 %v3315
    %v3389 = vpop.f32.mrb[0].mxu0
    %v3390 = vadd.f32 %v3301, %v3389
    %v3391 = vpop.f32.mrb[0].mxu0
    %3392 = vmatprep.mubr.f32.mxu0 0.0
    %3393 = vmatmul.mubr.f32.gmra.mrb[0].mxu0 %v3318
    %v3394 = vpop.f32.mrb[0].mxu0
    %v3395 = vadd.f32 %v3306, %v3394
    %v3396 = vpop.f32.mrb[0].mxu0
    %3397 = vmatprep.mubr.f32.mxu0 0.0
    %3398 = vmatmul.mubr.f32.gmra.mrb[0].mxu0 %v3321
    %v3399 = vpop.f32.mrb[0].mxu0
    %v3400 = vadd.f32 %v3311, %v3399
    %v3401 = vpop.f32.mrb[0].mxu0
    %3402 = vdwg.mxu0
    %v3403 = vld [vmem:[%s47] sm:$0x1]
    %v3405 = vlaneseq
    %v3406 = vshrl.u32 %v3405, 7
    %v3407 = vsub.s32 0, %v3406
    %v3408 = vrot.slane %v3403, %v3407
    %v3410 = vadd.f32 %v3390, %v3408
    %v3411 = vadd.f32 %v3395, %v3408
    %v3412 = vadd.f32 %v3400, %v3408
    %v3413 = vmax.f32 %v3410, 0.0
    %v3414 = vmax.f32 %v3411, 0.0
    %v3415 = vmax.f32 %v3412, 0.0
    %3416 = vmatprep.subr.mxu0 0.0
    %3417 = vmatpush1.msra.mxu0 %v3173
    %3418 = vmatprep.subr.mxu0 0.0
    %3419 = vmatpush1.msra.mxu0 %v3178
    %3420 = vmatprep.subr.mxu0 0.0
    %3421 = vmatpush1.msra.mxu0 0.0
    %3422 = vmatprep.subr.mxu0 0.0
    %3423 = vmatpush1.msra.mxu0 0.0
    %3424 = vmatprep.subr.mxu0 0.0
    %3425 = vmatpush1.msra.mxu0 0.0
    %3426 = vmatprep.subr.mxu0 0.0
    %3427 = vmatpush1.msra.mxu0 0.0
    %3428 = vmatprep.subr.mxu0 0.0
    %3429 = vmatpush1.msra.mxu0 0.0
    %3430 = vmatprep.subr.mxu0 0.0
    %3431 = vmatpush1.msra.mxu0 0.0
    %3432 = vmatprep.subr.mxu0 0.0
    %3433 = vmatpush1.msra.mxu0 0.0
    %3434 = vmatprep.subr.mxu0 0.0
    %3435 = vmatpush1.msra.mxu0 0.0
    %3436 = vmatprep.subr.mxu0 0.0
    %3437 = vmatpush1.msra.mxu0 0.0
    %3438 = vmatprep.subr.mxu0 0.0
    %3439 = vmatpush1.msra.mxu0 0.0
    %3440 = vmatprep.subr.mxu0 0.0
    %3441 = vmatpush1.msra.mxu0 0.0
    %3442 = vmatprep.subr.mxu0 0.0
    %3443 = vmatpush1.msra.mxu0 0.0
    %3444 = vmatprep.subr.mxu0 0.0
    %3445 = vmatpush1.msra.mxu0 0.0
    %3446 = vmatprep.subr.mxu0 0.0
    %3447 = vmatpush1.msra.mxu0 0.0
    %3448 = vmatprep.subr.mxu0 0.0
    %3449 = vmatpush1.msra.mxu0 0.0
    %3450 = vmatprep.subr.mxu0 0.0
    %3451 = vmatpush1.msra.mxu0 0.0
    %3452 = vmatprep.subr.mxu0 0.0
    %3453 = vmatpush1.msra.mxu0 0.0
    %3454 = vmatprep.subr.mxu0 0.0
    %3455 = vmatpush1.msra.mxu0 0.0
    %3456 = vmatprep.subr.mxu0 0.0
    %3457 = vmatpush1.msra.mxu0 0.0
    %3458 = vmatprep.subr.mxu0 0.0
    %3459 = vmatpush1.msra.mxu0 0.0
    %3460 = vmatprep.subr.mxu0 0.0
    %3461 = vmatpush1.msra.mxu0 0.0
    %3462 = vmatprep.subr.mxu0 0.0
    %3463 = vmatpush1.msra.mxu0 0.0
    %3464 = vmatprep.subr.mxu0 0.0
    %3465 = vmatpush1.msra.mxu0 0.0
    %3466 = vmatprep.subr.mxu0 0.0
    %3467 = vmatpush1.msra.mxu0 0.0
    %3468 = vmatprep.subr.mxu0 0.0
    %3469 = vmatpush1.msra.mxu0 0.0
    %3470 = vmatprep.subr.mxu0 0.0
    %3471 = vmatpush1.msra.mxu0 0.0
    %3472 = vmatprep.subr.mxu0 0.0
    %3473 = vmatpush1.msra.mxu0 0.0
    %3474 = vmatprep.subr.mxu0 0.0
    %3475 = vmatpush1.msra.mxu0 0.0
    %3476 = vmatprep.subr.mxu0 0.0
    %3477 = vmatpush1.msra.mxu0 0.0
    %3478 = vmatprep.subr.mxu0 0.0
    %3479 = vmatpush1.msra.mxu0 0.0
    %3480 = vmatprep.mubr.f32.mxu0 0.0
    %3481 = vmatmul.mubr.f32.gmra.mrb[0].mxu0 %v3226
    %v3482 = vpop.f32.mrb[0].mxu0
    %v3483 = vadd.f32 0.0, %v3482
    %v3484 = vpop.f32.mrb[0].mxu0
    %3485 = vmatprep.mubr.f32.mxu0 0.0
    %3486 = vmatmul.mubr.f32.gmra.mrb[0].mxu0 %v3229
    %v3487 = vpop.f32.mrb[0].mxu0
    %v3488 = vadd.f32 0.0, %v3487
    %v3489 = vpop.f32.mrb[0].mxu0
    %3490 = vmatprep.mubr.f32.mxu0 0.0
    %3491 = vmatmul.mubr.f32.gmra.mrb[0].mxu0 %v3232
    %v3492 = vpop.f32.mrb[0].mxu0
    %v3493 = vadd.f32 0.0, %v3492
    %v3494 = vpop.f32.mrb[0].mxu0
    %3495 = vdwg.mxu0
    %3496 = vmatprep.subr.mxu0 0.0
    %3497 = vmatpush1.msra.mxu0 %v3090
    %3498 = vmatprep.subr.mxu0 0.0
    %3499 = vmatpush1.msra.mxu0 %v3095
    %3500 = vmatprep.subr.mxu0 0.0
    %3501 = vmatpush1.msra.mxu0 0.0
    %3502 = vmatprep.subr.mxu0 0.0
    %3503 = vmatpush1.msra.mxu0 0.0
    %3504 = vmatprep.subr.mxu0 0.0
    %3505 = vmatpush1.msra.mxu0 0.0
    %3506 = vmatprep.subr.mxu0 0.0
    %3507 = vmatpush1.msra.mxu0 0.0
    %3508 = vmatprep.subr.mxu0 0.0
    %3509 = vmatpush1.msra.mxu0 0.0
    %3510 = vmatprep.subr.mxu0 0.0
    %3511 = vmatpush1.msra.mxu0 0.0
    %3512 = vmatprep.subr.mxu0 0.0
    %3513 = vmatpush1.msra.mxu0 0.0
    %3514 = vmatprep.subr.mxu0 0.0
    %3515 = vmatpush1.msra.mxu0 0.0
    %3516 = vmatprep.subr.mxu0 0.0
    %3517 = vmatpush1.msra.mxu0 0.0
    %3518 = vmatprep.subr.mxu0 0.0
    %3519 = vmatpush1.msra.mxu0 0.0
    %3520 = vmatprep.subr.mxu0 0.0
    %3521 = vmatpush1.msra.mxu0 0.0
    %3522 = vmatprep.subr.mxu0 0.0
    %3523 = vmatpush1.msra.mxu0 0.0
    %3524 = vmatprep.subr.mxu0 0.0
    %3525 = vmatpush1.msra.mxu0 0.0
    %3526 = vmatprep.subr.mxu0 0.0
    %3527 = vmatpush1.msra.mxu0 0.0
    %3528 = vmatprep.subr.mxu0 0.0
    %3529 = vmatpush1.msra.mxu0 0.0
    %3530 = vmatprep.subr.mxu0 0.0
    %3531 = vmatpush1.msra.mxu0 0.0
    %3532 = vmatprep.subr.mxu0 0.0
    %3533 = vmatpush1.msra.mxu0 0.0
    %3534 = vmatprep.subr.mxu0 0.0
    %3535 = vmatpush1.msra.mxu0 0.0
    %3536 = vmatprep.subr.mxu0 0.0
    %3537 = vmatpush1.msra.mxu0 0.0
    %3538 = vmatprep.subr.mxu0 0.0
    %3539 = vmatpush1.msra.mxu0 0.0
    %3540 = vmatprep.subr.mxu0 0.0
    %3541 = vmatpush1.msra.mxu0 0.0
    %3542 = vmatprep.subr.mxu0 0.0
    %3543 = vmatpush1.msra.mxu0 0.0
    %3544 = vmatprep.subr.mxu0 0.0
    %3545 = vmatpush1.msra.mxu0 0.0
    %3546 = vmatprep.subr.mxu0 0.0
    %3547 = vmatpush1.msra.mxu0 0.0
    %3548 = vmatprep.subr.mxu0 0.0
    %3549 = vmatpush1.msra.mxu0 0.0
    %3550 = vmatprep.subr.mxu0 0.0
    %3551 = vmatpush1.msra.mxu0 0.0
    %3552 = vmatprep.subr.mxu0 0.0
    %3553 = vmatpush1.msra.mxu0 0.0
    %3554 = vmatprep.subr.mxu0 0.0
    %3555 = vmatpush1.msra.mxu0 0.0
    %3556 = vmatprep.subr.mxu0 0.0
    %3557 = vmatpush1.msra.mxu0 0.0
    %3558 = vmatprep.subr.mxu0 0.0
    %3559 = vmatpush1.msra.mxu0 0.0
    %3560 = vmatprep.mubr.f32.mxu0 0.0
    %3561 = vmatmul.mubr.f32.gmra.mrb[0].mxu0 %v3315
    %v3562 = vpop.f32.mrb[0].mxu0
    %v3563 = vadd.f32 %v3483, %v3562
    %v3564 = vpop.f32.mrb[0].mxu0
    %3565 = vmatprep.mubr.f32.mxu0 0.0
    %3566 = vmatmul.mubr.f32.gmra.mrb[0].mxu0 %v3318
    %v3567 = vpop.f32.mrb[0].mxu0
    %v3568 = vadd.f32 %v3488, %v3567
    %v3569 = vpop.f32.mrb[0].mxu0
    %3570 = vmatprep.mubr.f32.mxu0 0.0
    %3571 = vmatmul.mubr.f32.gmra.mrb[0].mxu0 %v3321
    %v3572 = vpop.f32.mrb[0].mxu0
    %v3573 = vadd.f32 %v3493, %v3572
    %v3574 = vpop.f32.mrb[0].mxu0
    %3575 = vdwg.mxu0
    %v3576 = vld [vmem:[%s53] sm:$0x1]
    %v3578 = vlaneseq
    %v3579 = vshrl.u32 %v3578, 7
    %v3580 = vsub.s32 0, %v3579
    %v3581 = vrot.slane %v3576, %v3580
    %v3583 = vadd.f32 %v3563, %v3581
    %v3584 = vadd.f32 %v3568, %v3581
    %v3585 = vadd.f32 %v3573, %v3581
    %v3586 = vmax.f32 %v3583, 0.0
    %v3587 = vmax.f32 %v3584, 0.0
    %v3588 = vmax.f32 %v3585, 0.0
    %v3589 = vld [vmem:[#allocation28] sm:$0xff]
    %v3590 = vld [vmem:[#allocation28 + $0x8] sm:$0xff]
    %v3591 = vld [vmem:[#allocation28 + $0x10] sm:$0xff]
    %v3592 = vld [vmem:[#allocation28 + $0x18] sm:$0xff]
    %v3593 = vld [vmem:[#allocation28 + $0x20] sm:$0xff]
    %v3594 = vld [vmem:[#allocation28 + $0x28] sm:$0xff]
    %v3595 = vld [vmem:[#allocation28 + $0x30] sm:$0xff]
    %v3596 = vld [vmem:[#allocation28 + $0x38] sm:$0xff]
    %v3597 = vld [vmem:[#allocation29] sm:$0xff]
    %v3598 = vld [vmem:[#allocation29 + $0x8] sm:$0xff]
    %v3599 = vld [vmem:[#allocation29 + $0x10] sm:$0xff]
    %v3600 = vld [vmem:[#allocation29 + $0x18] sm:$0xff]
    %v3601 = vld [vmem:[#allocation29 + $0x20] sm:$0xff]
    %v3602 = vld [vmem:[#allocation29 + $0x28] sm:$0xff]
    %v3603 = vld [vmem:[#allocation29 + $0x30] sm:$0xff]
    %v3604 = vld [vmem:[#allocation29 + $0x38] sm:$0xff]
    %v3606 = vsel %vm541, %v3586, 0
    %v3609 = vsel %vm541, %v3587, 0
    %v3612 = vsel %vm541, %v3588, 0
    %3614 = vmatprep.subr.mxu0 0.0
    %3615 = vmatpush1.msra.mxu0 %v3597
    %3616 = vmatprep.subr.mxu0 0.0
    %3617 = vmatpush1.msra.mxu0 %v3598
    %3618 = vmatprep.subr.mxu0 0.0
    %3619 = vmatpush1.msra.mxu0 %v3599
    %3620 = vmatprep.subr.mxu0 0.0
    %3621 = vmatpush1.msra.mxu0 %v3600
    %3622 = vmatprep.subr.mxu0 0.0
    %3623 = vmatpush1.msra.mxu0 %v3601
    %3624 = vmatprep.subr.mxu0 0.0
    %3625 = vmatpush1.msra.mxu0 %v3602
    %3626 = vmatprep.subr.mxu0 0.0
    %3627 = vmatpush1.msra.mxu0 %v3603
    %3628 = vmatprep.subr.mxu0 0.0
    %3629 = vmatpush1.msra.mxu0 %v3604
    %3630 = vmatprep.subr.mxu0 0.0
    %3631 = vmatpush1.msra.mxu0 0.0
    %3632 = vmatprep.subr.mxu0 0.0
    %3633 = vmatpush1.msra.mxu0 0.0
    %3634 = vmatprep.subr.mxu0 0.0
    %3635 = vmatpush1.msra.mxu0 0.0
    %3636 = vmatprep.subr.mxu0 0.0
    %3637 = vmatpush1.msra.mxu0 0.0
    %3638 = vmatprep.subr.mxu0 0.0
    %3639 = vmatpush1.msra.mxu0 0.0
    %3640 = vmatprep.subr.mxu0 0.0
    %3641 = vmatpush1.msra.mxu0 0.0
    %3642 = vmatprep.subr.mxu0 0.0
    %3643 = vmatpush1.msra.mxu0 0.0
    %3644 = vmatprep.subr.mxu0 0.0
    %3645 = vmatpush1.msra.mxu0 0.0
    %3646 = vmatprep.subr.mxu0 0.0
    %3647 = vmatpush1.msra.mxu0 0.0
    %3648 = vmatprep.subr.mxu0 0.0
    %3649 = vmatpush1.msra.mxu0 0.0
    %3650 = vmatprep.subr.mxu0 0.0
    %3651 = vmatpush1.msra.mxu0 0.0
    %3652 = vmatprep.subr.mxu0 0.0
    %3653 = vmatpush1.msra.mxu0 0.0
    %3654 = vmatprep.subr.mxu0 0.0
    %3655 = vmatpush1.msra.mxu0 0.0
    %3656 = vmatprep.subr.mxu0 0.0
    %3657 = vmatpush1.msra.mxu0 0.0
    %3658 = vmatprep.subr.mxu0 0.0
    %3659 = vmatpush1.msra.mxu0 0.0
    %3660 = vmatprep.subr.mxu0 0.0
    %3661 = vmatpush1.msra.mxu0 0.0
    %3662 = vmatprep.subr.mxu0 0.0
    %3663 = vmatpush1.msra.mxu0 0.0
    %3664 = vmatprep.subr.mxu0 0.0
    %3665 = vmatpush1.msra.mxu0 0.0
    %3666 = vmatprep.subr.mxu0 0.0
    %3667 = vmatpush1.msra.mxu0 0.0
    %3668 = vmatprep.subr.mxu0 0.0
    %3669 = vmatpush1.msra.mxu0 0.0
    %3670 = vmatprep.subr.mxu0 0.0
    %3671 = vmatpush1.msra.mxu0 0.0
    %3672 = vmatprep.subr.mxu0 0.0
    %3673 = vmatpush1.msra.mxu0 0.0
    %3674 = vmatprep.subr.mxu0 0.0
    %3675 = vmatpush1.msra.mxu0 0.0
    %3676 = vmatprep.subr.mxu0 0.0
    %3677 = vmatpush1.msra.mxu0 0.0
    %3678 = vmatprep.mubr.f32.mxu0 0.0
    %3679 = vmatmul.mubr.f32.gmra.mrb[0].mxu0 %v3606
    %v3680 = vpop.f32.mrb[0].mxu0
    %v3681 = vadd.f32 0.0, %v3680
    %v3682 = vpop.f32.mrb[0].mxu0
    %3683 = vmatprep.mubr.f32.mxu0 0.0
    %3684 = vmatmul.mubr.f32.gmra.mrb[0].mxu0 %v3609
    %v3685 = vpop.f32.mrb[0].mxu0
    %v3686 = vadd.f32 0.0, %v3685
    %v3687 = vpop.f32.mrb[0].mxu0
    %3688 = vmatprep.mubr.f32.mxu0 0.0
    %3689 = vmatmul.mubr.f32.gmra.mrb[0].mxu0 %v3612
    %v3690 = vpop.f32.mrb[0].mxu0
    %v3691 = vadd.f32 0.0, %v3690
    %v3692 = vpop.f32.mrb[0].mxu0
    %3693 = vdwg.mxu0
    %v3695 = vsel %vm541, %v3413, 0
    %v3698 = vsel %vm541, %v3414, 0
    %v3701 = vsel %vm541, %v3415, 0
    %3703 = vmatprep.subr.mxu0 0.0
    %3704 = vmatpush1.msra.mxu0 %v3589
    %3705 = vmatprep.subr.mxu0 0.0
    %3706 = vmatpush1.msra.mxu0 %v3590
    %3707 = vmatprep.subr.mxu0 0.0
    %3708 = vmatpush1.msra.mxu0 %v3591
    %3709 = vmatprep.subr.mxu0 0.0
    %3710 = vmatpush1.msra.mxu0 %v3592
    %3711 = vmatprep.subr.mxu0 0.0
    %3712 = vmatpush1.msra.mxu0 %v3593
    %3713 = vmatprep.subr.mxu0 0.0
    %3714 = vmatpush1.msra.mxu0 %v3594
    %3715 = vmatprep.subr.mxu0 0.0
    %3716 = vmatpush1.msra.mxu0 %v3595
    %3717 = vmatprep.subr.mxu0 0.0
    %3718 = vmatpush1.msra.mxu0 %v3596
    %3719 = vmatprep.subr.mxu0 0.0
    %3720 = vmatpush1.msra.mxu0 0.0
    %3721 = vmatprep.subr.mxu0 0.0
    %3722 = vmatpush1.msra.mxu0 0.0
    %3723 = vmatprep.subr.mxu0 0.0
    %3724 = vmatpush1.msra.mxu0 0.0
    %3725 = vmatprep.subr.mxu0 0.0
    %3726 = vmatpush1.msra.mxu0 0.0
    %3727 = vmatprep.subr.mxu0 0.0
    %3728 = vmatpush1.msra.mxu0 0.0
    %3729 = vmatprep.subr.mxu0 0.0
    %3730 = vmatpush1.msra.mxu0 0.0
    %3731 = vmatprep.subr.mxu0 0.0
    %3732 = vmatpush1.msra.mxu0 0.0
    %3733 = vmatprep.subr.mxu0 0.0
    %3734 = vmatpush1.msra.mxu0 0.0
    %3735 = vmatprep.subr.mxu0 0.0
    %3736 = vmatpush1.msra.mxu0 0.0
    %3737 = vmatprep.subr.mxu0 0.0
    %3738 = vmatpush1.msra.mxu0 0.0
    %3739 = vmatprep.subr.mxu0 0.0
    %3740 = vmatpush1.msra.mxu0 0.0
    %3741 = vmatprep.subr.mxu0 0.0
    %3742 = vmatpush1.msra.mxu0 0.0
    %3743 = vmatprep.subr.mxu0 0.0
    %3744 = vmatpush1.msra.mxu0 0.0
    %3745 = vmatprep.subr.mxu0 0.0
    %3746 = vmatpush1.msra.mxu0 0.0
    %3747 = vmatprep.subr.mxu0 0.0
    %3748 = vmatpush1.msra.mxu0 0.0
    %3749 = vmatprep.subr.mxu0 0.0
    %3750 = vmatpush1.msra.mxu0 0.0
    %3751 = vmatprep.subr.mxu0 0.0
    %3752 = vmatpush1.msra.mxu0 0.0
    %3753 = vmatprep.subr.mxu0 0.0
    %3754 = vmatpush1.msra.mxu0 0.0
    %3755 = vmatprep.subr.mxu0 0.0
    %3756 = vmatpush1.msra.mxu0 0.0
    %3757 = vmatprep.subr.mxu0 0.0
    %3758 = vmatpush1.msra.mxu0 0.0
    %3759 = vmatprep.subr.mxu0 0.0
    %3760 = vmatpush1.msra.mxu0 0.0
    %3761 = vmatprep.subr.mxu0 0.0
    %3762 = vmatpush1.msra.mxu0 0.0
    %3763 = vmatprep.subr.mxu0 0.0
    %3764 = vmatpush1.msra.mxu0 0.0
    %3765 = vmatprep.subr.mxu0 0.0
    %3766 = vmatpush1.msra.mxu0 0.0
    %3767 = vmatprep.mubr.f32.mxu0 0.0
    %3768 = vmatmul.mubr.f32.gmra.mrb[0].mxu0 %v3695
    %v3769 = vpop.f32.mrb[0].mxu0
    %v3770 = vadd.f32 %v3681, %v3769
    %v3771 = vpop.f32.mrb[0].mxu0
    %3772 = vmatprep.mubr.f32.mxu0 0.0
    %3773 = vmatmul.mubr.f32.gmra.mrb[0].mxu0 %v3698
    %v3774 = vpop.f32.mrb[0].mxu0
    %v3775 = vadd.f32 %v3686, %v3774
    %v3776 = vpop.f32.mrb[0].mxu0
    %3777 = vmatprep.mubr.f32.mxu0 0.0
    %3778 = vmatmul.mubr.f32.gmra.mrb[0].mxu0 %v3701
    %v3779 = vpop.f32.mrb[0].mxu0
    %v3780 = vadd.f32 %v3691, %v3779
    %v3781 = vpop.f32.mrb[0].mxu0
    %3782 = vdwg.mxu0
    %v3783 = vld [vmem:[%s59] sm:$0x1]
    %v3785 = vlaneseq
    %v3786 = vshrl.u32 %v3785, 7
    %v3787 = vsub.s32 0, %v3786
    %v3788 = vrot.slane %v3783, %v3787
    %v3790 = vadd.f32 %v3770, %v3788
    %v3791 = vadd.f32 %v3775, %v3788
    %v3792 = vadd.f32 %v3780, %v3788
    %vm3793 = vcmp.lt.s32.totalorder %v3182, 4
    %v3794 = vsel %vm3793, %v3790, -1e+30
    %v3795 = vsel %vm3793, %v3791, -1e+30
    %v3796 = vsel %vm3793, %v3792, -1e+30
    %3797 = vmax.xlane.f32.xlu0 %v3794
    %v3798 = vpop.xlane.xlu0 %3797
    %3799 = vmax.xlane.f32.xlu0 %v3795
    %v3800 = vpop.xlane.xlu0 %3799
    %3801 = vmax.xlane.f32.xlu0 %v3796
    %v3802 = vpop.xlane.xlu0 %3801
    %v3803 = vsub.f32 %v3794, %v3798
    %v3804 = vsub.f32 %v3795, %v3800
    %v3805 = vsub.f32 %v3796, %v3802
    %v3806 = vmul.f32 %v3803, 1.442695
    %v3807 = vpow.pop %v3806
    %v3808 = vmul.f32 %v3804, 1.442695
    %v3809 = vpow.pop %v3808
    %v3810 = vmul.f32 %v3805, 1.442695
    %v3811 = vpow.pop %v3810
    %3812 = vadd.xlane.f32.xlu0 %v3807
    %v3813 = vpop.xlane.xlu0 %3812
    %3814 = vadd.xlane.f32.xlu0 %v3809
    %v3815 = vpop.xlane.xlu0 %3814
    %3816 = vadd.xlane.f32.xlu0 %v3811
    %v3817 = vpop.xlane.xlu0 %3816
    %v3818 = vlog2.pop %v3813
    %v3819 = vmul.f32 %v3818, 0.6931472
    %v3820 = vlog2.pop %v3815
    %v3821 = vmul.f32 %v3820, 0.6931472
    %v3822 = vlog2.pop %v3817
    %v3823 = vmul.f32 %v3822, 0.6931472
    %v3824 = vsub.f32 %v3803, %v3819
    %v3825 = vsub.f32 %v3804, %v3821
    %v3826 = vsub.f32 %v3805, %v3823
    %3827 = vst [vmem:[#allocation31] sm:$0xff] %v3824
    %3828 = vst [vmem:[#allocation31 + $0x8] sm:$0xff] %v3825
    %3829 = vst [vmem:[#allocation31 + $0x10] sm:$0xff] %v3826
    // Predicated region
    $region194: #{tpu_custom_call.1} parent=1 // pred_check
      _
    $region195: #{tpu_custom_call.1} parent=1 // pred_check_branch
      %3831 = sbr.rel (0) target = $region197
    $region196: #{tpu_custom_call.1} parent=1 // pred_region
      %s3833 = ssub.s32 384, 384
      %3834 = vsyncadd [#allocation4], %s3833
      %s3835 = sshll.u32 [#allocation31], 4
      %s3836 = int_to_ptr.vmem [resolvable:$true] %s3835
      %3841 = dma.vmem_to_hbm [thread:$0]  %s3836, 384, %s61, [#allocation4], 128, 128, 8
    $region197: #{tpu_custom_call.1} parent=1 // pred_fallthru
      _
    // Predicated region
    $region198: #{tpu_custom_call.1} parent=1 // pred_check
      _
    $region199: #{tpu_custom_call.1} parent=1 // pred_check_branch
      %3843 = sbr.rel (0) target = $region201
    $region200: #{tpu_custom_call.1} parent=1 // pred_region
      %3844 = dma.done [#allocation4], 384
    $region201: #{tpu_custom_call.1} parent=1 // pred_fallthru
      _
    %3845 = vsyncpa [#allocation3], 1
    %3846 = vsyncpa [#allocation6], 1
    %3847 = vsyncpa [#allocation9], 1
    %3848 = vsyncpa [#allocation12], 1
    %3849 = vsyncpa [#allocation15], 1
    %3850 = vsyncpa [#allocation18], 1
    %3851 = vsyncpa [#allocation21], 1
    %3852 = vsyncpa [#allocation24], 1
    %3853 = vsyncpa [#allocation27], 1
    %3854 = vsyncpa [#allocation30], 1
    %3855 = vsyncpa [#allocation4], 1

</llo_original>
